<compile_context>
chip_gen: v6e
topology: v6e:2x2x1
jax: 0.10.0
libtpu: 0.0.40
codegen_flags: <defaults>
</compile_context>

<pallas_src>
import jax
import jax.numpy as jnp
from jax import lax
from jax.experimental import pallas as pl
from jax.experimental.pallas import tpu as pltpu

# ----------------------------- config -------------------------------------
B, H, W = 2, 16, 16
HW = H * W
CIN, COUT, TC = 32, 64, 32         # in_channels, out_channels, time_channels
GROUPS = 32                        # GroupNorm32
EPS = 1e-5


# --------------------------- kernel helpers --------------------------------
def _im2col_conv(h, w_ref, bias, mask_ref, extra_bf16=None):
    """3x3 SAME conv as one big-K MXU matmul.

    Taps are built with pltpu.roll of the flat (H*W, C) activation along the
    sublane axis (tap[r] = h[r + off]); rows that would wrap across image
    boundaries are zeroed with the precomputed validity mask.  Taps are cast to
    bf16 before the lane concatenation; the matmul accumulates in f32.
    `extra_bf16` (the 1x1-shortcut input) is appended as extra K-columns.
    """
    taps = []
    for dy in range(3):
        for dx in range(3):
            off = (dy - 1) * W + (dx - 1)            # source-row offset
            k = dy * 3 + dx                          # matches weight row-block order
            if off == 0:
                taps.append(h.astype(jnp.bfloat16))  # center tap: always valid
            else:
                t = pltpu.roll(h, shift=(-off) % HW, axis=0)
                taps.append((t * mask_ref[:, k:k + 1]).astype(jnp.bfloat16))
    if extra_bf16 is not None:
        taps.append(extra_bf16)
    patch = jnp.concatenate(taps, axis=-1)           # (HW, 9*C [+ CIN]) bf16
    return jnp.dot(patch, w_ref[...], preferred_element_type=jnp.float32) + bias


# ------------------------------ kernel --------------------------------------
def _res_block_kernel(x_ref, te_ref, ce_ref, pcin_ref, pcout_ref, avg2_ref,
                      mask_ref, w1_ref, w2_ref, out_ref):
    xf = x_ref[0]                                    # (HW, CIN) f32
    inv_hw = 1.0 / HW

    # ---- norm1: GroupNorm32 with group size 1 -> pure per-channel VPU math ----
    g1 = pcin_ref[0:1, :]
    be1 = pcin_ref[1:2, :]
    mean1 = jnp.sum(xf, axis=0, keepdims=True) * inv_hw
    msq1 = jnp.sum(xf * xf, axis=0, keepdims=True) * inv_hw
    var1 = jnp.maximum(msq1 - mean1 * mean1, 0.0)
    h = (xf - mean1) * lax.rsqrt(var1 + EPS) * g1 + be1
    h = h * jax.nn.sigmoid(h)                        # SiLU

    # ---- conv1: 3x3 SAME via roll/mask im2col + single K=9*CIN matmul ----
    h = _im2col_conv(h, w1_ref, pcout_ref[0:1, :], mask_ref)

    # ---- norm2: GroupNorm32, group size 2, ONE stacked matmul for both stats ----
    s = jnp.sum(h, axis=0, keepdims=True)
    s2 = jnp.sum(h * h, axis=0, keepdims=True)
    stats = jnp.dot(jnp.concatenate([s, s2], axis=0), avg2_ref[...],
                    preferred_element_type=jnp.float32)       # (2, COUT)
    mean2 = stats[0:1, :]
    msq2 = stats[1:2, :]
    var2 = jnp.maximum(msq2 - mean2 * mean2, 0.0)
    h = (h - mean2) * lax.rsqrt(var2 + EPS) * pcout_ref[1:2, :] + pcout_ref[2:3, :]

    # ---- h = t_ * h + c_  (embedding Linears hoisted to the wrapper) ----
    h = te_ref[0] * h + ce_ref[0]

    # ---- SiLU + Dropout + conv2 (3x3 SAME) with the 1x1 shortcut fused in ----
    # TODO(synk): nn.Dropout implemented as eval-mode identity (inference semantics).
    h = h * jax.nn.sigmoid(h)
    out = _im2col_conv(h, w2_ref, pcout_ref[3:4, :], mask_ref,
                       extra_bf16=xf.astype(jnp.bfloat16))
    out_ref[0] = out.astype(out_ref.dtype)


# ------------------------------ wrapper --------------------------------------
@jax.jit
def res_att_block(x_nchw, t, c, p):
    # NCHW -> (B, H*W, C): layout plumbing done in XLA, channels on the lane axis.
    x = jnp.transpose(x_nchw, (0, 2, 3, 1)).reshape(B, HW, CIN).astype(jnp.float32)

    # time / class embeddings: Linear(SiLU(.)) computed for the whole batch here.
    temb = (jax.nn.silu(t) @ p["wt"] + p["bt"].reshape(-1)).reshape(B, 1, COUT)
    cemb = (jax.nn.silu(c) @ p["wc"] + p["bc"].reshape(-1)).reshape(B, 1, COUT)

    # pack tiny per-channel params -> two small DMAs. conv2 bias absorbs the
    # shortcut bias (shortcut matmul is fused into conv2).
    pcin = jnp.concatenate([p["g1"], p["be1"]], axis=0)                     # (2, CIN)
    pcout = jnp.concatenate([p["b1"], p["g2"], p["be2"], p["b2"] + p["bs"]],
                            axis=0)                                         # (4, COUT)

    # GroupNorm32 averaging matrix for COUT (group size 2), built once here.
    gid = jnp.arange(COUT) // (COUT // GROUPS)
    avg2 = jnp.where(gid[:, None] == gid[None, :],
                     1.0 / (HW * (COUT // GROUPS)), 0.0).astype(jnp.float32)

    # per-tap row-validity masks for the roll-based im2col (SAME zero padding).
    r = jnp.arange(HW)
    yy, xx = r // W, r % W
    cols = []
    for dy in range(3):
        for dx in range(3):
            cols.append((yy + dy - 1 >= 0) & (yy + dy - 1 < H)
                        & (xx + dx - 1 >= 0) & (xx + dx - 1 < W))
    tapmask = jnp.stack(cols, axis=-1).astype(jnp.float32)                  # (HW, 9)

    # conv weights flattened for im2col; shortcut weight appended to conv2's
    # weight (extra CIN K-rows); bf16 operands (f32 accumulate in-kernel).
    w1c = p["w1"].reshape(9 * CIN, COUT).astype(jnp.bfloat16)               # (288, 64)
    w2c = jnp.concatenate([p["w2"].reshape(9 * COUT, COUT), p["ws"]],
                          axis=0).astype(jnp.bfloat16)                      # (608, 64)

    grid_spec = pltpu.PrefetchScalarGridSpec(
        num_scalar_prefetch=0,
        grid=(B,),
        in_specs=[
            pl.BlockSpec((1, HW, CIN), lambda b: (b, 0, 0)),       # x
            pl.BlockSpec((1, 1, COUT), lambda b: (b, 0, 0)),       # temb
            pl.BlockSpec((1, 1, COUT), lambda b: (b, 0, 0)),       # cemb
            pl.BlockSpec((2, CIN), lambda b: (0, 0)),              # g1 / be1
            pl.BlockSpec((4, COUT), lambda b: (0, 0)),             # b1,g2,be2,b2+bs
            pl.BlockSpec((COUT, COUT), lambda b: (0, 0)),          # GN2 avg matrix
            pl.BlockSpec((HW, 9), lambda b: (0, 0)),               # tap validity masks
            pl.BlockSpec((9 * CIN, COUT), lambda b: (0, 0)),       # conv1 weight
            pl.BlockSpec((9 * COUT + CIN, COUT), lambda b: (0, 0)),  # conv2 (+shortcut) weight
        ],
        out_specs=pl.BlockSpec((1, HW, COUT), lambda b: (b, 0, 0)),
    )
    out = pl.pallas_call(
        _res_block_kernel,
        out_shape=jax.ShapeDtypeStruct((B, HW, COUT), jnp.float32),
        grid_spec=grid_spec,
        compiler_params=pltpu.CompilerParams(dimension_semantics=("parallel",)),
    )(x, temb, cemb, pcin, pcout, avg2, tapmask, w1c, w2c)

    # has_attn=False -> self.attn = nn.Identity()
    return jnp.transpose(out.reshape(B, H, W, COUT), (0, 3, 1, 2))   # back to NCHW


# -------------------------- params & reference --------------------------------
def init_params(key):
    ks = jax.random.split(key, 14)
    n = lambda k, shape, s=0.1: (s * jax.random.normal(k, shape)).astype(jnp.float32)
    return {
        "g1": 1.0 + n(ks[0], (1, CIN)), "be1": n(ks[1], (1, CIN)),
        "w1": n(ks[2], (9, CIN, COUT)), "b1": n(ks[3], (1, COUT)),
        "g2": 1.0 + n(ks[4], (1, COUT)), "be2": n(ks[5], (1, COUT)),
        "wt": n(ks[6], (TC, COUT)), "bt": n(ks[7], (1, COUT)),
        "wc": n(ks[8], (TC, COUT)), "bc": n(ks[9], (1, COUT)),
        "w2": n(ks[10], (9, COUT, COUT)), "b2": n(ks[11], (1, COUT)),
        "ws": n(ks[12], (CIN, COUT)), "bs": n(ks[13], (1, COUT)),
    }


def _gn_ref(x, gamma, beta):
    b, h, w, cch = x.shape
    cg = cch // GROUPS
    xg = x.reshape(b, h * w, GROUPS, cg)
    mean = xg.mean(axis=(1, 3), keepdims=True)
    var = xg.var(axis=(1, 3), keepdims=True)
    xn = ((xg - mean) / jnp.sqrt(var + EPS)).reshape(b, h, w, cch)
    return xn * gamma.reshape(cch) + beta.reshape(cch)


def _conv_ref(x, w9, bias):
    wk = w9.reshape(3, 3, w9.shape[1], w9.shape[2])
    y = lax.conv_general_dilated(x, wk, (1, 1), "SAME",
                                 dimension_numbers=("NHWC", "HWIO", "NHWC"))
    return y + bias.reshape(-1)


def ref_forward(x_nchw, t, c, p):
    x = jnp.transpose(x_nchw, (0, 2, 3, 1)).astype(jnp.float32)
    h = jax.nn.silu(_gn_ref(x, p["g1"], p["be1"]))
    h = _conv_ref(h, p["w1"], p["b1"])
    h = _gn_ref(h, p["g2"], p["be2"])
    temb = jax.nn.silu(t) @ p["wt"] + p["bt"].reshape(-1)
    cemb = jax.nn.silu(c) @ p["wc"] + p["bc"].reshape(-1)
    h = temb[:, None, None, :] * h + cemb[:, None, None, :]
    h = _conv_ref(jax.nn.silu(h), p["w2"], p["b2"])
    sc = x @ p["ws"] + p["bs"].reshape(-1)
    return jnp.transpose(h + sc, (0, 3, 1, 2))


# ------------------------------- main ------------------------------------------
if __name__ == "__main__":
    key = jax.random.PRNGKey(0)
    kx, kt, kc, kp = jax.random.split(key, 4)
    x = jax.random.normal(kx, (B, CIN, H, W), jnp.float32)
    t = jax.random.normal(kt, (B, TC), jnp.float32)
    c = jax.random.normal(kc, (B, TC), jnp.float32)
    params = init_params(kp)

    out = jax.block_until_ready(res_att_block(x, t, c, params))
    assert out.shape == (B, COUT, H, W)

    ref = ref_forward(x, t, c, params)
    # kernel uses bf16 matmul operands (f32 accumulate), and the 1x1 shortcut is
    # also fused through the bf16 conv2 matmul; reference is pure f32.
    err = jnp.max(jnp.abs(out - ref))
    if not jnp.allclose(out, ref, rtol=3e-2, atol=3e-2):
        raise AssertionError(f"Pallas kernel output mismatch vs JAX reference "
                             f"(max abs err = {float(err):.3e})")
    print("KERNEL_OK")
</pallas_src>

<mosaic_0001>
module attributes {stable_mosaic.version = 11 : i64} {
  func.func @_res_block_kernel(%arg0: i32, %arg1: memref<1x256x32xf32, #tpu.memory_space<vmem>>, %arg2: memref<1x1x64xf32, #tpu.memory_space<vmem>>, %arg3: memref<1x1x64xf32, #tpu.memory_space<vmem>>, %arg4: memref<2x32xf32, #tpu.memory_space<vmem>>, %arg5: memref<4x64xf32, #tpu.memory_space<vmem>>, %arg6: memref<64x64xf32, #tpu.memory_space<vmem>>, %arg7: memref<256x9xf32, #tpu.memory_space<vmem>>, %arg8: memref<288x64xbf16, #tpu.memory_space<vmem>>, %arg9: memref<608x64xbf16, #tpu.memory_space<vmem>>, %arg10: memref<1x256x64xf32, #tpu.memory_space<vmem>>) attributes {dimension_semantics = [#tpu.dimension_semantics<parallel>], iteration_bounds = array<i64: 2>, scalar_prefetch = 0 : i64, scratch_operands = 0 : i64, tpu.core_type = #tpu.core_type<tc>, window_params = [{transform_indices = @transform_0, window_bounds = array<i64: 1, 256, 32>}, {transform_indices = @transform_1, window_bounds = array<i64: 1, 1, 64>}, {transform_indices = @transform_2, window_bounds = array<i64: 1, 1, 64>}, {pipeline_mode = #tpu.pipeline_mode<synchronous>, transform_indices = @transform_3, window_bounds = array<i64: 2, 32>}, {pipeline_mode = #tpu.pipeline_mode<synchronous>, transform_indices = @transform_4, window_bounds = array<i64: 4, 64>}, {pipeline_mode = #tpu.pipeline_mode<synchronous>, transform_indices = @transform_5, window_bounds = array<i64: 64, 64>}, {pipeline_mode = #tpu.pipeline_mode<synchronous>, transform_indices = @transform_6, window_bounds = array<i64: 256, 9>}, {pipeline_mode = #tpu.pipeline_mode<synchronous>, transform_indices = @transform_7, window_bounds = array<i64: 288, 64>}, {pipeline_mode = #tpu.pipeline_mode<synchronous>, transform_indices = @transform_8, window_bounds = array<i64: 608, 64>}, {transform_indices = @transform_9, window_bounds = array<i64: 1, 256, 64>}]} {
    %c0 = arith.constant 0 : index
    %c0_0 = arith.constant 0 : index
    %c0_1 = arith.constant 0 : index
    %0 = vector.load %arg1[%c0, %c0_0, %c0_1] : memref<1x256x32xf32, #tpu.memory_space<vmem>>, vector<1x256x32xf32>
    %1 = vector.shape_cast %0 : vector<1x256x32xf32> to vector<256x32xf32>
    %c0_2 = arith.constant 0 : index
    %c0_3 = arith.constant 0 : index
    %2 = vector.load %arg4[%c0_2, %c0_3] : memref<2x32xf32, #tpu.memory_space<vmem>>, vector<1x32xf32>
    %c1 = arith.constant 1 : index
    %c0_4 = arith.constant 0 : index
    %3 = vector.load %arg4[%c1, %c0_4] : memref<2x32xf32, #tpu.memory_space<vmem>>, vector<1x32xf32>
    %cst = arith.constant dense<0.000000e+00> : vector<32xf32>
    %4 = vector.multi_reduction <add>, %1, %cst [0] : vector<256x32xf32> to vector<32xf32>
    %5 = vector.shape_cast %4 : vector<32xf32> to vector<1x32xf32>
    %cst_5 = arith.constant 3.906250e-03 : f32
    %6 = vector.broadcast %cst_5 : f32 to vector<1x32xf32>
    %7 = arith.mulf %5, %6 : vector<1x32xf32>
    %8 = arith.mulf %1, %1 : vector<256x32xf32>
    %cst_6 = arith.constant dense<0.000000e+00> : vector<32xf32>
    %9 = vector.multi_reduction <add>, %8, %cst_6 [0] : vector<256x32xf32> to vector<32xf32>
    %10 = vector.shape_cast %9 : vector<32xf32> to vector<1x32xf32>
    %cst_7 = arith.constant 3.906250e-03 : f32
    %11 = vector.broadcast %cst_7 : f32 to vector<1x32xf32>
    %12 = arith.mulf %10, %11 : vector<1x32xf32>
    %13 = arith.mulf %7, %7 : vector<1x32xf32>
    %14 = arith.subf %12, %13 : vector<1x32xf32>
    %cst_8 = arith.constant 0.000000e+00 : f32
    %15 = vector.broadcast %cst_8 : f32 to vector<1x32xf32>
    %16 = arith.maximumf %14, %15 : vector<1x32xf32>
    %17 = vector.broadcast %7 : vector<1x32xf32> to vector<256x32xf32>
    %18 = arith.subf %1, %17 : vector<256x32xf32>
    %cst_9 = arith.constant 9.99999974E-6 : f32
    %19 = vector.broadcast %cst_9 : f32 to vector<1x32xf32>
    %20 = arith.addf %16, %19 : vector<1x32xf32>
    %21 = math.rsqrt %20 : vector<1x32xf32>
    %22 = vector.broadcast %21 : vector<1x32xf32> to vector<256x32xf32>
    %23 = arith.mulf %18, %22 : vector<256x32xf32>
    %24 = vector.broadcast %2 : vector<1x32xf32> to vector<256x32xf32>
    %25 = arith.mulf %23, %24 : vector<256x32xf32>
    %26 = vector.broadcast %3 : vector<1x32xf32> to vector<256x32xf32>
    %27 = arith.addf %25, %26 : vector<256x32xf32>
    %28 = arith.negf %27 : vector<256x32xf32>
    %29 = math.exp %28 : vector<256x32xf32>
    %cst_10 = arith.constant 1.000000e+00 : f32
    %30 = vector.broadcast %cst_10 : f32 to vector<256x32xf32>
    %31 = arith.addf %30, %29 : vector<256x32xf32>
    %32 = arith.divf %30, %31 : vector<256x32xf32>
    %33 = arith.mulf %27, %32 : vector<256x32xf32>
    %c0_11 = arith.constant 0 : index
    %c0_12 = arith.constant 0 : index
    %34 = vector.load %arg5[%c0_11, %c0_12] : memref<4x64xf32, #tpu.memory_space<vmem>>, vector<1x64xf32>
    %c17_i32 = arith.constant 17 : i32
    %35 = tpu.dynamic_rotate %33 by %c17_i32 dim 0 : vector<256x32xf32>, i32 -> vector<256x32xf32>
    %c0_13 = arith.constant 0 : index
    %c0_14 = arith.constant 0 : index
    %36 = vector.load %arg7[%c0_13, %c0_14] : memref<256x9xf32, #tpu.memory_space<vmem>>, vector<256x1xf32>
    %37 = vector.broadcast %36 : vector<256x1xf32> to vector<256x32xf32>
    %38 = arith.mulf %35, %37 : vector<256x32xf32>
    %39 = arith.truncf %38 : vector<256x32xf32> to vector<256x32xbf16>
    %c16_i32 = arith.constant 16 : i32
    %40 = tpu.dynamic_rotate %33 by %c16_i32 dim 0 : vector<256x32xf32>, i32 -> vector<256x32xf32>
    %c0_15 = arith.constant 0 : index
    %c1_16 = arith.constant 1 : index
    %41 = vector.load %arg7[%c0_15, %c1_16] : memref<256x9xf32, #tpu.memory_space<vmem>>, vector<256x1xf32>
    %42 = vector.broadcast %41 : vector<256x1xf32> to vector<256x32xf32>
    %43 = arith.mulf %40, %42 : vector<256x32xf32>
    %44 = arith.truncf %43 : vector<256x32xf32> to vector<256x32xbf16>
    %c15_i32 = arith.constant 15 : i32
    %45 = tpu.dynamic_rotate %33 by %c15_i32 dim 0 : vector<256x32xf32>, i32 -> vector<256x32xf32>
    %c0_17 = arith.constant 0 : index
    %c2 = arith.constant 2 : index
    %46 = vector.load %arg7[%c0_17, %c2] : memref<256x9xf32, #tpu.memory_space<vmem>>, vector<256x1xf32>
    %47 = vector.broadcast %46 : vector<256x1xf32> to vector<256x32xf32>
    %48 = arith.mulf %45, %47 : vector<256x32xf32>
    %49 = arith.truncf %48 : vector<256x32xf32> to vector<256x32xbf16>
    %c1_i32 = arith.constant 1 : i32
    %50 = tpu.dynamic_rotate %33 by %c1_i32 dim 0 : vector<256x32xf32>, i32 -> vector<256x32xf32>
    %c0_18 = arith.constant 0 : index
    %c3 = arith.constant 3 : index
    %51 = vector.load %arg7[%c0_18, %c3] : memref<256x9xf32, #tpu.memory_space<vmem>>, vector<256x1xf32>
    %52 = vector.broadcast %51 : vector<256x1xf32> to vector<256x32xf32>
    %53 = arith.mulf %50, %52 : vector<256x32xf32>
    %54 = arith.truncf %53 : vector<256x32xf32> to vector<256x32xbf16>
    %55 = arith.truncf %33 : vector<256x32xf32> to vector<256x32xbf16>
    %c255_i32 = arith.constant 255 : i32
    %56 = tpu.dynamic_rotate %33 by %c255_i32 dim 0 : vector<256x32xf32>, i32 -> vector<256x32xf32>
    %c0_19 = arith.constant 0 : index
    %c5 = arith.constant 5 : index
    %57 = vector.load %arg7[%c0_19, %c5] : memref<256x9xf32, #tpu.memory_space<vmem>>, vector<256x1xf32>
    %58 = vector.broadcast %57 : vector<256x1xf32> to vector<256x32xf32>
    %59 = arith.mulf %56, %58 : vector<256x32xf32>
    %60 = arith.truncf %59 : vector<256x32xf32> to vector<256x32xbf16>
    %c241_i32 = arith.constant 241 : i32
    %61 = tpu.dynamic_rotate %33 by %c241_i32 dim 0 : vector<256x32xf32>, i32 -> vector<256x32xf32>
    %c0_20 = arith.constant 0 : index
    %c6 = arith.constant 6 : index
    %62 = vector.load %arg7[%c0_20, %c6] : memref<256x9xf32, #tpu.memory_space<vmem>>, vector<256x1xf32>
    %63 = vector.broadcast %62 : vector<256x1xf32> to vector<256x32xf32>
    %64 = arith.mulf %61, %63 : vector<256x32xf32>
    %65 = arith.truncf %64 : vector<256x32xf32> to vector<256x32xbf16>
    %c240_i32 = arith.constant 240 : i32
    %66 = tpu.dynamic_rotate %33 by %c240_i32 dim 0 : vector<256x32xf32>, i32 -> vector<256x32xf32>
    %c0_21 = arith.constant 0 : index
    %c7 = arith.constant 7 : index
    %67 = vector.load %arg7[%c0_21, %c7] : memref<256x9xf32, #tpu.memory_space<vmem>>, vector<256x1xf32>
    %68 = vector.broadcast %67 : vector<256x1xf32> to vector<256x32xf32>
    %69 = arith.mulf %66, %68 : vector<256x32xf32>
    %70 = arith.truncf %69 : vector<256x32xf32> to vector<256x32xbf16>
    %c239_i32 = arith.constant 239 : i32
    %71 = tpu.dynamic_rotate %33 by %c239_i32 dim 0 : vector<256x32xf32>, i32 -> vector<256x32xf32>
    %c0_22 = arith.constant 0 : index
    %c8 = arith.constant 8 : index
    %72 = vector.load %arg7[%c0_22, %c8] : memref<256x9xf32, #tpu.memory_space<vmem>>, vector<256x1xf32>
    %73 = vector.broadcast %72 : vector<256x1xf32> to vector<256x32xf32>
    %74 = arith.mulf %71, %73 : vector<256x32xf32>
    %75 = arith.truncf %74 : vector<256x32xf32> to vector<256x32xbf16>
    %76 = tpu.concatenate %39, %44, %49, %54, %55, %60, %65, %70, %75 in 1 : vector<256x32xbf16>, vector<256x32xbf16>, vector<256x32xbf16>, vector<256x32xbf16>, vector<256x32xbf16>, vector<256x32xbf16>, vector<256x32xbf16>, vector<256x32xbf16>, vector<256x32xbf16> -> vector<256x288xbf16>
    %c0_23 = arith.constant 0 : index
    %c0_24 = arith.constant 0 : index
    %77 = vector.load %arg8[%c0_23, %c0_24] : memref<288x64xbf16, #tpu.memory_space<vmem>>, vector<288x64xbf16>
    %cst_25 = arith.constant dense<0.000000e+00> : vector<256x64xf32>
    %78 = tpu.matmul %76, %77, %cst_25 {dimension_numbers = #tpu.dot_dimension_numbers<[1], [0], [0], [1], [0, 0, 1, 1], [], []>} : vector<256x288xbf16>, vector<288x64xbf16>, vector<256x64xf32> -> vector<256x64xf32>
    %79 = vector.broadcast %34 : vector<1x64xf32> to vector<256x64xf32>
    %80 = arith.addf %78, %79 : vector<256x64xf32>
    %cst_26 = arith.constant dense<0.000000e+00> : vector<64xf32>
    %81 = vector.multi_reduction <add>, %80, %cst_26 [0] : vector<256x64xf32> to vector<64xf32>
    %82 = vector.shape_cast %81 : vector<64xf32> to vector<1x64xf32>
    %83 = arith.mulf %80, %80 : vector<256x64xf32>
    %cst_27 = arith.constant dense<0.000000e+00> : vector<64xf32>
    %84 = vector.multi_reduction <add>, %83, %cst_27 [0] : vector<256x64xf32> to vector<64xf32>
    %85 = vector.shape_cast %84 : vector<64xf32> to vector<1x64xf32>
    %86 = tpu.concatenate %82, %85 in 0 : vector<1x64xf32>, vector<1x64xf32> -> vector<2x64xf32>
    %c0_28 = arith.constant 0 : index
    %c0_29 = arith.constant 0 : index
    %87 = vector.load %arg6[%c0_28, %c0_29] : memref<64x64xf32, #tpu.memory_space<vmem>>, vector<64x64xf32>
    %cst_30 = arith.constant dense<0.000000e+00> : vector<2x64xf32>
    %88 = tpu.matmul %86, %87, %cst_30 {dimension_numbers = #tpu.dot_dimension_numbers<[1], [0], [0], [1], [0, 0, 1, 1], [], []>} : vector<2x64xf32>, vector<64x64xf32>, vector<2x64xf32> -> vector<2x64xf32>
    %89 = vector.extract_strided_slice %88 {offsets = [0, 0], sizes = [1, 64], strides = [1, 1]} : vector<2x64xf32> to vector<1x64xf32>
    %90 = vector.extract_strided_slice %88 {offsets = [1, 0], sizes = [1, 64], strides = [1, 1]} : vector<2x64xf32> to vector<1x64xf32>
    %91 = arith.mulf %89, %89 : vector<1x64xf32>
    %92 = arith.subf %90, %91 : vector<1x64xf32>
    %cst_31 = arith.constant 0.000000e+00 : f32
    %93 = vector.broadcast %cst_31 : f32 to vector<1x64xf32>
    %94 = arith.maximumf %92, %93 : vector<1x64xf32>
    %95 = vector.broadcast %89 : vector<1x64xf32> to vector<256x64xf32>
    %96 = arith.subf %80, %95 : vector<256x64xf32>
    %cst_32 = arith.constant 9.99999974E-6 : f32
    %97 = vector.broadcast %cst_32 : f32 to vector<1x64xf32>
    %98 = arith.addf %94, %97 : vector<1x64xf32>
    %99 = math.rsqrt %98 : vector<1x64xf32>
    %100 = vector.broadcast %99 : vector<1x64xf32> to vector<256x64xf32>
    %101 = arith.mulf %96, %100 : vector<256x64xf32>
    %c1_33 = arith.constant 1 : index
    %c0_34 = arith.constant 0 : index
    %102 = vector.load %arg5[%c1_33, %c0_34] : memref<4x64xf32, #tpu.memory_space<vmem>>, vector<1x64xf32>
    %103 = vector.broadcast %102 : vector<1x64xf32> to vector<256x64xf32>
    %104 = arith.mulf %101, %103 : vector<256x64xf32>
    %c2_35 = arith.constant 2 : index
    %c0_36 = arith.constant 0 : index
    %105 = vector.load %arg5[%c2_35, %c0_36] : memref<4x64xf32, #tpu.memory_space<vmem>>, vector<1x64xf32>
    %106 = vector.broadcast %105 : vector<1x64xf32> to vector<256x64xf32>
    %107 = arith.addf %104, %106 : vector<256x64xf32>
    %c0_37 = arith.constant 0 : index
    %c0_38 = arith.constant 0 : index
    %c0_39 = arith.constant 0 : index
    %108 = vector.load %arg2[%c0_37, %c0_38, %c0_39] : memref<1x1x64xf32, #tpu.memory_space<vmem>>, vector<1x1x64xf32>
    %109 = vector.shape_cast %108 : vector<1x1x64xf32> to vector<1x64xf32>
    %110 = vector.broadcast %109 : vector<1x64xf32> to vector<256x64xf32>
    %111 = arith.mulf %110, %107 : vector<256x64xf32>
    %c0_40 = arith.constant 0 : index
    %c0_41 = arith.constant 0 : index
    %c0_42 = arith.constant 0 : index
    %112 = vector.load %arg3[%c0_40, %c0_41, %c0_42] : memref<1x1x64xf32, #tpu.memory_space<vmem>>, vector<1x1x64xf32>
    %113 = vector.shape_cast %112 : vector<1x1x64xf32> to vector<1x64xf32>
    %114 = vector.broadcast %113 : vector<1x64xf32> to vector<256x64xf32>
    %115 = arith.addf %111, %114 : vector<256x64xf32>
    %116 = arith.negf %115 : vector<256x64xf32>
    %117 = math.exp %116 : vector<256x64xf32>
    %cst_43 = arith.constant 1.000000e+00 : f32
    %118 = vector.broadcast %cst_43 : f32 to vector<256x64xf32>
    %119 = arith.addf %118, %117 : vector<256x64xf32>
    %120 = arith.divf %118, %119 : vector<256x64xf32>
    %121 = arith.mulf %115, %120 : vector<256x64xf32>
    %c3_44 = arith.constant 3 : index
    %c0_45 = arith.constant 0 : index
    %122 = vector.load %arg5[%c3_44, %c0_45] : memref<4x64xf32, #tpu.memory_space<vmem>>, vector<1x64xf32>
    %123 = arith.truncf %1 : vector<256x32xf32> to vector<256x32xbf16>
    %c17_i32_46 = arith.constant 17 : i32
    %124 = tpu.dynamic_rotate %121 by %c17_i32_46 dim 0 : vector<256x64xf32>, i32 -> vector<256x64xf32>
    %c0_47 = arith.constant 0 : index
    %c0_48 = arith.constant 0 : index
    %125 = vector.load %arg7[%c0_47, %c0_48] : memref<256x9xf32, #tpu.memory_space<vmem>>, vector<256x1xf32>
    %126 = vector.broadcast %125 : vector<256x1xf32> to vector<256x64xf32>
    %127 = arith.mulf %124, %126 : vector<256x64xf32>
    %128 = arith.truncf %127 : vector<256x64xf32> to vector<256x64xbf16>
    %c16_i32_49 = arith.constant 16 : i32
    %129 = tpu.dynamic_rotate %121 by %c16_i32_49 dim 0 : vector<256x64xf32>, i32 -> vector<256x64xf32>
    %c0_50 = arith.constant 0 : index
    %c1_51 = arith.constant 1 : index
    %130 = vector.load %arg7[%c0_50, %c1_51] : memref<256x9xf32, #tpu.memory_space<vmem>>, vector<256x1xf32>
    %131 = vector.broadcast %130 : vector<256x1xf32> to vector<256x64xf32>
    %132 = arith.mulf %129, %131 : vector<256x64xf32>
    %133 = arith.truncf %132 : vector<256x64xf32> to vector<256x64xbf16>
    %c15_i32_52 = arith.constant 15 : i32
    %134 = tpu.dynamic_rotate %121 by %c15_i32_52 dim 0 : vector<256x64xf32>, i32 -> vector<256x64xf32>
    %c0_53 = arith.constant 0 : index
    %c2_54 = arith.constant 2 : index
    %135 = vector.load %arg7[%c0_53, %c2_54] : memref<256x9xf32, #tpu.memory_space<vmem>>, vector<256x1xf32>
    %136 = vector.broadcast %135 : vector<256x1xf32> to vector<256x64xf32>
    %137 = arith.mulf %134, %136 : vector<256x64xf32>
    %138 = arith.truncf %137 : vector<256x64xf32> to vector<256x64xbf16>
    %c1_i32_55 = arith.constant 1 : i32
    %139 = tpu.dynamic_rotate %121 by %c1_i32_55 dim 0 : vector<256x64xf32>, i32 -> vector<256x64xf32>
    %c0_56 = arith.constant 0 : index
    %c3_57 = arith.constant 3 : index
    %140 = vector.load %arg7[%c0_56, %c3_57] : memref<256x9xf32, #tpu.memory_space<vmem>>, vector<256x1xf32>
    %141 = vector.broadcast %140 : vector<256x1xf32> to vector<256x64xf32>
    %142 = arith.mulf %139, %141 : vector<256x64xf32>
    %143 = arith.truncf %142 : vector<256x64xf32> to vector<256x64xbf16>
    %144 = arith.truncf %121 : vector<256x64xf32> to vector<256x64xbf16>
    %c255_i32_58 = arith.constant 255 : i32
    %145 = tpu.dynamic_rotate %121 by %c255_i32_58 dim 0 : vector<256x64xf32>, i32 -> vector<256x64xf32>
    %c0_59 = arith.constant 0 : index
    %c5_60 = arith.constant 5 : index
    %146 = vector.load %arg7[%c0_59, %c5_60] : memref<256x9xf32, #tpu.memory_space<vmem>>, vector<256x1xf32>
    %147 = vector.broadcast %146 : vector<256x1xf32> to vector<256x64xf32>
    %148 = arith.mulf %145, %147 : vector<256x64xf32>
    %149 = arith.truncf %148 : vector<256x64xf32> to vector<256x64xbf16>
    %c241_i32_61 = arith.constant 241 : i32
    %150 = tpu.dynamic_rotate %121 by %c241_i32_61 dim 0 : vector<256x64xf32>, i32 -> vector<256x64xf32>
    %c0_62 = arith.constant 0 : index
    %c6_63 = arith.constant 6 : index
    %151 = vector.load %arg7[%c0_62, %c6_63] : memref<256x9xf32, #tpu.memory_space<vmem>>, vector<256x1xf32>
    %152 = vector.broadcast %151 : vector<256x1xf32> to vector<256x64xf32>
    %153 = arith.mulf %150, %152 : vector<256x64xf32>
    %154 = arith.truncf %153 : vector<256x64xf32> to vector<256x64xbf16>
    %c240_i32_64 = arith.constant 240 : i32
    %155 = tpu.dynamic_rotate %121 by %c240_i32_64 dim 0 : vector<256x64xf32>, i32 -> vector<256x64xf32>
    %c0_65 = arith.constant 0 : index
    %c7_66 = arith.constant 7 : index
    %156 = vector.load %arg7[%c0_65, %c7_66] : memref<256x9xf32, #tpu.memory_space<vmem>>, vector<256x1xf32>
    %157 = vector.broadcast %156 : vector<256x1xf32> to vector<256x64xf32>
    %158 = arith.mulf %155, %157 : vector<256x64xf32>
    %159 = arith.truncf %158 : vector<256x64xf32> to vector<256x64xbf16>
    %c239_i32_67 = arith.constant 239 : i32
    %160 = tpu.dynamic_rotate %121 by %c239_i32_67 dim 0 : vector<256x64xf32>, i32 -> vector<256x64xf32>
    %c0_68 = arith.constant 0 : index
    %c8_69 = arith.constant 8 : index
    %161 = vector.load %arg7[%c0_68, %c8_69] : memref<256x9xf32, #tpu.memory_space<vmem>>, vector<256x1xf32>
    %162 = vector.broadcast %161 : vector<256x1xf32> to vector<256x64xf32>
    %163 = arith.mulf %160, %162 : vector<256x64xf32>
    %164 = arith.truncf %163 : vector<256x64xf32> to vector<256x64xbf16>
    %165 = tpu.concatenate %128, %133, %138, %143, %144, %149, %154, %159, %164, %123 in 1 : vector<256x64xbf16>, vector<256x64xbf16>, vector<256x64xbf16>, vector<256x64xbf16>, vector<256x64xbf16>, vector<256x64xbf16>, vector<256x64xbf16>, vector<256x64xbf16>, vector<256x64xbf16>, vector<256x32xbf16> -> vector<256x608xbf16>
    %c0_70 = arith.constant 0 : index
    %c0_71 = arith.constant 0 : index
    %166 = vector.load %arg9[%c0_70, %c0_71] : memref<608x64xbf16, #tpu.memory_space<vmem>>, vector<608x64xbf16>
    %cst_72 = arith.constant dense<0.000000e+00> : vector<256x64xf32>
    %167 = tpu.matmul %165, %166, %cst_72 {dimension_numbers = #tpu.dot_dimension_numbers<[1], [0], [0], [1], [0, 0, 1, 1], [], []>} : vector<256x608xbf16>, vector<608x64xbf16>, vector<256x64xf32> -> vector<256x64xf32>
    %168 = vector.broadcast %122 : vector<1x64xf32> to vector<256x64xf32>
    %169 = arith.addf %167, %168 : vector<256x64xf32>
    %c0_73 = arith.constant 0 : index
    %c0_74 = arith.constant 0 : index
    %c0_75 = arith.constant 0 : index
    %170 = vector.load %arg10[%c0_73, %c0_74, %c0_75] : memref<1x256x64xf32, #tpu.memory_space<vmem>>, vector<1x256x64xf32>
    %171 = vector.shape_cast %170 : vector<1x256x64xf32> to vector<256x64xf32>
    %172 = vector.shape_cast %169 : vector<256x64xf32> to vector<1x256x64xf32>
    tpu.vector_store %arg10[%c0_73, %c0_74, %c0_75], %172 {strides = array<i32>} : memref<1x256x64xf32, #tpu.memory_space<vmem>>, vector<1x256x64xf32>,
    return
  }
  func.func @transform_0(%arg0: i32) -> (i32, i32, i32) {
    %c0_i32 = arith.constant 0 : i32
    %c0_i32_0 = arith.constant 0 : i32
    %c0_i32_1 = arith.constant 0 : i32
    return %arg0, %c0_i32, %c0_i32_0 : i32, i32, i32
  }
  func.func @transform_1(%arg0: i32) -> (i32, i32, i32) {
    %c0_i32 = arith.constant 0 : i32
    %c0_i32_0 = arith.constant 0 : i32
    %c0_i32_1 = arith.constant 0 : i32
    return %arg0, %c0_i32, %c0_i32_0 : i32, i32, i32
  }
  func.func @transform_2(%arg0: i32) -> (i32, i32, i32) {
    %c0_i32 = arith.constant 0 : i32
    %c0_i32_0 = arith.constant 0 : i32
    %c0_i32_1 = arith.constant 0 : i32
    return %arg0, %c0_i32, %c0_i32_0 : i32, i32, i32
  }
  func.func @transform_3(%arg0: i32) -> (i32, i32) {
    %c0_i32 = arith.constant 0 : i32
    %c0_i32_0 = arith.constant 0 : i32
    %c0_i32_1 = arith.constant 0 : i32
    return %c0_i32, %c0_i32_0 : i32, i32
  }
  func.func @transform_4(%arg0: i32) -> (i32, i32) {
    %c0_i32 = arith.constant 0 : i32
    %c0_i32_0 = arith.constant 0 : i32
    %c0_i32_1 = arith.constant 0 : i32
    return %c0_i32, %c0_i32_0 : i32, i32
  }
  func.func @transform_5(%arg0: i32) -> (i32, i32) {
    %c0_i32 = arith.constant 0 : i32
    %c0_i32_0 = arith.constant 0 : i32
    %c0_i32_1 = arith.constant 0 : i32
    return %c0_i32, %c0_i32_0 : i32, i32
  }
  func.func @transform_6(%arg0: i32) -> (i32, i32) {
    %c0_i32 = arith.constant 0 : i32
    %c0_i32_0 = arith.constant 0 : i32
    %c0_i32_1 = arith.constant 0 : i32
    return %c0_i32, %c0_i32_0 : i32, i32
  }
  func.func @transform_7(%arg0: i32) -> (i32, i32) {
    %c0_i32 = arith.constant 0 : i32
    %c0_i32_0 = arith.constant 0 : i32
    %c0_i32_1 = arith.constant 0 : i32
    return %c0_i32, %c0_i32_0 : i32, i32
  }
  func.func @transform_8(%arg0: i32) -> (i32, i32) {
    %c0_i32 = arith.constant 0 : i32
    %c0_i32_0 = arith.constant 0 : i32
    %c0_i32_1 = arith.constant 0 : i32
    return %c0_i32, %c0_i32_0 : i32, i32
  }
  func.func @transform_9(%arg0: i32) -> (i32, i32, i32) {
    %c0_i32 = arith.constant 0 : i32
    %c0_i32_0 = arith.constant 0 : i32
    %c0_i32_1 = arith.constant 0 : i32
    return %arg0, %c0_i32, %c0_i32_0 : i32, i32, i32
  }
}

</mosaic_0001>

<llo_original>
// kernel: res_att_block.1
$region0: #{res_att_block.1}
  #allocation0 [shape = 'u32[]', space=smem, size = 0x4, offset = 0x4, fixed_abs, tag = 'smem constant byte address 0x4 - core index']
  #allocation1 [shape = 'u32[144,128]{1,0:T(1,128)}', space=vmem, size = 0x12000, scoped, tag = 'internal scratch']
  %s0 = inlined_call_operand.vmem [shape: f32[2,256,32], index: 0, kind: input, shape index: {}]
  %s1 = inlined_call_operand.vmem [shape: f32[2,1,64], index: 1, kind: input, shape index: {}]
  %s2 = inlined_call_operand.vmem [shape: f32[2,1,64], index: 2, kind: input, shape index: {}]
  %s3 = inlined_call_operand.vmem [shape: f32[2,32], index: 3, kind: input, shape index: {}]
  %s4 = inlined_call_operand.vmem [shape: f32[4,64], index: 4, kind: input, shape index: {}]
  %s5 = inlined_call_operand.vmem [shape: f32[64,64], index: 5, kind: input, shape index: {}]
  %s6 = inlined_call_operand.vmem [shape: f32[256,9], index: 6, kind: input, shape index: {}]
  %s7 = inlined_call_operand.vmem [shape: bf16[288,64], index: 7, kind: input, shape index: {}]
  %s8 = inlined_call_operand.vmem [shape: bf16[608,64], index: 8, kind: input, shape index: {}]
  %s9 = inlined_call_operand.hbm [shape: f32[2,256,64], index: 9, kind: output, shape index: {}]
  %s10 = sld [smem:[#allocation0]]
  $region69: #{res_att_block.1} parent=0
    _
  %s12 = ssub.s32 1, %s10
  %s13 = scalar_select 0, %s12, %s10
  $region1: #{res_att_block.1} parent=0
    #allocation2 [shape = 'u8[262144]{0}', space=vmem, size = 0x40000, scoped, tag = 'output window, operand 0']
    #allocation3 [shape = 's32[2]{0}', space=sflag, size = 0x8, scoped, tag = 'scoped memory for res_att_block.1']
    %14 = vsyncpa [#allocation3], 0
    %s15 = scalar_lea.sflag [#allocation3], 1
    %16 = vsyncpa %s15, 0
    loop: start=0, step=1, limit=4
    $region2: #{res_att_block.1} parent=1 // loop_pre_header
      _
    $region3: #{res_att_block.1} parent=1 // loop_header
      %s18 = sphi 0, %s22
      %p19 = scmp.ge.s32.totalorder %s18, 4
      %s28 = sphi 0, %s30
      %s31 = sphi 0, %s28
      %s32 = sphi 0, %s31
      %s48 = sphi 0, %s32
      %s54 = sphi 0, %s56
      %s57 = sphi 0, %s54
      %s58 = sphi 0, %s57
      %s74 = sphi 0, %s58
      %s80 = sphi 0, %s82
      %s83 = sphi 0, %s80
      %s84 = sphi 0, %s83
      %s100 = sphi 0, %s84
      %s104 = sphi 0, %s104
      %s106 = sphi 0, %s104
      %s107 = sphi 0, %s106
      %s121 = sphi 0, %s107
      %s125 = sphi 0, %s125
      %s127 = sphi 0, %s125
      %s128 = sphi 0, %s127
      %s142 = sphi 0, %s128
      %s146 = sphi 0, %s146
      %s148 = sphi 0, %s146
      %s149 = sphi 0, %s148
      %s163 = sphi 0, %s149
      %s167 = sphi 0, %s167
      %s169 = sphi 0, %s167
      %s170 = sphi 0, %s169
      %s184 = sphi 0, %s170
      %s188 = sphi 0, %s188
      %s190 = sphi 0, %s188
      %s191 = sphi 0, %s190
      %s205 = sphi 0, %s191
      %s209 = sphi 0, %s209
      %s211 = sphi 0, %s209
      %s212 = sphi 0, %s211
      %s226 = sphi 0, %s212
      %s232 = sphi 0, %s234
      %s235 = sphi 0, %s232
      %s236 = sphi 0, %s235
      %s252 = sphi 0, %s236
    $region4: #{res_att_block.1} parent=1 // loop_header_branch
      %21 = sbr.rel (%p19) target = $region8
    $region5: #{res_att_block.1} parent=1 // loop_body
      %s23 = ssub.s32 %s18, 1
      %s24 = ssub.s32 %s18, 2
      %s25 = sadd.s32 %s18, 1
      %s26 = ssub.s32 %s18, %s25
      %p27 = scmp.eq.s32.totalorder %s26, 0
      %s29 = sadd.s32 %s28, 1
      %s30 = scalar_select %p27, %s28, %s29
      %p33 = pneg %p27
      %p34 = scmp.eq.s32.totalorder %s18, 1
      %p35 = por %p33, %p34
      %p36 = scmp.ne.s32.totalorder %s28, %s31
      %p37 = scmp.eq.s32.totalorder %s18, 0
      %p38 = por %p36, %p37
      %p39 = scmp.ne.s32.totalorder %s28, %s31
      %p40 = scmp.eq.s32.totalorder %s23, 1
      %p41 = por %p39, %p40
      %p42 = scmp.ne.s32.totalorder %s31, %s32
      %p43 = scmp.eq.s32.totalorder %s23, 0
      %p44 = por %p42, %p43
      %p45 = scmp.ne.s32.totalorder %s31, %s32
      %p46 = scmp.eq.s32.totalorder %s24, 1
      %p47 = por %p45, %p46
      %p49 = scmp.ne.s32.totalorder %s32, %s48
      %p50 = scmp.eq.s32.totalorder %s24, 0
      %p51 = por %p49, %p50
      %s52 = ssub.s32 %s18, %s25
      %p53 = scmp.eq.s32.totalorder %s52, 0
      %s55 = sadd.s32 %s54, 1
      %s56 = scalar_select %p53, %s54, %s55
      %p59 = pneg %p53
      %p60 = scmp.eq.s32.totalorder %s18, 1
      %p61 = por %p59, %p60
      %p62 = scmp.ne.s32.totalorder %s54, %s57
      %p63 = scmp.eq.s32.totalorder %s18, 0
      %p64 = por %p62, %p63
      %p65 = scmp.ne.s32.totalorder %s54, %s57
      %p66 = scmp.eq.s32.totalorder %s23, 1
      %p67 = por %p65, %p66
      %p68 = scmp.ne.s32.totalorder %s57, %s58
      %p69 = scmp.eq.s32.totalorder %s23, 0
      %p70 = por %p68, %p69
      %p71 = scmp.ne.s32.totalorder %s57, %s58
      %p72 = scmp.eq.s32.totalorder %s24, 1
      %p73 = por %p71, %p72
      %p75 = scmp.ne.s32.totalorder %s58, %s74
      %p76 = scmp.eq.s32.totalorder %s24, 0
      %p77 = por %p75, %p76
      %s78 = ssub.s32 %s18, %s25
      %p79 = scmp.eq.s32.totalorder %s78, 0
      %s81 = sadd.s32 %s80, 1
      %s82 = scalar_select %p79, %s80, %s81
      %p85 = pneg %p79
      %p86 = scmp.eq.s32.totalorder %s18, 1
      %p87 = por %p85, %p86
      %p88 = scmp.ne.s32.totalorder %s80, %s83
      %p89 = scmp.eq.s32.totalorder %s18, 0
      %p90 = por %p88, %p89
      %p91 = scmp.ne.s32.totalorder %s80, %s83
      %p92 = scmp.eq.s32.totalorder %s23, 1
      %p93 = por %p91, %p92
      %p94 = scmp.ne.s32.totalorder %s83, %s84
      %p95 = scmp.eq.s32.totalorder %s23, 0
      %p96 = por %p94, %p95
      %p97 = scmp.ne.s32.totalorder %s83, %s84
      %p98 = scmp.eq.s32.totalorder %s24, 1
      %p99 = por %p97, %p98
      %p101 = scmp.ne.s32.totalorder %s84, %s100
      %p102 = scmp.eq.s32.totalorder %s24, 0
      %p103 = por %p101, %p102
      %s105 = sadd.s32 %s104, 1
      %p108 = scmp.eq.s32.totalorder %s18, 1
      %p109 = scmp.ne.s32.totalorder %s104, %s106
      %p110 = scmp.eq.s32.totalorder %s18, 0
      %p111 = por %p109, %p110
      %p112 = scmp.ne.s32.totalorder %s104, %s106
      %p113 = scmp.eq.s32.totalorder %s23, 1
      %p114 = por %p112, %p113
      %p115 = scmp.ne.s32.totalorder %s106, %s107
      %p116 = scmp.eq.s32.totalorder %s23, 0
      %p117 = por %p115, %p116
      %p118 = scmp.ne.s32.totalorder %s106, %s107
      %p119 = scmp.eq.s32.totalorder %s24, 1
      %p120 = por %p118, %p119
      %p122 = scmp.ne.s32.totalorder %s107, %s121
      %p123 = scmp.eq.s32.totalorder %s24, 0
      %p124 = por %p122, %p123
      %s126 = sadd.s32 %s125, 1
      %p129 = scmp.eq.s32.totalorder %s18, 1
      %p130 = scmp.ne.s32.totalorder %s125, %s127
      %p131 = scmp.eq.s32.totalorder %s18, 0
      %p132 = por %p130, %p131
      %p133 = scmp.ne.s32.totalorder %s125, %s127
      %p134 = scmp.eq.s32.totalorder %s23, 1
      %p135 = por %p133, %p134
      %p136 = scmp.ne.s32.totalorder %s127, %s128
      %p137 = scmp.eq.s32.totalorder %s23, 0
      %p138 = por %p136, %p137
      %p139 = scmp.ne.s32.totalorder %s127, %s128
      %p140 = scmp.eq.s32.totalorder %s24, 1
      %p141 = por %p139, %p140
      %p143 = scmp.ne.s32.totalorder %s128, %s142
      %p144 = scmp.eq.s32.totalorder %s24, 0
      %p145 = por %p143, %p144
      %s147 = sadd.s32 %s146, 1
      %p150 = scmp.eq.s32.totalorder %s18, 1
      %p151 = scmp.ne.s32.totalorder %s146, %s148
      %p152 = scmp.eq.s32.totalorder %s18, 0
      %p153 = por %p151, %p152
      %p154 = scmp.ne.s32.totalorder %s146, %s148
      %p155 = scmp.eq.s32.totalorder %s23, 1
      %p156 = por %p154, %p155
      %p157 = scmp.ne.s32.totalorder %s148, %s149
      %p158 = scmp.eq.s32.totalorder %s23, 0
      %p159 = por %p157, %p158
      %p160 = scmp.ne.s32.totalorder %s148, %s149
      %p161 = scmp.eq.s32.totalorder %s24, 1
      %p162 = por %p160, %p161
      %p164 = scmp.ne.s32.totalorder %s149, %s163
      %p165 = scmp.eq.s32.totalorder %s24, 0
      %p166 = por %p164, %p165
      %s168 = sadd.s32 %s167, 1
      %p171 = scmp.eq.s32.totalorder %s18, 1
      %p172 = scmp.ne.s32.totalorder %s167, %s169
      %p173 = scmp.eq.s32.totalorder %s18, 0
      %p174 = por %p172, %p173
      %p175 = scmp.ne.s32.totalorder %s167, %s169
      %p176 = scmp.eq.s32.totalorder %s23, 1
      %p177 = por %p175, %p176
      %p178 = scmp.ne.s32.totalorder %s169, %s170
      %p179 = scmp.eq.s32.totalorder %s23, 0
      %p180 = por %p178, %p179
      %p181 = scmp.ne.s32.totalorder %s169, %s170
      %p182 = scmp.eq.s32.totalorder %s24, 1
      %p183 = por %p181, %p182
      %p185 = scmp.ne.s32.totalorder %s170, %s184
      %p186 = scmp.eq.s32.totalorder %s24, 0
      %p187 = por %p185, %p186
      %s189 = sadd.s32 %s188, 1
      %p192 = scmp.eq.s32.totalorder %s18, 1
      %p193 = scmp.ne.s32.totalorder %s188, %s190
      %p194 = scmp.eq.s32.totalorder %s18, 0
      %p195 = por %p193, %p194
      %p196 = scmp.ne.s32.totalorder %s188, %s190
      %p197 = scmp.eq.s32.totalorder %s23, 1
      %p198 = por %p196, %p197
      %p199 = scmp.ne.s32.totalorder %s190, %s191
      %p200 = scmp.eq.s32.totalorder %s23, 0
      %p201 = por %p199, %p200
      %p202 = scmp.ne.s32.totalorder %s190, %s191
      %p203 = scmp.eq.s32.totalorder %s24, 1
      %p204 = por %p202, %p203
      %p206 = scmp.ne.s32.totalorder %s191, %s205
      %p207 = scmp.eq.s32.totalorder %s24, 0
      %p208 = por %p206, %p207
      %s210 = sadd.s32 %s209, 1
      %p213 = scmp.eq.s32.totalorder %s18, 1
      %p214 = scmp.ne.s32.totalorder %s209, %s211
      %p215 = scmp.eq.s32.totalorder %s18, 0
      %p216 = por %p214, %p215
      %p217 = scmp.ne.s32.totalorder %s209, %s211
      %p218 = scmp.eq.s32.totalorder %s23, 1
      %p219 = por %p217, %p218
      %p220 = scmp.ne.s32.totalorder %s211, %s212
      %p221 = scmp.eq.s32.totalorder %s23, 0
      %p222 = por %p220, %p221
      %p223 = scmp.ne.s32.totalorder %s211, %s212
      %p224 = scmp.eq.s32.totalorder %s24, 1
      %p225 = por %p223, %p224
      %p227 = scmp.ne.s32.totalorder %s212, %s226
      %p228 = scmp.eq.s32.totalorder %s24, 0
      %p229 = por %p227, %p228
      %s230 = ssub.s32 %s18, %s25
      %p231 = scmp.eq.s32.totalorder %s230, 0
      %s233 = sadd.s32 %s232, 1
      %s234 = scalar_select %p231, %s232, %s233
      %p237 = pneg %p231
      %p238 = scmp.eq.s32.totalorder %s18, 1
      %p239 = por %p237, %p238
      %p240 = scmp.ne.s32.totalorder %s232, %s235
      %p241 = scmp.eq.s32.totalorder %s18, 0
      %p242 = por %p240, %p241
      %p243 = scmp.ne.s32.totalorder %s232, %s235
      %p244 = scmp.eq.s32.totalorder %s23, 1
      %p245 = por %p243, %p244
      %p246 = scmp.ne.s32.totalorder %s235, %s236
      %p247 = scmp.eq.s32.totalorder %s23, 0
      %p248 = por %p246, %p247
      %p249 = scmp.ne.s32.totalorder %s235, %s236
      %p250 = scmp.eq.s32.totalorder %s24, 1
      %p251 = por %p249, %p250
      %p253 = scmp.ne.s32.totalorder %s236, %s252
      %p254 = scmp.eq.s32.totalorder %s24, 0
      %p255 = por %p253, %p254
      %p256 = scmp.le.s32.totalorder 1, %s18
      %p257 = scmp.lt.s32.totalorder %s18, 3
      %p258 = pnand %p256, %p257
      %p259 = pneg %p258
      // Predicated region
      $region9: #{res_att_block.1} parent=5 // pred_check
        _
      $region10: #{res_att_block.1} parent=5 // pred_check_branch
        %261 = sbr.rel (%p258) target = $region12
      $region11: #{res_att_block.1} parent=5 // pred_region
        %s262 = ssub.s32 %s18, 1
        // Predicated region
        $region13: #{res_att_block.1} parent=11 // pred_check
          %p263 = pneg %p117
        $region14: #{res_att_block.1} parent=11 // pred_check_branch
          %265 = sbr.rel (%p263) target = $region16
        $region15: #{res_att_block.1} parent=11 // pred_region
          _
        $region16: #{res_att_block.1} parent=11 // pred_fallthru
          _
        // Predicated region
        $region17: #{res_att_block.1} parent=11 // pred_check
          %p266 = pneg %p138
        $region18: #{res_att_block.1} parent=11 // pred_check_branch
          %268 = sbr.rel (%p266) target = $region20
        $region19: #{res_att_block.1} parent=11 // pred_region
          _
        $region20: #{res_att_block.1} parent=11 // pred_fallthru
          _
        // Predicated region
        $region21: #{res_att_block.1} parent=11 // pred_check
          %p269 = pneg %p159
        $region22: #{res_att_block.1} parent=11 // pred_check_branch
          %271 = sbr.rel (%p269) target = $region24
        $region23: #{res_att_block.1} parent=11 // pred_region
          _
        $region24: #{res_att_block.1} parent=11 // pred_fallthru
          _
        // Predicated region
        $region25: #{res_att_block.1} parent=11 // pred_check
          %p272 = pneg %p180
        $region26: #{res_att_block.1} parent=11 // pred_check_branch
          %274 = sbr.rel (%p272) target = $region28
        $region27: #{res_att_block.1} parent=11 // pred_region
          _
        $region28: #{res_att_block.1} parent=11 // pred_fallthru
          _
        // Predicated region
        $region29: #{res_att_block.1} parent=11 // pred_check
          %p275 = pneg %p201
        $region30: #{res_att_block.1} parent=11 // pred_check_branch
          %277 = sbr.rel (%p275) target = $region32
        $region31: #{res_att_block.1} parent=11 // pred_region
          _
        $region32: #{res_att_block.1} parent=11 // pred_fallthru
          _
        // Predicated region
        $region33: #{res_att_block.1} parent=11 // pred_check
          %p278 = pneg %p222
        $region34: #{res_att_block.1} parent=11 // pred_check_branch
          %280 = sbr.rel (%p278) target = $region36
        $region35: #{res_att_block.1} parent=11 // pred_region
          _
        $region36: #{res_att_block.1} parent=11 // pred_fallthru
          _
      $region12: #{res_att_block.1} parent=5 // pred_fallthru
        _
      %p281 = scmp.lt.s32.totalorder %s18, 2
      // Predicated region
      $region37: #{res_att_block.1} parent=5 // pred_check
        %p282 = pneg %p281
      $region38: #{res_att_block.1} parent=5 // pred_check_branch
        %284 = sbr.rel (%p282) target = $region40
      $region39: #{res_att_block.1} parent=5 // pred_region
        // Predicated region
        $region41: #{res_att_block.1} parent=39 // pred_check
          %p285 = pneg %p38
        $region42: #{res_att_block.1} parent=39 // pred_check_branch
          %287 = sbr.rel (%p285) target = $region44
        $region43: #{res_att_block.1} parent=39 // pred_region
          %p288 = scmp.lt.s32.totalorder %s18, 1
          %s289 = scalar_select %p288, %s18, 1
          %s290 = smul.addr %s289, 32
          %s291 = smul.addr %s290, 8
          %s292 = scalar_lea.vmem %s0, %s291
        $region44: #{res_att_block.1} parent=39 // pred_fallthru
          _
        // Predicated region
        $region45: #{res_att_block.1} parent=39 // pred_check
          %p293 = pneg %p64
        $region46: #{res_att_block.1} parent=39 // pred_check_branch
          %295 = sbr.rel (%p293) target = $region48
        $region47: #{res_att_block.1} parent=39 // pred_region
          %p296 = scmp.lt.s32.totalorder %s18, 1
          %s297 = scalar_select %p296, %s18, 1
          %s298 = scalar_lea.vmem %s1, %s297
        $region48: #{res_att_block.1} parent=39 // pred_fallthru
          _
        // Predicated region
        $region49: #{res_att_block.1} parent=39 // pred_check
          %p299 = pneg %p90
        $region50: #{res_att_block.1} parent=39 // pred_check_branch
          %301 = sbr.rel (%p299) target = $region52
        $region51: #{res_att_block.1} parent=39 // pred_region
          %p302 = scmp.lt.s32.totalorder %s18, 1
          %s303 = scalar_select %p302, %s18, 1
          %s304 = scalar_lea.vmem %s2, %s303
        $region52: #{res_att_block.1} parent=39 // pred_fallthru
          _
      $region40: #{res_att_block.1} parent=5 // pred_fallthru
        _
      %p305 = scmp.le.s32.totalorder 1, %s18
      %p306 = scmp.lt.s32.totalorder %s18, 3
      %p307 = pnand %p305, %p306
      %p308 = pneg %p307
      // Predicated region
      $region53: #{res_att_block.1} parent=5 // pred_check
        _
      $region54: #{res_att_block.1} parent=5 // pred_check_branch
        %310 = sbr.rel (%p307) target = $region56
      $region55: #{res_att_block.1} parent=5 // pred_region
        %s311 = ssub.s32 %s18, 1
        %p312 = scmp.lt.s32.totalorder %s23, 1
        %s313 = scalar_select %p312, %s23, 1
        %s314 = smul.addr %s313, 32
        %s315 = smul.addr %s314, 8
        %s316 = scalar_lea.vmem %s0, %s315
        %p317 = pneg %p44
        %p318 = pneg %p41
        %p319 = scmp.lt.s32.totalorder %s23, 1
        %s320 = scalar_select %p319, %s23, 1
        %s321 = scalar_lea.vmem %s1, %s320
        %p322 = pneg %p70
        %p323 = pneg %p67
        %p324 = scmp.lt.s32.totalorder %s23, 1
        %s325 = scalar_select %p324, %s23, 1
        %s326 = scalar_lea.vmem %s2, %s325
        %p327 = pneg %p96
        %p328 = pneg %p93
        %p329 = pneg %p117
        %p330 = pneg %p114
        %p331 = pneg %p138
        %p332 = pneg %p135
        %p333 = pneg %p159
        %p334 = pneg %p156
        %p335 = pneg %p180
        %p336 = pneg %p177
        %p337 = pneg %p201
        %p338 = pneg %p198
        %p339 = pneg %p222
        %p340 = pneg %p219
        %p341 = pneg %p248
        %p342 = pneg %p245
        %s343 = sand.u32 %s235, 1
        %s344 = scalar_lea.sflag [#allocation3], %s343
        %s345 = sand.u32 %s235, 1
        %s346 = smul.addr %s345, 256
        %s347 = scalar_lea.vmem [#allocation2], %s346
        %p348 = scmp.lt.s32.totalorder %s23, 1
        %s349 = scalar_select %p348, %s23, 1
        %s350 = smul.addr %s349, 32
        %s351 = smul.addr %s350, 8
        %s352 = scalar_lea.vmem %s0, %s351
        %p353 = scmp.lt.s32.totalorder %s23, 1
        %s354 = scalar_select %p353, %s23, 1
        %s355 = scalar_lea.vmem %s1, %s354
        %p356 = scmp.lt.s32.totalorder %s23, 1
        %s357 = scalar_select %p356, %s23, 1
        %s358 = scalar_lea.vmem %s2, %s357
        %v360 = vld [vmem:[%s352] sm:$0xff]
        %v361 = vld [vmem:[%s352 + $0x8] sm:$0xff]
        %v362 = vld [vmem:[%s352 + $0x10] sm:$0xff]
        %v363 = vld [vmem:[%s352 + $0x18] sm:$0xff]
        %v364 = vld [vmem:[%s352 + $0x20] sm:$0xff]
        %v365 = vld [vmem:[%s352 + $0x28] sm:$0xff]
        %v366 = vld [vmem:[%s352 + $0x30] sm:$0xff]
        %v367 = vld [vmem:[%s352 + $0x38] sm:$0xff]
        %v368 = vld [vmem:[%s352 + $0x40] sm:$0xff]
        %v369 = vld [vmem:[%s352 + $0x48] sm:$0xff]
        %v370 = vld [vmem:[%s352 + $0x50] sm:$0xff]
        %v371 = vld [vmem:[%s352 + $0x58] sm:$0xff]
        %v372 = vld [vmem:[%s352 + $0x60] sm:$0xff]
        %v373 = vld [vmem:[%s352 + $0x68] sm:$0xff]
        %v374 = vld [vmem:[%s352 + $0x70] sm:$0xff]
        %v375 = vld [vmem:[%s352 + $0x78] sm:$0xff]
        %v376 = vld [vmem:[%s352 + $0x80] sm:$0xff]
        %v377 = vld [vmem:[%s352 + $0x88] sm:$0xff]
        %v378 = vld [vmem:[%s352 + $0x90] sm:$0xff]
        %v379 = vld [vmem:[%s352 + $0x98] sm:$0xff]
        %v380 = vld [vmem:[%s352 + $0xa0] sm:$0xff]
        %v381 = vld [vmem:[%s352 + $0xa8] sm:$0xff]
        %v382 = vld [vmem:[%s352 + $0xb0] sm:$0xff]
        %v383 = vld [vmem:[%s352 + $0xb8] sm:$0xff]
        %v384 = vld [vmem:[%s352 + $0xc0] sm:$0xff]
        %v385 = vld [vmem:[%s352 + $0xc8] sm:$0xff]
        %v386 = vld [vmem:[%s352 + $0xd0] sm:$0xff]
        %v387 = vld [vmem:[%s352 + $0xd8] sm:$0xff]
        %v388 = vld [vmem:[%s352 + $0xe0] sm:$0xff]
        %v389 = vld [vmem:[%s352 + $0xe8] sm:$0xff]
        %v390 = vld [vmem:[%s352 + $0xf0] sm:$0xff]
        %v391 = vld [vmem:[%s352 + $0xf8] sm:$0xff]
        %v392 = vld [vmem:[%s3] sm:$0x1]
        %v393 = vld [vmem:[%s3 + $0x1] sm:$0x1]
        %vm394 = vcmask 261120
        %v395 = vsel %vm394, %v360, 0.0
        %v396 = vsel %vm394, %v361, 0.0
        %v397 = vadd.f32 %v395, %v396
        %v398 = vsel %vm394, %v362, 0.0
        %v399 = vadd.f32 %v397, %v398
        %v400 = vsel %vm394, %v363, 0.0
        %v401 = vadd.f32 %v399, %v400
        %v402 = vsel %vm394, %v364, 0.0
        %v403 = vadd.f32 %v401, %v402
        %v404 = vsel %vm394, %v365, 0.0
        %v405 = vadd.f32 %v403, %v404
        %v406 = vsel %vm394, %v366, 0.0
        %v407 = vadd.f32 %v405, %v406
        %v408 = vsel %vm394, %v367, 0.0
        %v409 = vadd.f32 %v407, %v408
        %v410 = vsel %vm394, %v368, 0.0
        %v411 = vadd.f32 %v409, %v410
        %v412 = vsel %vm394, %v369, 0.0
        %v413 = vadd.f32 %v411, %v412
        %v414 = vsel %vm394, %v370, 0.0
        %v415 = vadd.f32 %v413, %v414
        %v416 = vsel %vm394, %v371, 0.0
        %v417 = vadd.f32 %v415, %v416
        %v418 = vsel %vm394, %v372, 0.0
        %v419 = vadd.f32 %v417, %v418
        %v420 = vsel %vm394, %v373, 0.0
        %v421 = vadd.f32 %v419, %v420
        %v422 = vsel %vm394, %v374, 0.0
        %v423 = vadd.f32 %v421, %v422
        %v424 = vsel %vm394, %v375, 0.0
        %v425 = vadd.f32 %v423, %v424
        %v426 = vsel %vm394, %v376, 0.0
        %v427 = vadd.f32 %v425, %v426
        %v428 = vsel %vm394, %v377, 0.0
        %v429 = vadd.f32 %v427, %v428
        %v430 = vsel %vm394, %v378, 0.0
        %v431 = vadd.f32 %v429, %v430
        %v432 = vsel %vm394, %v379, 0.0
        %v433 = vadd.f32 %v431, %v432
        %v434 = vsel %vm394, %v380, 0.0
        %v435 = vadd.f32 %v433, %v434
        %v436 = vsel %vm394, %v381, 0.0
        %v437 = vadd.f32 %v435, %v436
        %v438 = vsel %vm394, %v382, 0.0
        %v439 = vadd.f32 %v437, %v438
        %v440 = vsel %vm394, %v383, 0.0
        %v441 = vadd.f32 %v439, %v440
        %v442 = vsel %vm394, %v384, 0.0
        %v443 = vadd.f32 %v441, %v442
        %v444 = vsel %vm394, %v385, 0.0
        %v445 = vadd.f32 %v443, %v444
        %v446 = vsel %vm394, %v386, 0.0
        %v447 = vadd.f32 %v445, %v446
        %v448 = vsel %vm394, %v387, 0.0
        %v449 = vadd.f32 %v447, %v448
        %v450 = vsel %vm394, %v388, 0.0
        %v451 = vadd.f32 %v449, %v450
        %v452 = vsel %vm394, %v389, 0.0
        %v453 = vadd.f32 %v451, %v452
        %v454 = vsel %vm394, %v390, 0.0
        %v455 = vadd.f32 %v453, %v454
        %v456 = vsel %vm394, %v391, 0.0
        %v457 = vadd.f32 %v455, %v456
        %v458 = vrot.slane %v457, 4
        %v459 = vadd.f32 %v457, %v458
        %v460 = vrot.slane %v459, 2
        %v461 = vadd.f32 %v459, %v460
        %v462 = vrot.slane %v461, 1
        %v463 = vadd.f32 %v461, %v462
        %v464 = vmul.f32 %v463, 0.00390625
        %v465 = vmul.f32 %v360, %v360
        %v466 = vmul.f32 %v361, %v361
        %v467 = vmul.f32 %v362, %v362
        %v468 = vmul.f32 %v363, %v363
        %v469 = vmul.f32 %v364, %v364
        %v470 = vmul.f32 %v365, %v365
        %v471 = vmul.f32 %v366, %v366
        %v472 = vmul.f32 %v367, %v367
        %v473 = vmul.f32 %v368, %v368
        %v474 = vmul.f32 %v369, %v369
        %v475 = vmul.f32 %v370, %v370
        %v476 = vmul.f32 %v371, %v371
        %v477 = vmul.f32 %v372, %v372
        %v478 = vmul.f32 %v373, %v373
        %v479 = vmul.f32 %v374, %v374
        %v480 = vmul.f32 %v375, %v375
        %v481 = vmul.f32 %v376, %v376
        %v482 = vmul.f32 %v377, %v377
        %v483 = vmul.f32 %v378, %v378
        %v484 = vmul.f32 %v379, %v379
        %v485 = vmul.f32 %v380, %v380
        %v486 = vmul.f32 %v381, %v381
        %v487 = vmul.f32 %v382, %v382
        %v488 = vmul.f32 %v383, %v383
        %v489 = vmul.f32 %v384, %v384
        %v490 = vmul.f32 %v385, %v385
        %v491 = vmul.f32 %v386, %v386
        %v492 = vmul.f32 %v387, %v387
        %v493 = vmul.f32 %v388, %v388
        %v494 = vmul.f32 %v389, %v389
        %v495 = vmul.f32 %v390, %v390
        %v496 = vmul.f32 %v391, %v391
        %v497 = vsel %vm394, %v465, 0.0
        %v498 = vsel %vm394, %v466, 0.0
        %v499 = vadd.f32 %v497, %v498
        %v500 = vsel %vm394, %v467, 0.0
        %v501 = vadd.f32 %v499, %v500
        %v502 = vsel %vm394, %v468, 0.0
        %v503 = vadd.f32 %v501, %v502
        %v504 = vsel %vm394, %v469, 0.0
        %v505 = vadd.f32 %v503, %v504
        %v506 = vsel %vm394, %v470, 0.0
        %v507 = vadd.f32 %v505, %v506
        %v508 = vsel %vm394, %v471, 0.0
        %v509 = vadd.f32 %v507, %v508
        %v510 = vsel %vm394, %v472, 0.0
        %v511 = vadd.f32 %v509, %v510
        %v512 = vsel %vm394, %v473, 0.0
        %v513 = vadd.f32 %v511, %v512
        %v514 = vsel %vm394, %v474, 0.0
        %v515 = vadd.f32 %v513, %v514
        %v516 = vsel %vm394, %v475, 0.0
        %v517 = vadd.f32 %v515, %v516
        %v518 = vsel %vm394, %v476, 0.0
        %v519 = vadd.f32 %v517, %v518
        %v520 = vsel %vm394, %v477, 0.0
        %v521 = vadd.f32 %v519, %v520
        %v522 = vsel %vm394, %v478, 0.0
        %v523 = vadd.f32 %v521, %v522
        %v524 = vsel %vm394, %v479, 0.0
        %v525 = vadd.f32 %v523, %v524
        %v526 = vsel %vm394, %v480, 0.0
        %v527 = vadd.f32 %v525, %v526
        %v528 = vsel %vm394, %v481, 0.0
        %v529 = vadd.f32 %v527, %v528
        %v530 = vsel %vm394, %v482, 0.0
        %v531 = vadd.f32 %v529, %v530
        %v532 = vsel %vm394, %v483, 0.0
        %v533 = vadd.f32 %v531, %v532
        %v534 = vsel %vm394, %v484, 0.0
        %v535 = vadd.f32 %v533, %v534
        %v536 = vsel %vm394, %v485, 0.0
        %v537 = vadd.f32 %v535, %v536
        %v538 = vsel %vm394, %v486, 0.0
        %v539 = vadd.f32 %v537, %v538
        %v540 = vsel %vm394, %v487, 0.0
        %v541 = vadd.f32 %v539, %v540
        %v542 = vsel %vm394, %v488, 0.0
        %v543 = vadd.f32 %v541, %v542
        %v544 = vsel %vm394, %v489, 0.0
        %v545 = vadd.f32 %v543, %v544
        %v546 = vsel %vm394, %v490, 0.0
        %v547 = vadd.f32 %v545, %v546
        %v548 = vsel %vm394, %v491, 0.0
        %v549 = vadd.f32 %v547, %v548
        %v550 = vsel %vm394, %v492, 0.0
        %v551 = vadd.f32 %v549, %v550
        %v552 = vsel %vm394, %v493, 0.0
        %v553 = vadd.f32 %v551, %v552
        %v554 = vsel %vm394, %v494, 0.0
        %v555 = vadd.f32 %v553, %v554
        %v556 = vsel %vm394, %v495, 0.0
        %v557 = vadd.f32 %v555, %v556
        %v558 = vsel %vm394, %v496, 0.0
        %v559 = vadd.f32 %v557, %v558
        %v560 = vrot.slane %v559, 4
        %v561 = vadd.f32 %v559, %v560
        %v562 = vrot.slane %v561, 2
        %v563 = vadd.f32 %v561, %v562
        %v564 = vrot.slane %v563, 1
        %v565 = vadd.f32 %v563, %v564
        %v566 = vmul.f32 %v565, 0.00390625
        %v567 = vmul.f32 %v464, %v464
        %v568 = vsub.f32 %v566, %v567
        %v569 = vmax.f32 %v568, 0.0
        %v570 = vsub.f32 %v360, %v464
        %v571 = vsub.f32 %v361, %v464
        %v572 = vsub.f32 %v362, %v464
        %v573 = vsub.f32 %v363, %v464
        %v574 = vsub.f32 %v364, %v464
        %v575 = vsub.f32 %v365, %v464
        %v576 = vsub.f32 %v366, %v464
        %v577 = vsub.f32 %v367, %v464
        %v578 = vsub.f32 %v368, %v464
        %v579 = vsub.f32 %v369, %v464
        %v580 = vsub.f32 %v370, %v464
        %v581 = vsub.f32 %v371, %v464
        %v582 = vsub.f32 %v372, %v464
        %v583 = vsub.f32 %v373, %v464
        %v584 = vsub.f32 %v374, %v464
        %v585 = vsub.f32 %v375, %v464
        %v586 = vsub.f32 %v376, %v464
        %v587 = vsub.f32 %v377, %v464
        %v588 = vsub.f32 %v378, %v464
        %v589 = vsub.f32 %v379, %v464
        %v590 = vsub.f32 %v380, %v464
        %v591 = vsub.f32 %v381, %v464
        %v592 = vsub.f32 %v382, %v464
        %v593 = vsub.f32 %v383, %v464
        %v594 = vsub.f32 %v384, %v464
        %v595 = vsub.f32 %v385, %v464
        %v596 = vsub.f32 %v386, %v464
        %v597 = vsub.f32 %v387, %v464
        %v598 = vsub.f32 %v388, %v464
        %v599 = vsub.f32 %v389, %v464
        %v600 = vsub.f32 %v390, %v464
        %v601 = vsub.f32 %v391, %v464
        %v602 = vadd.f32 %v569, 1e-05
        %v603 = vrsqrt.pop %v602
        %v604 = vmul.f32 %v570, %v603
        %v605 = vmul.f32 %v571, %v603
        %v606 = vmul.f32 %v572, %v603
        %v607 = vmul.f32 %v573, %v603
        %v608 = vmul.f32 %v574, %v603
        %v609 = vmul.f32 %v575, %v603
        %v610 = vmul.f32 %v576, %v603
        %v611 = vmul.f32 %v577, %v603
        %v612 = vmul.f32 %v578, %v603
        %v613 = vmul.f32 %v579, %v603
        %v614 = vmul.f32 %v580, %v603
        %v615 = vmul.f32 %v581, %v603
        %v616 = vmul.f32 %v582, %v603
        %v617 = vmul.f32 %v583, %v603
        %v618 = vmul.f32 %v584, %v603
        %v619 = vmul.f32 %v585, %v603
        %v620 = vmul.f32 %v586, %v603
        %v621 = vmul.f32 %v587, %v603
        %v622 = vmul.f32 %v588, %v603
        %v623 = vmul.f32 %v589, %v603
        %v624 = vmul.f32 %v590, %v603
        %v625 = vmul.f32 %v591, %v603
        %v626 = vmul.f32 %v592, %v603
        %v627 = vmul.f32 %v593, %v603
        %v628 = vmul.f32 %v594, %v603
        %v629 = vmul.f32 %v595, %v603
        %v630 = vmul.f32 %v596, %v603
        %v631 = vmul.f32 %v597, %v603
        %v632 = vmul.f32 %v598, %v603
        %v633 = vmul.f32 %v599, %v603
        %v634 = vmul.f32 %v600, %v603
        %v635 = vmul.f32 %v601, %v603
        %v636 = vlaneseq
        %v637 = vshrl.u32 %v636, 7
        %v638 = vsub.s32 0, %v637
        %v639 = vrot.slane %v392, %v638
        %v640 = vmul.f32 %v604, %v639
        %v641 = vmul.f32 %v605, %v639
        %v642 = vmul.f32 %v606, %v639
        %v643 = vmul.f32 %v607, %v639
        %v644 = vmul.f32 %v608, %v639
        %v645 = vmul.f32 %v609, %v639
        %v646 = vmul.f32 %v610, %v639
        %v647 = vmul.f32 %v611, %v639
        %v648 = vmul.f32 %v612, %v639
        %v649 = vmul.f32 %v613, %v639
        %v650 = vmul.f32 %v614, %v639
        %v651 = vmul.f32 %v615, %v639
        %v652 = vmul.f32 %v616, %v639
        %v653 = vmul.f32 %v617, %v639
        %v654 = vmul.f32 %v618, %v639
        %v655 = vmul.f32 %v619, %v639
        %v656 = vmul.f32 %v620, %v639
        %v657 = vmul.f32 %v621, %v639
        %v658 = vmul.f32 %v622, %v639
        %v659 = vmul.f32 %v623, %v639
        %v660 = vmul.f32 %v624, %v639
        %v661 = vmul.f32 %v625, %v639
        %v662 = vmul.f32 %v626, %v639
        %v663 = vmul.f32 %v627, %v639
        %v664 = vmul.f32 %v628, %v639
        %v665 = vmul.f32 %v629, %v639
        %v666 = vmul.f32 %v630, %v639
        %v667 = vmul.f32 %v631, %v639
        %v668 = vmul.f32 %v632, %v639
        %v669 = vmul.f32 %v633, %v639
        %v670 = vmul.f32 %v634, %v639
        %v671 = vmul.f32 %v635, %v639
        %v672 = vlaneseq
        %v673 = vshrl.u32 %v672, 7
        %v674 = vsub.s32 0, %v673
        %v675 = vrot.slane %v393, %v674
        %v676 = vadd.f32 %v640, %v675
        %v677 = vadd.f32 %v641, %v675
        %v678 = vadd.f32 %v642, %v675
        %v679 = vadd.f32 %v643, %v675
        %v680 = vadd.f32 %v644, %v675
        %v681 = vadd.f32 %v645, %v675
        %v682 = vadd.f32 %v646, %v675
        %v683 = vadd.f32 %v647, %v675
        %v684 = vadd.f32 %v648, %v675
        %v685 = vadd.f32 %v649, %v675
        %v686 = vadd.f32 %v650, %v675
        %v687 = vadd.f32 %v651, %v675
        %v688 = vadd.f32 %v652, %v675
        %v689 = vadd.f32 %v653, %v675
        %v690 = vadd.f32 %v654, %v675
        %v691 = vadd.f32 %v655, %v675
        %v692 = vadd.f32 %v656, %v675
        %v693 = vadd.f32 %v657, %v675
        %v694 = vadd.f32 %v658, %v675
        %v695 = vadd.f32 %v659, %v675
        %v696 = vadd.f32 %v660, %v675
        %v697 = vadd.f32 %v661, %v675
        %v698 = vadd.f32 %v662, %v675
        %v699 = vadd.f32 %v663, %v675
        %v700 = vadd.f32 %v664, %v675
        %v701 = vadd.f32 %v665, %v675
        %v702 = vadd.f32 %v666, %v675
        %v703 = vadd.f32 %v667, %v675
        %v704 = vadd.f32 %v668, %v675
        %v705 = vadd.f32 %v669, %v675
        %v706 = vadd.f32 %v670, %v675
        %v707 = vadd.f32 %v671, %v675
        %v708 = vxor.u32 %v676, 2147483648
        %v709 = vxor.u32 %v677, 2147483648
        %v710 = vxor.u32 %v678, 2147483648
        %v711 = vxor.u32 %v679, 2147483648
        %v712 = vxor.u32 %v680, 2147483648
        %v713 = vxor.u32 %v681, 2147483648
        %v714 = vxor.u32 %v682, 2147483648
        %v715 = vxor.u32 %v683, 2147483648
        %v716 = vxor.u32 %v684, 2147483648
        %v717 = vxor.u32 %v685, 2147483648
        %v718 = vxor.u32 %v686, 2147483648
        %v719 = vxor.u32 %v687, 2147483648
        %v720 = vxor.u32 %v688, 2147483648
        %v721 = vxor.u32 %v689, 2147483648
        %v722 = vxor.u32 %v690, 2147483648
        %v723 = vxor.u32 %v691, 2147483648
        %v724 = vxor.u32 %v692, 2147483648
        %v725 = vxor.u32 %v693, 2147483648
        %v726 = vxor.u32 %v694, 2147483648
        %v727 = vxor.u32 %v695, 2147483648
        %v728 = vxor.u32 %v696, 2147483648
        %v729 = vxor.u32 %v697, 2147483648
        %v730 = vxor.u32 %v698, 2147483648
        %v731 = vxor.u32 %v699, 2147483648
        %v732 = vxor.u32 %v700, 2147483648
        %v733 = vxor.u32 %v701, 2147483648
        %v734 = vxor.u32 %v702, 2147483648
        %v735 = vxor.u32 %v703, 2147483648
        %v736 = vxor.u32 %v704, 2147483648
        %v737 = vxor.u32 %v705, 2147483648
        %v738 = vxor.u32 %v706, 2147483648
        %v739 = vxor.u32 %v707, 2147483648
        %v740 = vmul.f32 %v708, 1.442695
        %v741 = vpow.pop %v740
        %v742 = vmul.f32 %v709, 1.442695
        %v743 = vpow.pop %v742
        %v744 = vmul.f32 %v710, 1.442695
        %v745 = vpow.pop %v744
        %v746 = vmul.f32 %v711, 1.442695
        %v747 = vpow.pop %v746
        %v748 = vmul.f32 %v712, 1.442695
        %v749 = vpow.pop %v748
        %v750 = vmul.f32 %v713, 1.442695
        %v751 = vpow.pop %v750
        %v752 = vmul.f32 %v714, 1.442695
        %v753 = vpow.pop %v752
        %v754 = vmul.f32 %v715, 1.442695
        %v755 = vpow.pop %v754
        %v756 = vmul.f32 %v716, 1.442695
        %v757 = vpow.pop %v756
        %v758 = vmul.f32 %v717, 1.442695
        %v759 = vpow.pop %v758
        %v760 = vmul.f32 %v718, 1.442695
        %v761 = vpow.pop %v760
        %v762 = vmul.f32 %v719, 1.442695
        %v763 = vpow.pop %v762
        %v764 = vmul.f32 %v720, 1.442695
        %v765 = vpow.pop %v764
        %v766 = vmul.f32 %v721, 1.442695
        %v767 = vpow.pop %v766
        %v768 = vmul.f32 %v722, 1.442695
        %v769 = vpow.pop %v768
        %v770 = vmul.f32 %v723, 1.442695
        %v771 = vpow.pop %v770
        %v772 = vmul.f32 %v724, 1.442695
        %v773 = vpow.pop %v772
        %v774 = vmul.f32 %v725, 1.442695
        %v775 = vpow.pop %v774
        %v776 = vmul.f32 %v726, 1.442695
        %v777 = vpow.pop %v776
        %v778 = vmul.f32 %v727, 1.442695
        %v779 = vpow.pop %v778
        %v780 = vmul.f32 %v728, 1.442695
        %v781 = vpow.pop %v780
        %v782 = vmul.f32 %v729, 1.442695
        %v783 = vpow.pop %v782
        %v784 = vmul.f32 %v730, 1.442695
        %v785 = vpow.pop %v784
        %v786 = vmul.f32 %v731, 1.442695
        %v787 = vpow.pop %v786
        %v788 = vmul.f32 %v732, 1.442695
        %v789 = vpow.pop %v788
        %v790 = vmul.f32 %v733, 1.442695
        %v791 = vpow.pop %v790
        %v792 = vmul.f32 %v734, 1.442695
        %v793 = vpow.pop %v792
        %v794 = vmul.f32 %v735, 1.442695
        %v795 = vpow.pop %v794
        %v796 = vmul.f32 %v736, 1.442695
        %v797 = vpow.pop %v796
        %v798 = vmul.f32 %v737, 1.442695
        %v799 = vpow.pop %v798
        %v800 = vmul.f32 %v738, 1.442695
        %v801 = vpow.pop %v800
        %v802 = vmul.f32 %v739, 1.442695
        %v803 = vpow.pop %v802
        %v804 = vadd.f32 %v741, 1.0
        %v805 = vadd.f32 %v743, 1.0
        %v806 = vadd.f32 %v745, 1.0
        %v807 = vadd.f32 %v747, 1.0
        %v808 = vadd.f32 %v749, 1.0
        %v809 = vadd.f32 %v751, 1.0
        %v810 = vadd.f32 %v753, 1.0
        %v811 = vadd.f32 %v755, 1.0
        %v812 = vadd.f32 %v757, 1.0
        %v813 = vadd.f32 %v759, 1.0
        %v814 = vadd.f32 %v761, 1.0
        %v815 = vadd.f32 %v763, 1.0
        %v816 = vadd.f32 %v765, 1.0
        %v817 = vadd.f32 %v767, 1.0
        %v818 = vadd.f32 %v769, 1.0
        %v819 = vadd.f32 %v771, 1.0
        %v820 = vadd.f32 %v773, 1.0
        %v821 = vadd.f32 %v775, 1.0
        %v822 = vadd.f32 %v777, 1.0
        %v823 = vadd.f32 %v779, 1.0
        %v824 = vadd.f32 %v781, 1.0
        %v825 = vadd.f32 %v783, 1.0
        %v826 = vadd.f32 %v785, 1.0
        %v827 = vadd.f32 %v787, 1.0
        %v828 = vadd.f32 %v789, 1.0
        %v829 = vadd.f32 %v791, 1.0
        %v830 = vadd.f32 %v793, 1.0
        %v831 = vadd.f32 %v795, 1.0
        %v832 = vadd.f32 %v797, 1.0
        %v833 = vadd.f32 %v799, 1.0
        %v834 = vadd.f32 %v801, 1.0
        %v835 = vadd.f32 %v803, 1.0
        %v836 = vrcp.pop %v804
        %v837 = vmul.f32 1.0, %v836
        %v838 = vrcp.pop %v805
        %v839 = vmul.f32 1.0, %v838
        %v840 = vrcp.pop %v806
        %v841 = vmul.f32 1.0, %v840
        %v842 = vrcp.pop %v807
        %v843 = vmul.f32 1.0, %v842
        %v844 = vrcp.pop %v808
        %v845 = vmul.f32 1.0, %v844
        %v846 = vrcp.pop %v809
        %v847 = vmul.f32 1.0, %v846
        %v848 = vrcp.pop %v810
        %v849 = vmul.f32 1.0, %v848
        %v850 = vrcp.pop %v811
        %v851 = vmul.f32 1.0, %v850
        %v852 = vrcp.pop %v812
        %v853 = vmul.f32 1.0, %v852
        %v854 = vrcp.pop %v813
        %v855 = vmul.f32 1.0, %v854
        %v856 = vrcp.pop %v814
        %v857 = vmul.f32 1.0, %v856
        %v858 = vrcp.pop %v815
        %v859 = vmul.f32 1.0, %v858
        %v860 = vrcp.pop %v816
        %v861 = vmul.f32 1.0, %v860
        %v862 = vrcp.pop %v817
        %v863 = vmul.f32 1.0, %v862
        %v864 = vrcp.pop %v818
        %v865 = vmul.f32 1.0, %v864
        %v866 = vrcp.pop %v819
        %v867 = vmul.f32 1.0, %v866
        %v868 = vrcp.pop %v820
        %v869 = vmul.f32 1.0, %v868
        %v870 = vrcp.pop %v821
        %v871 = vmul.f32 1.0, %v870
        %v872 = vrcp.pop %v822
        %v873 = vmul.f32 1.0, %v872
        %v874 = vrcp.pop %v823
        %v875 = vmul.f32 1.0, %v874
        %v876 = vrcp.pop %v824
        %v877 = vmul.f32 1.0, %v876
        %v878 = vrcp.pop %v825
        %v879 = vmul.f32 1.0, %v878
        %v880 = vrcp.pop %v826
        %v881 = vmul.f32 1.0, %v880
        %v882 = vrcp.pop %v827
        %v883 = vmul.f32 1.0, %v882
        %v884 = vrcp.pop %v828
        %v885 = vmul.f32 1.0, %v884
        %v886 = vrcp.pop %v829
        %v887 = vmul.f32 1.0, %v886
        %v888 = vrcp.pop %v830
        %v889 = vmul.f32 1.0, %v888
        %v890 = vrcp.pop %v831
        %v891 = vmul.f32 1.0, %v890
        %v892 = vrcp.pop %v832
        %v893 = vmul.f32 1.0, %v892
        %v894 = vrcp.pop %v833
        %v895 = vmul.f32 1.0, %v894
        %v896 = vrcp.pop %v834
        %v897 = vmul.f32 1.0, %v896
        %v898 = vrcp.pop %v835
        %v899 = vmul.f32 1.0, %v898
        %v900 = vmul.f32 %v676, %v837
        %v901 = vmul.f32 %v677, %v839
        %v902 = vmul.f32 %v678, %v841
        %v903 = vmul.f32 %v679, %v843
        %v904 = vmul.f32 %v680, %v845
        %v905 = vmul.f32 %v681, %v847
        %v906 = vmul.f32 %v682, %v849
        %v907 = vmul.f32 %v683, %v851
        %v908 = vmul.f32 %v684, %v853
        %v909 = vmul.f32 %v685, %v855
        %v910 = vmul.f32 %v686, %v857
        %v911 = vmul.f32 %v687, %v859
        %v912 = vmul.f32 %v688, %v861
        %v913 = vmul.f32 %v689, %v863
        %v914 = vmul.f32 %v690, %v865
        %v915 = vmul.f32 %v691, %v867
        %v916 = vmul.f32 %v692, %v869
        %v917 = vmul.f32 %v693, %v871
        %v918 = vmul.f32 %v694, %v873
        %v919 = vmul.f32 %v695, %v875
        %v920 = vmul.f32 %v696, %v877
        %v921 = vmul.f32 %v697, %v879
        %v922 = vmul.f32 %v698, %v881
        %v923 = vmul.f32 %v699, %v883
        %v924 = vmul.f32 %v700, %v885
        %v925 = vmul.f32 %v701, %v887
        %v926 = vmul.f32 %v702, %v889
        %v927 = vmul.f32 %v703, %v891
        %v928 = vmul.f32 %v704, %v893
        %v929 = vmul.f32 %v705, %v895
        %v930 = vmul.f32 %v706, %v897
        %v931 = vmul.f32 %v707, %v899
        %v932 = vld [vmem:[%s4] sm:$0x1]
        %v933 = vrot.slane %v900, 7
        %v934 = vrot.slane %v901, 7
        %v935 = vrot.slane %v902, 7
        %v936 = vrot.slane %v903, 7
        %v937 = vrot.slane %v904, 7
        %v938 = vrot.slane %v905, 7
        %v939 = vrot.slane %v906, 7
        %v940 = vrot.slane %v907, 7
        %v941 = vrot.slane %v908, 7
        %v942 = vrot.slane %v909, 7
        %v943 = vrot.slane %v910, 7
        %v944 = vrot.slane %v911, 7
        %v945 = vrot.slane %v912, 7
        %v946 = vrot.slane %v913, 7
        %v947 = vrot.slane %v914, 7
        %v948 = vrot.slane %v915, 7
        %v949 = vrot.slane %v916, 7
        %v950 = vrot.slane %v917, 7
        %v951 = vrot.slane %v918, 7
        %v952 = vrot.slane %v919, 7
        %v953 = vrot.slane %v920, 7
        %v954 = vrot.slane %v921, 7
        %v955 = vrot.slane %v922, 7
        %v956 = vrot.slane %v923, 7
        %v957 = vrot.slane %v924, 7
        %v958 = vrot.slane %v925, 7
        %v959 = vrot.slane %v926, 7
        %v960 = vrot.slane %v927, 7
        %v961 = vrot.slane %v928, 7
        %v962 = vrot.slane %v929, 7
        %v963 = vrot.slane %v930, 7
        %v964 = vrot.slane %v931, 7
        %v965 = vlaneseq
        %v966 = vshrl.u32 %v965, 7
        %vm967 = vcmp.lt.s32.totalorder %v966, 1
        %v968 = vsel %vm967, %v963, %v964
        %v969 = vsel %vm967, %v962, %v963
        %v970 = vsel %vm967, %v961, %v962
        %v971 = vsel %vm967, %v960, %v961
        %v972 = vsel %vm967, %v959, %v960
        %v973 = vsel %vm967, %v958, %v959
        %v974 = vsel %vm967, %v957, %v958
        %v975 = vsel %vm967, %v956, %v957
        %v976 = vsel %vm967, %v955, %v956
        %v977 = vsel %vm967, %v954, %v955
        %v978 = vsel %vm967, %v953, %v954
        %v979 = vsel %vm967, %v952, %v953
        %v980 = vsel %vm967, %v951, %v952
        %v981 = vsel %vm967, %v950, %v951
        %v982 = vsel %vm967, %v949, %v950
        %v983 = vsel %vm967, %v948, %v949
        %v984 = vsel %vm967, %v947, %v948
        %v985 = vsel %vm967, %v946, %v947
        %v986 = vsel %vm967, %v945, %v946
        %v987 = vsel %vm967, %v944, %v945
        %v988 = vsel %vm967, %v943, %v944
        %v989 = vsel %vm967, %v942, %v943
        %v990 = vsel %vm967, %v941, %v942
        %v991 = vsel %vm967, %v940, %v941
        %v992 = vsel %vm967, %v939, %v940
        %v993 = vsel %vm967, %v938, %v939
        %v994 = vsel %vm967, %v937, %v938
        %v995 = vsel %vm967, %v936, %v937
        %v996 = vsel %vm967, %v935, %v936
        %v997 = vsel %vm967, %v934, %v935
        %v998 = vsel %vm967, %v933, %v934
        %v999 = vsel %vm967, %v964, %v933
        %v1000 = vld [vmem:[%s6] sm:$0xff]
        %v1001 = vld [vmem:[%s6 + $0x8] sm:$0xff]
        %v1002 = vld [vmem:[%s6 + $0x10] sm:$0xff]
        %v1003 = vld [vmem:[%s6 + $0x18] sm:$0xff]
        %v1004 = vld [vmem:[%s6 + $0x20] sm:$0xff]
        %v1005 = vld [vmem:[%s6 + $0x28] sm:$0xff]
        %v1006 = vld [vmem:[%s6 + $0x30] sm:$0xff]
        %v1007 = vld [vmem:[%s6 + $0x38] sm:$0xff]
        %v1008 = vld [vmem:[%s6 + $0x40] sm:$0xff]
        %v1009 = vld [vmem:[%s6 + $0x48] sm:$0xff]
        %v1010 = vld [vmem:[%s6 + $0x50] sm:$0xff]
        %v1011 = vld [vmem:[%s6 + $0x58] sm:$0xff]
        %v1012 = vld [vmem:[%s6 + $0x60] sm:$0xff]
        %v1013 = vld [vmem:[%s6 + $0x68] sm:$0xff]
        %v1014 = vld [vmem:[%s6 + $0x70] sm:$0xff]
        %v1015 = vld [vmem:[%s6 + $0x78] sm:$0xff]
        %v1016 = vld [vmem:[%s6 + $0x80] sm:$0xff]
        %v1017 = vld [vmem:[%s6 + $0x88] sm:$0xff]
        %v1018 = vld [vmem:[%s6 + $0x90] sm:$0xff]
        %v1019 = vld [vmem:[%s6 + $0x98] sm:$0xff]
        %v1020 = vld [vmem:[%s6 + $0xa0] sm:$0xff]
        %v1021 = vld [vmem:[%s6 + $0xa8] sm:$0xff]
        %v1022 = vld [vmem:[%s6 + $0xb0] sm:$0xff]
        %v1023 = vld [vmem:[%s6 + $0xb8] sm:$0xff]
        %v1024 = vld [vmem:[%s6 + $0xc0] sm:$0xff]
        %v1025 = vld [vmem:[%s6 + $0xc8] sm:$0xff]
        %v1026 = vld [vmem:[%s6 + $0xd0] sm:$0xff]
        %v1027 = vld [vmem:[%s6 + $0xd8] sm:$0xff]
        %v1028 = vld [vmem:[%s6 + $0xe0] sm:$0xff]
        %v1029 = vld [vmem:[%s6 + $0xe8] sm:$0xff]
        %v1030 = vld [vmem:[%s6 + $0xf0] sm:$0xff]
        %v1031 = vld [vmem:[%s6 + $0xf8] sm:$0xff]
        %1033 = vset.pattern.permute.xlu0 0
        %1034 = vperm.xlu0 %1033, %v1000
        %v1035 = vpop.permute.xlu0 %1034
        %1038 = vset.pattern.permute.xlu0 0
        %1039 = vperm.xlu0 %1038, %v1001
        %v1040 = vpop.permute.xlu0 %1039
        %1043 = vset.pattern.permute.xlu0 0
        %1044 = vperm.xlu0 %1043, %v1002
        %v1045 = vpop.permute.xlu0 %1044
        %1048 = vset.pattern.permute.xlu0 0
        %1049 = vperm.xlu0 %1048, %v1003
        %v1050 = vpop.permute.xlu0 %1049
        %1053 = vset.pattern.permute.xlu0 0
        %1054 = vperm.xlu0 %1053, %v1004
        %v1055 = vpop.permute.xlu0 %1054
        %1058 = vset.pattern.permute.xlu0 0
        %1059 = vperm.xlu0 %1058, %v1005
        %v1060 = vpop.permute.xlu0 %1059
        %1063 = vset.pattern.permute.xlu0 0
        %1064 = vperm.xlu0 %1063, %v1006
        %v1065 = vpop.permute.xlu0 %1064
        %1068 = vset.pattern.permute.xlu0 0
        %1069 = vperm.xlu0 %1068, %v1007
        %v1070 = vpop.permute.xlu0 %1069
        %1073 = vset.pattern.permute.xlu0 0
        %1074 = vperm.xlu0 %1073, %v1008
        %v1075 = vpop.permute.xlu0 %1074
        %1078 = vset.pattern.permute.xlu0 0
        %1079 = vperm.xlu0 %1078, %v1009
        %v1080 = vpop.permute.xlu0 %1079
        %1083 = vset.pattern.permute.xlu0 0
        %1084 = vperm.xlu0 %1083, %v1010
        %v1085 = vpop.permute.xlu0 %1084
        %1088 = vset.pattern.permute.xlu0 0
        %1089 = vperm.xlu0 %1088, %v1011
        %v1090 = vpop.permute.xlu0 %1089
        %1093 = vset.pattern.permute.xlu0 0
        %1094 = vperm.xlu0 %1093, %v1012
        %v1095 = vpop.permute.xlu0 %1094
        %1098 = vset.pattern.permute.xlu0 0
        %1099 = vperm.xlu0 %1098, %v1013
        %v1100 = vpop.permute.xlu0 %1099
        %1103 = vset.pattern.permute.xlu0 0
        %1104 = vperm.xlu0 %1103, %v1014
        %v1105 = vpop.permute.xlu0 %1104
        %1108 = vset.pattern.permute.xlu0 0
        %1109 = vperm.xlu0 %1108, %v1015
        %v1110 = vpop.permute.xlu0 %1109
        %1113 = vset.pattern.permute.xlu0 0
        %1114 = vperm.xlu0 %1113, %v1016
        %v1115 = vpop.permute.xlu0 %1114
        %1118 = vset.pattern.permute.xlu0 0
        %1119 = vperm.xlu0 %1118, %v1017
        %v1120 = vpop.permute.xlu0 %1119
        %1123 = vset.pattern.permute.xlu0 0
        %1124 = vperm.xlu0 %1123, %v1018
        %v1125 = vpop.permute.xlu0 %1124
        %1128 = vset.pattern.permute.xlu0 0
        %1129 = vperm.xlu0 %1128, %v1019
        %v1130 = vpop.permute.xlu0 %1129
        %1133 = vset.pattern.permute.xlu0 0
        %1134 = vperm.xlu0 %1133, %v1020
        %v1135 = vpop.permute.xlu0 %1134
        %1138 = vset.pattern.permute.xlu0 0
        %1139 = vperm.xlu0 %1138, %v1021
        %v1140 = vpop.permute.xlu0 %1139
        %1143 = vset.pattern.permute.xlu0 0
        %1144 = vperm.xlu0 %1143, %v1022
        %v1145 = vpop.permute.xlu0 %1144
        %1148 = vset.pattern.permute.xlu0 0
        %1149 = vperm.xlu0 %1148, %v1023
        %v1150 = vpop.permute.xlu0 %1149
        %1153 = vset.pattern.permute.xlu0 0
        %1154 = vperm.xlu0 %1153, %v1024
        %v1155 = vpop.permute.xlu0 %1154
        %1158 = vset.pattern.permute.xlu0 0
        %1159 = vperm.xlu0 %1158, %v1025
        %v1160 = vpop.permute.xlu0 %1159
        %1163 = vset.pattern.permute.xlu0 0
        %1164 = vperm.xlu0 %1163, %v1026
        %v1165 = vpop.permute.xlu0 %1164
        %1168 = vset.pattern.permute.xlu0 0
        %1169 = vperm.xlu0 %1168, %v1027
        %v1170 = vpop.permute.xlu0 %1169
        %1173 = vset.pattern.permute.xlu0 0
        %1174 = vperm.xlu0 %1173, %v1028
        %v1175 = vpop.permute.xlu0 %1174
        %1178 = vset.pattern.permute.xlu0 0
        %1179 = vperm.xlu0 %1178, %v1029
        %v1180 = vpop.permute.xlu0 %1179
        %1183 = vset.pattern.permute.xlu0 0
        %1184 = vperm.xlu0 %1183, %v1030
        %v1185 = vpop.permute.xlu0 %1184
        %1188 = vset.pattern.permute.xlu0 0
        %1189 = vperm.xlu0 %1188, %v1031
        %v1190 = vpop.permute.xlu0 %1189
        %v1192 = vmul.f32 %v969, %v1035
        %v1193 = vmul.f32 %v968, %v1040
        %v1194 = vmul.f32 %v999, %v1045
        %v1195 = vmul.f32 %v998, %v1050
        %v1196 = vmul.f32 %v997, %v1055
        %v1197 = vmul.f32 %v996, %v1060
        %v1198 = vmul.f32 %v995, %v1065
        %v1199 = vmul.f32 %v994, %v1070
        %v1200 = vmul.f32 %v993, %v1075
        %v1201 = vmul.f32 %v992, %v1080
        %v1202 = vmul.f32 %v991, %v1085
        %v1203 = vmul.f32 %v990, %v1090
        %v1204 = vmul.f32 %v989, %v1095
        %v1205 = vmul.f32 %v988, %v1100
        %v1206 = vmul.f32 %v987, %v1105
        %v1207 = vmul.f32 %v986, %v1110
        %v1208 = vmul.f32 %v985, %v1115
        %v1209 = vmul.f32 %v984, %v1120
        %v1210 = vmul.f32 %v983, %v1125
        %v1211 = vmul.f32 %v982, %v1130
        %v1212 = vmul.f32 %v981, %v1135
        %v1213 = vmul.f32 %v980, %v1140
        %v1214 = vmul.f32 %v979, %v1145
        %v1215 = vmul.f32 %v978, %v1150
        %v1216 = vmul.f32 %v977, %v1155
        %v1217 = vmul.f32 %v976, %v1160
        %v1218 = vmul.f32 %v975, %v1165
        %v1219 = vmul.f32 %v974, %v1170
        %v1220 = vmul.f32 %v973, %v1175
        %v1221 = vmul.f32 %v972, %v1180
        %v1222 = vmul.f32 %v971, %v1185
        %v1223 = vmul.f32 %v970, %v1190
        %v1224 = vpack.c.bf16 %v1193, %v1192
        %v1225 = vpack.c.bf16 %v1195, %v1194
        %v1226 = vpack.c.bf16 %v1197, %v1196
        %v1227 = vpack.c.bf16 %v1199, %v1198
        %v1228 = vpack.c.bf16 %v1201, %v1200
        %v1229 = vpack.c.bf16 %v1203, %v1202
        %v1230 = vpack.c.bf16 %v1205, %v1204
        %v1231 = vpack.c.bf16 %v1207, %v1206
        %v1232 = vpack.c.bf16 %v1209, %v1208
        %v1233 = vpack.c.bf16 %v1211, %v1210
        %v1234 = vpack.c.bf16 %v1213, %v1212
        %v1235 = vpack.c.bf16 %v1215, %v1214
        %v1236 = vpack.c.bf16 %v1217, %v1216
        %v1237 = vpack.c.bf16 %v1219, %v1218
        %v1238 = vpack.c.bf16 %v1221, %v1220
        %v1239 = vpack.c.bf16 %v1223, %v1222
        %1240 = vset.pattern.permute.xlu0 1
        %1241 = vperm.xlu0 %1240, %v1000
        %v1242 = vpop.permute.xlu0 %1241
        %1244 = vset.pattern.permute.xlu0 1
        %1245 = vperm.xlu0 %1244, %v1001
        %v1246 = vpop.permute.xlu0 %1245
        %1248 = vset.pattern.permute.xlu0 1
        %1249 = vperm.xlu0 %1248, %v1002
        %v1250 = vpop.permute.xlu0 %1249
        %1252 = vset.pattern.permute.xlu0 1
        %1253 = vperm.xlu0 %1252, %v1003
        %v1254 = vpop.permute.xlu0 %1253
        %1256 = vset.pattern.permute.xlu0 1
        %1257 = vperm.xlu0 %1256, %v1004
        %v1258 = vpop.permute.xlu0 %1257
        %1260 = vset.pattern.permute.xlu0 1
        %1261 = vperm.xlu0 %1260, %v1005
        %v1262 = vpop.permute.xlu0 %1261
        %1264 = vset.pattern.permute.xlu0 1
        %1265 = vperm.xlu0 %1264, %v1006
        %v1266 = vpop.permute.xlu0 %1265
        %1268 = vset.pattern.permute.xlu0 1
        %1269 = vperm.xlu0 %1268, %v1007
        %v1270 = vpop.permute.xlu0 %1269
        %1272 = vset.pattern.permute.xlu0 1
        %1273 = vperm.xlu0 %1272, %v1008
        %v1274 = vpop.permute.xlu0 %1273
        %1276 = vset.pattern.permute.xlu0 1
        %1277 = vperm.xlu0 %1276, %v1009
        %v1278 = vpop.permute.xlu0 %1277
        %1280 = vset.pattern.permute.xlu0 1
        %1281 = vperm.xlu0 %1280, %v1010
        %v1282 = vpop.permute.xlu0 %1281
        %1284 = vset.pattern.permute.xlu0 1
        %1285 = vperm.xlu0 %1284, %v1011
        %v1286 = vpop.permute.xlu0 %1285
        %1288 = vset.pattern.permute.xlu0 1
        %1289 = vperm.xlu0 %1288, %v1012
        %v1290 = vpop.permute.xlu0 %1289
        %1292 = vset.pattern.permute.xlu0 1
        %1293 = vperm.xlu0 %1292, %v1013
        %v1294 = vpop.permute.xlu0 %1293
        %1296 = vset.pattern.permute.xlu0 1
        %1297 = vperm.xlu0 %1296, %v1014
        %v1298 = vpop.permute.xlu0 %1297
        %1300 = vset.pattern.permute.xlu0 1
        %1301 = vperm.xlu0 %1300, %v1015
        %v1302 = vpop.permute.xlu0 %1301
        %1304 = vset.pattern.permute.xlu0 1
        %1305 = vperm.xlu0 %1304, %v1016
        %v1306 = vpop.permute.xlu0 %1305
        %1308 = vset.pattern.permute.xlu0 1
        %1309 = vperm.xlu0 %1308, %v1017
        %v1310 = vpop.permute.xlu0 %1309
        %1312 = vset.pattern.permute.xlu0 1
        %1313 = vperm.xlu0 %1312, %v1018
        %v1314 = vpop.permute.xlu0 %1313
        %1316 = vset.pattern.permute.xlu0 1
        %1317 = vperm.xlu0 %1316, %v1019
        %v1318 = vpop.permute.xlu0 %1317
        %1320 = vset.pattern.permute.xlu0 1
        %1321 = vperm.xlu0 %1320, %v1020
        %v1322 = vpop.permute.xlu0 %1321
        %1324 = vset.pattern.permute.xlu0 1
        %1325 = vperm.xlu0 %1324, %v1021
        %v1326 = vpop.permute.xlu0 %1325
        %1328 = vset.pattern.permute.xlu0 1
        %1329 = vperm.xlu0 %1328, %v1022
        %v1330 = vpop.permute.xlu0 %1329
        %1332 = vset.pattern.permute.xlu0 1
        %1333 = vperm.xlu0 %1332, %v1023
        %v1334 = vpop.permute.xlu0 %1333
        %1336 = vset.pattern.permute.xlu0 1
        %1337 = vperm.xlu0 %1336, %v1024
        %v1338 = vpop.permute.xlu0 %1337
        %1340 = vset.pattern.permute.xlu0 1
        %1341 = vperm.xlu0 %1340, %v1025
        %v1342 = vpop.permute.xlu0 %1341
        %1344 = vset.pattern.permute.xlu0 1
        %1345 = vperm.xlu0 %1344, %v1026
        %v1346 = vpop.permute.xlu0 %1345
        %1348 = vset.pattern.permute.xlu0 1
        %1349 = vperm.xlu0 %1348, %v1027
        %v1350 = vpop.permute.xlu0 %1349
        %1352 = vset.pattern.permute.xlu0 1
        %1353 = vperm.xlu0 %1352, %v1028
        %v1354 = vpop.permute.xlu0 %1353
        %1356 = vset.pattern.permute.xlu0 1
        %1357 = vperm.xlu0 %1356, %v1029
        %v1358 = vpop.permute.xlu0 %1357
        %1360 = vset.pattern.permute.xlu0 1
        %1361 = vperm.xlu0 %1360, %v1030
        %v1362 = vpop.permute.xlu0 %1361
        %1364 = vset.pattern.permute.xlu0 1
        %1365 = vperm.xlu0 %1364, %v1031
        %v1366 = vpop.permute.xlu0 %1365
        %v1368 = vmul.f32 %v930, %v1242
        %v1369 = vmul.f32 %v931, %v1246
        %v1370 = vmul.f32 %v900, %v1250
        %v1371 = vmul.f32 %v901, %v1254
        %v1372 = vmul.f32 %v902, %v1258
        %v1373 = vmul.f32 %v903, %v1262
        %v1374 = vmul.f32 %v904, %v1266
        %v1375 = vmul.f32 %v905, %v1270
        %v1376 = vmul.f32 %v906, %v1274
        %v1377 = vmul.f32 %v907, %v1278
        %v1378 = vmul.f32 %v908, %v1282
        %v1379 = vmul.f32 %v909, %v1286
        %v1380 = vmul.f32 %v910, %v1290
        %v1381 = vmul.f32 %v911, %v1294
        %v1382 = vmul.f32 %v912, %v1298
        %v1383 = vmul.f32 %v913, %v1302
        %v1384 = vmul.f32 %v914, %v1306
        %v1385 = vmul.f32 %v915, %v1310
        %v1386 = vmul.f32 %v916, %v1314
        %v1387 = vmul.f32 %v917, %v1318
        %v1388 = vmul.f32 %v918, %v1322
        %v1389 = vmul.f32 %v919, %v1326
        %v1390 = vmul.f32 %v920, %v1330
        %v1391 = vmul.f32 %v921, %v1334
        %v1392 = vmul.f32 %v922, %v1338
        %v1393 = vmul.f32 %v923, %v1342
        %v1394 = vmul.f32 %v924, %v1346
        %v1395 = vmul.f32 %v925, %v1350
        %v1396 = vmul.f32 %v926, %v1354
        %v1397 = vmul.f32 %v927, %v1358
        %v1398 = vmul.f32 %v928, %v1362
        %v1399 = vmul.f32 %v929, %v1366
        %v1400 = vpack.c.bf16 %v1369, %v1368
        %v1401 = vpack.c.bf16 %v1371, %v1370
        %v1402 = vpack.c.bf16 %v1373, %v1372
        %v1403 = vpack.c.bf16 %v1375, %v1374
        %v1404 = vpack.c.bf16 %v1377, %v1376
        %v1405 = vpack.c.bf16 %v1379, %v1378
        %v1406 = vpack.c.bf16 %v1381, %v1380
        %v1407 = vpack.c.bf16 %v1383, %v1382
        %v1408 = vpack.c.bf16 %v1385, %v1384
        %v1409 = vpack.c.bf16 %v1387, %v1386
        %v1410 = vpack.c.bf16 %v1389, %v1388
        %v1411 = vpack.c.bf16 %v1391, %v1390
        %v1412 = vpack.c.bf16 %v1393, %v1392
        %v1413 = vpack.c.bf16 %v1395, %v1394
        %v1414 = vpack.c.bf16 %v1397, %v1396
        %v1415 = vpack.c.bf16 %v1399, %v1398
        %v1416 = vrot.slane %v900, 1
        %v1417 = vrot.slane %v901, 1
        %v1418 = vrot.slane %v902, 1
        %v1419 = vrot.slane %v903, 1
        %v1420 = vrot.slane %v904, 1
        %v1421 = vrot.slane %v905, 1
        %v1422 = vrot.slane %v906, 1
        %v1423 = vrot.slane %v907, 1
        %v1424 = vrot.slane %v908, 1
        %v1425 = vrot.slane %v909, 1
        %v1426 = vrot.slane %v910, 1
        %v1427 = vrot.slane %v911, 1
        %v1428 = vrot.slane %v912, 1
        %v1429 = vrot.slane %v913, 1
        %v1430 = vrot.slane %v914, 1
        %v1431 = vrot.slane %v915, 1
        %v1432 = vrot.slane %v916, 1
        %v1433 = vrot.slane %v917, 1
        %v1434 = vrot.slane %v918, 1
        %v1435 = vrot.slane %v919, 1
        %v1436 = vrot.slane %v920, 1
        %v1437 = vrot.slane %v921, 1
        %v1438 = vrot.slane %v922, 1
        %v1439 = vrot.slane %v923, 1
        %v1440 = vrot.slane %v924, 1
        %v1441 = vrot.slane %v925, 1
        %v1442 = vrot.slane %v926, 1
        %v1443 = vrot.slane %v927, 1
        %v1444 = vrot.slane %v928, 1
        %v1445 = vrot.slane %v929, 1
        %v1446 = vrot.slane %v930, 1
        %v1447 = vrot.slane %v931, 1
        %vm1448 = vcmp.lt.s32.totalorder %v966, 7
        %v1449 = vsel %vm1448, %v1446, %v1447
        %v1450 = vsel %vm1448, %v1445, %v1446
        %v1451 = vsel %vm1448, %v1444, %v1445
        %v1452 = vsel %vm1448, %v1443, %v1444
        %v1453 = vsel %vm1448, %v1442, %v1443
        %v1454 = vsel %vm1448, %v1441, %v1442
        %v1455 = vsel %vm1448, %v1440, %v1441
        %v1456 = vsel %vm1448, %v1439, %v1440
        %v1457 = vsel %vm1448, %v1438, %v1439
        %v1458 = vsel %vm1448, %v1437, %v1438
        %v1459 = vsel %vm1448, %v1436, %v1437
        %v1460 = vsel %vm1448, %v1435, %v1436
        %v1461 = vsel %vm1448, %v1434, %v1435
        %v1462 = vsel %vm1448, %v1433, %v1434
        %v1463 = vsel %vm1448, %v1432, %v1433
        %v1464 = vsel %vm1448, %v1431, %v1432
        %v1465 = vsel %vm1448, %v1430, %v1431
        %v1466 = vsel %vm1448, %v1429, %v1430
        %v1467 = vsel %vm1448, %v1428, %v1429
        %v1468 = vsel %vm1448, %v1427, %v1428
        %v1469 = vsel %vm1448, %v1426, %v1427
        %v1470 = vsel %vm1448, %v1425, %v1426
        %v1471 = vsel %vm1448, %v1424, %v1425
        %v1472 = vsel %vm1448, %v1423, %v1424
        %v1473 = vsel %vm1448, %v1422, %v1423
        %v1474 = vsel %vm1448, %v1421, %v1422
        %v1475 = vsel %vm1448, %v1420, %v1421
        %v1476 = vsel %vm1448, %v1419, %v1420
        %v1477 = vsel %vm1448, %v1418, %v1419
        %v1478 = vsel %vm1448, %v1417, %v1418
        %v1479 = vsel %vm1448, %v1416, %v1417
        %v1480 = vsel %vm1448, %v1447, %v1416
        %1481 = vset.pattern.permute.xlu0 2
        %1482 = vperm.xlu0 %1481, %v1000
        %v1483 = vpop.permute.xlu0 %1482
        %1485 = vset.pattern.permute.xlu0 2
        %1486 = vperm.xlu0 %1485, %v1001
        %v1487 = vpop.permute.xlu0 %1486
        %1489 = vset.pattern.permute.xlu0 2
        %1490 = vperm.xlu0 %1489, %v1002
        %v1491 = vpop.permute.xlu0 %1490
        %1493 = vset.pattern.permute.xlu0 2
        %1494 = vperm.xlu0 %1493, %v1003
        %v1495 = vpop.permute.xlu0 %1494
        %1497 = vset.pattern.permute.xlu0 2
        %1498 = vperm.xlu0 %1497, %v1004
        %v1499 = vpop.permute.xlu0 %1498
        %1501 = vset.pattern.permute.xlu0 2
        %1502 = vperm.xlu0 %1501, %v1005
        %v1503 = vpop.permute.xlu0 %1502
        %1505 = vset.pattern.permute.xlu0 2
        %1506 = vperm.xlu0 %1505, %v1006
        %v1507 = vpop.permute.xlu0 %1506
        %1509 = vset.pattern.permute.xlu0 2
        %1510 = vperm.xlu0 %1509, %v1007
        %v1511 = vpop.permute.xlu0 %1510
        %1513 = vset.pattern.permute.xlu0 2
        %1514 = vperm.xlu0 %1513, %v1008
        %v1515 = vpop.permute.xlu0 %1514
        %1517 = vset.pattern.permute.xlu0 2
        %1518 = vperm.xlu0 %1517, %v1009
        %v1519 = vpop.permute.xlu0 %1518
        %1521 = vset.pattern.permute.xlu0 2
        %1522 = vperm.xlu0 %1521, %v1010
        %v1523 = vpop.permute.xlu0 %1522
        %1525 = vset.pattern.permute.xlu0 2
        %1526 = vperm.xlu0 %1525, %v1011
        %v1527 = vpop.permute.xlu0 %1526
        %1529 = vset.pattern.permute.xlu0 2
        %1530 = vperm.xlu0 %1529, %v1012
        %v1531 = vpop.permute.xlu0 %1530
        %1533 = vset.pattern.permute.xlu0 2
        %1534 = vperm.xlu0 %1533, %v1013
        %v1535 = vpop.permute.xlu0 %1534
        %1537 = vset.pattern.permute.xlu0 2
        %1538 = vperm.xlu0 %1537, %v1014
        %v1539 = vpop.permute.xlu0 %1538
        %1541 = vset.pattern.permute.xlu0 2
        %1542 = vperm.xlu0 %1541, %v1015
        %v1543 = vpop.permute.xlu0 %1542
        %1545 = vset.pattern.permute.xlu0 2
        %1546 = vperm.xlu0 %1545, %v1016
        %v1547 = vpop.permute.xlu0 %1546
        %1549 = vset.pattern.permute.xlu0 2
        %1550 = vperm.xlu0 %1549, %v1017
        %v1551 = vpop.permute.xlu0 %1550
        %1553 = vset.pattern.permute.xlu0 2
        %1554 = vperm.xlu0 %1553, %v1018
        %v1555 = vpop.permute.xlu0 %1554
        %1557 = vset.pattern.permute.xlu0 2
        %1558 = vperm.xlu0 %1557, %v1019
        %v1559 = vpop.permute.xlu0 %1558
        %1561 = vset.pattern.permute.xlu0 2
        %1562 = vperm.xlu0 %1561, %v1020
        %v1563 = vpop.permute.xlu0 %1562
        %1565 = vset.pattern.permute.xlu0 2
        %1566 = vperm.xlu0 %1565, %v1021
        %v1567 = vpop.permute.xlu0 %1566
        %1569 = vset.pattern.permute.xlu0 2
        %1570 = vperm.xlu0 %1569, %v1022
        %v1571 = vpop.permute.xlu0 %1570
        %1573 = vset.pattern.permute.xlu0 2
        %1574 = vperm.xlu0 %1573, %v1023
        %v1575 = vpop.permute.xlu0 %1574
        %1577 = vset.pattern.permute.xlu0 2
        %1578 = vperm.xlu0 %1577, %v1024
        %v1579 = vpop.permute.xlu0 %1578
        %1581 = vset.pattern.permute.xlu0 2
        %1582 = vperm.xlu0 %1581, %v1025
        %v1583 = vpop.permute.xlu0 %1582
        %1585 = vset.pattern.permute.xlu0 2
        %1586 = vperm.xlu0 %1585, %v1026
        %v1587 = vpop.permute.xlu0 %1586
        %1589 = vset.pattern.permute.xlu0 2
        %1590 = vperm.xlu0 %1589, %v1027
        %v1591 = vpop.permute.xlu0 %1590
        %1593 = vset.pattern.permute.xlu0 2
        %1594 = vperm.xlu0 %1593, %v1028
        %v1595 = vpop.permute.xlu0 %1594
        %1597 = vset.pattern.permute.xlu0 2
        %1598 = vperm.xlu0 %1597, %v1029
        %v1599 = vpop.permute.xlu0 %1598
        %1601 = vset.pattern.permute.xlu0 2
        %1602 = vperm.xlu0 %1601, %v1030
        %v1603 = vpop.permute.xlu0 %1602
        %1605 = vset.pattern.permute.xlu0 2
        %1606 = vperm.xlu0 %1605, %v1031
        %v1607 = vpop.permute.xlu0 %1606
        %v1609 = vmul.f32 %v1449, %v1483
        %v1610 = vmul.f32 %v1480, %v1487
        %v1611 = vmul.f32 %v1479, %v1491
        %v1612 = vmul.f32 %v1478, %v1495
        %v1613 = vmul.f32 %v1477, %v1499
        %v1614 = vmul.f32 %v1476, %v1503
        %v1615 = vmul.f32 %v1475, %v1507
        %v1616 = vmul.f32 %v1474, %v1511
        %v1617 = vmul.f32 %v1473, %v1515
        %v1618 = vmul.f32 %v1472, %v1519
        %v1619 = vmul.f32 %v1471, %v1523
        %v1620 = vmul.f32 %v1470, %v1527
        %v1621 = vmul.f32 %v1469, %v1531
        %v1622 = vmul.f32 %v1468, %v1535
        %v1623 = vmul.f32 %v1467, %v1539
        %v1624 = vmul.f32 %v1466, %v1543
        %v1625 = vmul.f32 %v1465, %v1547
        %v1626 = vmul.f32 %v1464, %v1551
        %v1627 = vmul.f32 %v1463, %v1555
        %v1628 = vmul.f32 %v1462, %v1559
        %v1629 = vmul.f32 %v1461, %v1563
        %v1630 = vmul.f32 %v1460, %v1567
        %v1631 = vmul.f32 %v1459, %v1571
        %v1632 = vmul.f32 %v1458, %v1575
        %v1633 = vmul.f32 %v1457, %v1579
        %v1634 = vmul.f32 %v1456, %v1583
        %v1635 = vmul.f32 %v1455, %v1587
        %v1636 = vmul.f32 %v1454, %v1591
        %v1637 = vmul.f32 %v1453, %v1595
        %v1638 = vmul.f32 %v1452, %v1599
        %v1639 = vmul.f32 %v1451, %v1603
        %v1640 = vmul.f32 %v1450, %v1607
        %v1641 = vpack.c.bf16 %v1610, %v1609
        %v1642 = vpack.c.bf16 %v1612, %v1611
        %v1643 = vpack.c.bf16 %v1614, %v1613
        %v1644 = vpack.c.bf16 %v1616, %v1615
        %v1645 = vpack.c.bf16 %v1618, %v1617
        %v1646 = vpack.c.bf16 %v1620, %v1619
        %v1647 = vpack.c.bf16 %v1622, %v1621
        %v1648 = vpack.c.bf16 %v1624, %v1623
        %v1649 = vpack.c.bf16 %v1626, %v1625
        %v1650 = vpack.c.bf16 %v1628, %v1627
        %v1651 = vpack.c.bf16 %v1630, %v1629
        %v1652 = vpack.c.bf16 %v1632, %v1631
        %v1653 = vpack.c.bf16 %v1634, %v1633
        %v1654 = vpack.c.bf16 %v1636, %v1635
        %v1655 = vpack.c.bf16 %v1638, %v1637
        %v1656 = vpack.c.bf16 %v1640, %v1639
        %1657 = vset.pattern.permute.xlu0 3
        %1658 = vperm.xlu0 %1657, %v1000
        %v1659 = vpop.permute.xlu0 %1658
        %1661 = vset.pattern.permute.xlu0 3
        %1662 = vperm.xlu0 %1661, %v1001
        %v1663 = vpop.permute.xlu0 %1662
        %1665 = vset.pattern.permute.xlu0 3
        %1666 = vperm.xlu0 %1665, %v1002
        %v1667 = vpop.permute.xlu0 %1666
        %1669 = vset.pattern.permute.xlu0 3
        %1670 = vperm.xlu0 %1669, %v1003
        %v1671 = vpop.permute.xlu0 %1670
        %1673 = vset.pattern.permute.xlu0 3
        %1674 = vperm.xlu0 %1673, %v1004
        %v1675 = vpop.permute.xlu0 %1674
        %1677 = vset.pattern.permute.xlu0 3
        %1678 = vperm.xlu0 %1677, %v1005
        %v1679 = vpop.permute.xlu0 %1678
        %1681 = vset.pattern.permute.xlu0 3
        %1682 = vperm.xlu0 %1681, %v1006
        %v1683 = vpop.permute.xlu0 %1682
        %1685 = vset.pattern.permute.xlu0 3
        %1686 = vperm.xlu0 %1685, %v1007
        %v1687 = vpop.permute.xlu0 %1686
        %1689 = vset.pattern.permute.xlu0 3
        %1690 = vperm.xlu0 %1689, %v1008
        %v1691 = vpop.permute.xlu0 %1690
        %1693 = vset.pattern.permute.xlu0 3
        %1694 = vperm.xlu0 %1693, %v1009
        %v1695 = vpop.permute.xlu0 %1694
        %1697 = vset.pattern.permute.xlu0 3
        %1698 = vperm.xlu0 %1697, %v1010
        %v1699 = vpop.permute.xlu0 %1698
        %1701 = vset.pattern.permute.xlu0 3
        %1702 = vperm.xlu0 %1701, %v1011
        %v1703 = vpop.permute.xlu0 %1702
        %1705 = vset.pattern.permute.xlu0 3
        %1706 = vperm.xlu0 %1705, %v1012
        %v1707 = vpop.permute.xlu0 %1706
        %1709 = vset.pattern.permute.xlu0 3
        %1710 = vperm.xlu0 %1709, %v1013
        %v1711 = vpop.permute.xlu0 %1710
        %1713 = vset.pattern.permute.xlu0 3
        %1714 = vperm.xlu0 %1713, %v1014
        %v1715 = vpop.permute.xlu0 %1714
        %1717 = vset.pattern.permute.xlu0 3
        %1718 = vperm.xlu0 %1717, %v1015
        %v1719 = vpop.permute.xlu0 %1718
        %1721 = vset.pattern.permute.xlu0 3
        %1722 = vperm.xlu0 %1721, %v1016
        %v1723 = vpop.permute.xlu0 %1722
        %1725 = vset.pattern.permute.xlu0 3
        %1726 = vperm.xlu0 %1725, %v1017
        %v1727 = vpop.permute.xlu0 %1726
        %1729 = vset.pattern.permute.xlu0 3
        %1730 = vperm.xlu0 %1729, %v1018
        %v1731 = vpop.permute.xlu0 %1730
        %1733 = vset.pattern.permute.xlu0 3
        %1734 = vperm.xlu0 %1733, %v1019
        %v1735 = vpop.permute.xlu0 %1734
        %1737 = vset.pattern.permute.xlu0 3
        %1738 = vperm.xlu0 %1737, %v1020
        %v1739 = vpop.permute.xlu0 %1738
        %1741 = vset.pattern.permute.xlu0 3
        %1742 = vperm.xlu0 %1741, %v1021
        %v1743 = vpop.permute.xlu0 %1742
        %1745 = vset.pattern.permute.xlu0 3
        %1746 = vperm.xlu0 %1745, %v1022
        %v1747 = vpop.permute.xlu0 %1746
        %1749 = vset.pattern.permute.xlu0 3
        %1750 = vperm.xlu0 %1749, %v1023
        %v1751 = vpop.permute.xlu0 %1750
        %1753 = vset.pattern.permute.xlu0 3
        %1754 = vperm.xlu0 %1753, %v1024
        %v1755 = vpop.permute.xlu0 %1754
        %1757 = vset.pattern.permute.xlu0 3
        %1758 = vperm.xlu0 %1757, %v1025
        %v1759 = vpop.permute.xlu0 %1758
        %1761 = vset.pattern.permute.xlu0 3
        %1762 = vperm.xlu0 %1761, %v1026
        %v1763 = vpop.permute.xlu0 %1762
        %1765 = vset.pattern.permute.xlu0 3
        %1766 = vperm.xlu0 %1765, %v1027
        %v1767 = vpop.permute.xlu0 %1766
        %1769 = vset.pattern.permute.xlu0 3
        %1770 = vperm.xlu0 %1769, %v1028
        %v1771 = vpop.permute.xlu0 %1770
        %1773 = vset.pattern.permute.xlu0 3
        %1774 = vperm.xlu0 %1773, %v1029
        %v1775 = vpop.permute.xlu0 %1774
        %1777 = vset.pattern.permute.xlu0 3
        %1778 = vperm.xlu0 %1777, %v1030
        %v1779 = vpop.permute.xlu0 %1778
        %1781 = vset.pattern.permute.xlu0 3
        %1782 = vperm.xlu0 %1781, %v1031
        %v1783 = vpop.permute.xlu0 %1782
        %v1785 = vmul.f32 %v999, %v1659
        %v1786 = vmul.f32 %v998, %v1663
        %v1787 = vmul.f32 %v997, %v1667
        %v1788 = vmul.f32 %v996, %v1671
        %v1789 = vmul.f32 %v995, %v1675
        %v1790 = vmul.f32 %v994, %v1679
        %v1791 = vmul.f32 %v993, %v1683
        %v1792 = vmul.f32 %v992, %v1687
        %v1793 = vmul.f32 %v991, %v1691
        %v1794 = vmul.f32 %v990, %v1695
        %v1795 = vmul.f32 %v989, %v1699
        %v1796 = vmul.f32 %v988, %v1703
        %v1797 = vmul.f32 %v987, %v1707
        %v1798 = vmul.f32 %v986, %v1711
        %v1799 = vmul.f32 %v985, %v1715
        %v1800 = vmul.f32 %v984, %v1719
        %v1801 = vmul.f32 %v983, %v1723
        %v1802 = vmul.f32 %v982, %v1727
        %v1803 = vmul.f32 %v981, %v1731
        %v1804 = vmul.f32 %v980, %v1735
        %v1805 = vmul.f32 %v979, %v1739
        %v1806 = vmul.f32 %v978, %v1743
        %v1807 = vmul.f32 %v977, %v1747
        %v1808 = vmul.f32 %v976, %v1751
        %v1809 = vmul.f32 %v975, %v1755
        %v1810 = vmul.f32 %v974, %v1759
        %v1811 = vmul.f32 %v973, %v1763
        %v1812 = vmul.f32 %v972, %v1767
        %v1813 = vmul.f32 %v971, %v1771
        %v1814 = vmul.f32 %v970, %v1775
        %v1815 = vmul.f32 %v969, %v1779
        %v1816 = vmul.f32 %v968, %v1783
        %v1817 = vpack.c.bf16 %v1786, %v1785
        %v1818 = vpack.c.bf16 %v1788, %v1787
        %v1819 = vpack.c.bf16 %v1790, %v1789
        %v1820 = vpack.c.bf16 %v1792, %v1791
        %v1821 = vpack.c.bf16 %v1794, %v1793
        %v1822 = vpack.c.bf16 %v1796, %v1795
        %v1823 = vpack.c.bf16 %v1798, %v1797
        %v1824 = vpack.c.bf16 %v1800, %v1799
        %v1825 = vpack.c.bf16 %v1802, %v1801
        %v1826 = vpack.c.bf16 %v1804, %v1803
        %v1827 = vpack.c.bf16 %v1806, %v1805
        %v1828 = vpack.c.bf16 %v1808, %v1807
        %v1829 = vpack.c.bf16 %v1810, %v1809
        %v1830 = vpack.c.bf16 %v1812, %v1811
        %v1831 = vpack.c.bf16 %v1814, %v1813
        %v1832 = vpack.c.bf16 %v1816, %v1815
        %v1833 = vpack.c.bf16 %v901, %v900
        %v1834 = vpack.c.bf16 %v903, %v902
        %v1835 = vpack.c.bf16 %v905, %v904
        %v1836 = vpack.c.bf16 %v907, %v906
        %v1837 = vpack.c.bf16 %v909, %v908
        %v1838 = vpack.c.bf16 %v911, %v910
        %v1839 = vpack.c.bf16 %v913, %v912
        %v1840 = vpack.c.bf16 %v915, %v914
        %v1841 = vpack.c.bf16 %v917, %v916
        %v1842 = vpack.c.bf16 %v919, %v918
        %v1843 = vpack.c.bf16 %v921, %v920
        %v1844 = vpack.c.bf16 %v923, %v922
        %v1845 = vpack.c.bf16 %v925, %v924
        %v1846 = vpack.c.bf16 %v927, %v926
        %v1847 = vpack.c.bf16 %v929, %v928
        %v1848 = vpack.c.bf16 %v931, %v930
        %1849 = vset.pattern.permute.xlu0 5
        %1850 = vperm.xlu0 %1849, %v1000
        %v1851 = vpop.permute.xlu0 %1850
        %1853 = vset.pattern.permute.xlu0 5
        %1854 = vperm.xlu0 %1853, %v1001
        %v1855 = vpop.permute.xlu0 %1854
        %1857 = vset.pattern.permute.xlu0 5
        %1858 = vperm.xlu0 %1857, %v1002
        %v1859 = vpop.permute.xlu0 %1858
        %1861 = vset.pattern.permute.xlu0 5
        %1862 = vperm.xlu0 %1861, %v1003
        %v1863 = vpop.permute.xlu0 %1862
        %1865 = vset.pattern.permute.xlu0 5
        %1866 = vperm.xlu0 %1865, %v1004
        %v1867 = vpop.permute.xlu0 %1866
        %1869 = vset.pattern.permute.xlu0 5
        %1870 = vperm.xlu0 %1869, %v1005
        %v1871 = vpop.permute.xlu0 %1870
        %1873 = vset.pattern.permute.xlu0 5
        %1874 = vperm.xlu0 %1873, %v1006
        %v1875 = vpop.permute.xlu0 %1874
        %1877 = vset.pattern.permute.xlu0 5
        %1878 = vperm.xlu0 %1877, %v1007
        %v1879 = vpop.permute.xlu0 %1878
        %1881 = vset.pattern.permute.xlu0 5
        %1882 = vperm.xlu0 %1881, %v1008
        %v1883 = vpop.permute.xlu0 %1882
        %1885 = vset.pattern.permute.xlu0 5
        %1886 = vperm.xlu0 %1885, %v1009
        %v1887 = vpop.permute.xlu0 %1886
        %1889 = vset.pattern.permute.xlu0 5
        %1890 = vperm.xlu0 %1889, %v1010
        %v1891 = vpop.permute.xlu0 %1890
        %1893 = vset.pattern.permute.xlu0 5
        %1894 = vperm.xlu0 %1893, %v1011
        %v1895 = vpop.permute.xlu0 %1894
        %1897 = vset.pattern.permute.xlu0 5
        %1898 = vperm.xlu0 %1897, %v1012
        %v1899 = vpop.permute.xlu0 %1898
        %1901 = vset.pattern.permute.xlu0 5
        %1902 = vperm.xlu0 %1901, %v1013
        %v1903 = vpop.permute.xlu0 %1902
        %1905 = vset.pattern.permute.xlu0 5
        %1906 = vperm.xlu0 %1905, %v1014
        %v1907 = vpop.permute.xlu0 %1906
        %1909 = vset.pattern.permute.xlu0 5
        %1910 = vperm.xlu0 %1909, %v1015
        %v1911 = vpop.permute.xlu0 %1910
        %1913 = vset.pattern.permute.xlu0 5
        %1914 = vperm.xlu0 %1913, %v1016
        %v1915 = vpop.permute.xlu0 %1914
        %1917 = vset.pattern.permute.xlu0 5
        %1918 = vperm.xlu0 %1917, %v1017
        %v1919 = vpop.permute.xlu0 %1918
        %1921 = vset.pattern.permute.xlu0 5
        %1922 = vperm.xlu0 %1921, %v1018
        %v1923 = vpop.permute.xlu0 %1922
        %1925 = vset.pattern.permute.xlu0 5
        %1926 = vperm.xlu0 %1925, %v1019
        %v1927 = vpop.permute.xlu0 %1926
        %1929 = vset.pattern.permute.xlu0 5
        %1930 = vperm.xlu0 %1929, %v1020
        %v1931 = vpop.permute.xlu0 %1930
        %1933 = vset.pattern.permute.xlu0 5
        %1934 = vperm.xlu0 %1933, %v1021
        %v1935 = vpop.permute.xlu0 %1934
        %1937 = vset.pattern.permute.xlu0 5
        %1938 = vperm.xlu0 %1937, %v1022
        %v1939 = vpop.permute.xlu0 %1938
        %1941 = vset.pattern.permute.xlu0 5
        %1942 = vperm.xlu0 %1941, %v1023
        %v1943 = vpop.permute.xlu0 %1942
        %1945 = vset.pattern.permute.xlu0 5
        %1946 = vperm.xlu0 %1945, %v1024
        %v1947 = vpop.permute.xlu0 %1946
        %1949 = vset.pattern.permute.xlu0 5
        %1950 = vperm.xlu0 %1949, %v1025
        %v1951 = vpop.permute.xlu0 %1950
        %1953 = vset.pattern.permute.xlu0 5
        %1954 = vperm.xlu0 %1953, %v1026
        %v1955 = vpop.permute.xlu0 %1954
        %1957 = vset.pattern.permute.xlu0 5
        %1958 = vperm.xlu0 %1957, %v1027
        %v1959 = vpop.permute.xlu0 %1958
        %1961 = vset.pattern.permute.xlu0 5
        %1962 = vperm.xlu0 %1961, %v1028
        %v1963 = vpop.permute.xlu0 %1962
        %1965 = vset.pattern.permute.xlu0 5
        %1966 = vperm.xlu0 %1965, %v1029
        %v1967 = vpop.permute.xlu0 %1966
        %1969 = vset.pattern.permute.xlu0 5
        %1970 = vperm.xlu0 %1969, %v1030
        %v1971 = vpop.permute.xlu0 %1970
        %1973 = vset.pattern.permute.xlu0 5
        %1974 = vperm.xlu0 %1973, %v1031
        %v1975 = vpop.permute.xlu0 %1974
        %v1977 = vmul.f32 %v1479, %v1851
        %v1978 = vmul.f32 %v1478, %v1855
        %v1979 = vmul.f32 %v1477, %v1859
        %v1980 = vmul.f32 %v1476, %v1863
        %v1981 = vmul.f32 %v1475, %v1867
        %v1982 = vmul.f32 %v1474, %v1871
        %v1983 = vmul.f32 %v1473, %v1875
        %v1984 = vmul.f32 %v1472, %v1879
        %v1985 = vmul.f32 %v1471, %v1883
        %v1986 = vmul.f32 %v1470, %v1887
        %v1987 = vmul.f32 %v1469, %v1891
        %v1988 = vmul.f32 %v1468, %v1895
        %v1989 = vmul.f32 %v1467, %v1899
        %v1990 = vmul.f32 %v1466, %v1903
        %v1991 = vmul.f32 %v1465, %v1907
        %v1992 = vmul.f32 %v1464, %v1911
        %v1993 = vmul.f32 %v1463, %v1915
        %v1994 = vmul.f32 %v1462, %v1919
        %v1995 = vmul.f32 %v1461, %v1923
        %v1996 = vmul.f32 %v1460, %v1927
        %v1997 = vmul.f32 %v1459, %v1931
        %v1998 = vmul.f32 %v1458, %v1935
        %v1999 = vmul.f32 %v1457, %v1939
        %v2000 = vmul.f32 %v1456, %v1943
        %v2001 = vmul.f32 %v1455, %v1947
        %v2002 = vmul.f32 %v1454, %v1951
        %v2003 = vmul.f32 %v1453, %v1955
        %v2004 = vmul.f32 %v1452, %v1959
        %v2005 = vmul.f32 %v1451, %v1963
        %v2006 = vmul.f32 %v1450, %v1967
        %v2007 = vmul.f32 %v1449, %v1971
        %v2008 = vmul.f32 %v1480, %v1975
        %v2009 = vpack.c.bf16 %v1978, %v1977
        %v2010 = vpack.c.bf16 %v1980, %v1979
        %v2011 = vpack.c.bf16 %v1982, %v1981
        %v2012 = vpack.c.bf16 %v1984, %v1983
        %v2013 = vpack.c.bf16 %v1986, %v1985
        %v2014 = vpack.c.bf16 %v1988, %v1987
        %v2015 = vpack.c.bf16 %v1990, %v1989
        %v2016 = vpack.c.bf16 %v1992, %v1991
        %v2017 = vpack.c.bf16 %v1994, %v1993
        %v2018 = vpack.c.bf16 %v1996, %v1995
        %v2019 = vpack.c.bf16 %v1998, %v1997
        %v2020 = vpack.c.bf16 %v2000, %v1999
        %v2021 = vpack.c.bf16 %v2002, %v2001
        %v2022 = vpack.c.bf16 %v2004, %v2003
        %v2023 = vpack.c.bf16 %v2006, %v2005
        %v2024 = vpack.c.bf16 %v2008, %v2007
        %2025 = vset.pattern.permute.xlu0 6
        %2026 = vperm.xlu0 %2025, %v1000
        %v2027 = vpop.permute.xlu0 %2026
        %2029 = vset.pattern.permute.xlu0 6
        %2030 = vperm.xlu0 %2029, %v1001
        %v2031 = vpop.permute.xlu0 %2030
        %2033 = vset.pattern.permute.xlu0 6
        %2034 = vperm.xlu0 %2033, %v1002
        %v2035 = vpop.permute.xlu0 %2034
        %2037 = vset.pattern.permute.xlu0 6
        %2038 = vperm.xlu0 %2037, %v1003
        %v2039 = vpop.permute.xlu0 %2038
        %2041 = vset.pattern.permute.xlu0 6
        %2042 = vperm.xlu0 %2041, %v1004
        %v2043 = vpop.permute.xlu0 %2042
        %2045 = vset.pattern.permute.xlu0 6
        %2046 = vperm.xlu0 %2045, %v1005
        %v2047 = vpop.permute.xlu0 %2046
        %2049 = vset.pattern.permute.xlu0 6
        %2050 = vperm.xlu0 %2049, %v1006
        %v2051 = vpop.permute.xlu0 %2050
        %2053 = vset.pattern.permute.xlu0 6
        %2054 = vperm.xlu0 %2053, %v1007
        %v2055 = vpop.permute.xlu0 %2054
        %2057 = vset.pattern.permute.xlu0 6
        %2058 = vperm.xlu0 %2057, %v1008
        %v2059 = vpop.permute.xlu0 %2058
        %2061 = vset.pattern.permute.xlu0 6
        %2062 = vperm.xlu0 %2061, %v1009
        %v2063 = vpop.permute.xlu0 %2062
        %2065 = vset.pattern.permute.xlu0 6
        %2066 = vperm.xlu0 %2065, %v1010
        %v2067 = vpop.permute.xlu0 %2066
        %2069 = vset.pattern.permute.xlu0 6
        %2070 = vperm.xlu0 %2069, %v1011
        %v2071 = vpop.permute.xlu0 %2070
        %2073 = vset.pattern.permute.xlu0 6
        %2074 = vperm.xlu0 %2073, %v1012
        %v2075 = vpop.permute.xlu0 %2074
        %2077 = vset.pattern.permute.xlu0 6
        %2078 = vperm.xlu0 %2077, %v1013
        %v2079 = vpop.permute.xlu0 %2078
        %2081 = vset.pattern.permute.xlu0 6
        %2082 = vperm.xlu0 %2081, %v1014
        %v2083 = vpop.permute.xlu0 %2082
        %2085 = vset.pattern.permute.xlu0 6
        %2086 = vperm.xlu0 %2085, %v1015
        %v2087 = vpop.permute.xlu0 %2086
        %2089 = vset.pattern.permute.xlu0 6
        %2090 = vperm.xlu0 %2089, %v1016
        %v2091 = vpop.permute.xlu0 %2090
        %2093 = vset.pattern.permute.xlu0 6
        %2094 = vperm.xlu0 %2093, %v1017
        %v2095 = vpop.permute.xlu0 %2094
        %2097 = vset.pattern.permute.xlu0 6
        %2098 = vperm.xlu0 %2097, %v1018
        %v2099 = vpop.permute.xlu0 %2098
        %2101 = vset.pattern.permute.xlu0 6
        %2102 = vperm.xlu0 %2101, %v1019
        %v2103 = vpop.permute.xlu0 %2102
        %2105 = vset.pattern.permute.xlu0 6
        %2106 = vperm.xlu0 %2105, %v1020
        %v2107 = vpop.permute.xlu0 %2106
        %2109 = vset.pattern.permute.xlu0 6
        %2110 = vperm.xlu0 %2109, %v1021
        %v2111 = vpop.permute.xlu0 %2110
        %2113 = vset.pattern.permute.xlu0 6
        %2114 = vperm.xlu0 %2113, %v1022
        %v2115 = vpop.permute.xlu0 %2114
        %2117 = vset.pattern.permute.xlu0 6
        %2118 = vperm.xlu0 %2117, %v1023
        %v2119 = vpop.permute.xlu0 %2118
        %2121 = vset.pattern.permute.xlu0 6
        %2122 = vperm.xlu0 %2121, %v1024
        %v2123 = vpop.permute.xlu0 %2122
        %2125 = vset.pattern.permute.xlu0 6
        %2126 = vperm.xlu0 %2125, %v1025
        %v2127 = vpop.permute.xlu0 %2126
        %2129 = vset.pattern.permute.xlu0 6
        %2130 = vperm.xlu0 %2129, %v1026
        %v2131 = vpop.permute.xlu0 %2130
        %2133 = vset.pattern.permute.xlu0 6
        %2134 = vperm.xlu0 %2133, %v1027
        %v2135 = vpop.permute.xlu0 %2134
        %2137 = vset.pattern.permute.xlu0 6
        %2138 = vperm.xlu0 %2137, %v1028
        %v2139 = vpop.permute.xlu0 %2138
        %2141 = vset.pattern.permute.xlu0 6
        %2142 = vperm.xlu0 %2141, %v1029
        %v2143 = vpop.permute.xlu0 %2142
        %2145 = vset.pattern.permute.xlu0 6
        %2146 = vperm.xlu0 %2145, %v1030
        %v2147 = vpop.permute.xlu0 %2146
        %2149 = vset.pattern.permute.xlu0 6
        %2150 = vperm.xlu0 %2149, %v1031
        %v2151 = vpop.permute.xlu0 %2150
        %v2153 = vmul.f32 %v997, %v2027
        %v2154 = vmul.f32 %v996, %v2031
        %v2155 = vmul.f32 %v995, %v2035
        %v2156 = vmul.f32 %v994, %v2039
        %v2157 = vmul.f32 %v993, %v2043
        %v2158 = vmul.f32 %v992, %v2047
        %v2159 = vmul.f32 %v991, %v2051
        %v2160 = vmul.f32 %v990, %v2055
        %v2161 = vmul.f32 %v989, %v2059
        %v2162 = vmul.f32 %v988, %v2063
        %v2163 = vmul.f32 %v987, %v2067
        %v2164 = vmul.f32 %v986, %v2071
        %v2165 = vmul.f32 %v985, %v2075
        %v2166 = vmul.f32 %v984, %v2079
        %v2167 = vmul.f32 %v983, %v2083
        %v2168 = vmul.f32 %v982, %v2087
        %v2169 = vmul.f32 %v981, %v2091
        %v2170 = vmul.f32 %v980, %v2095
        %v2171 = vmul.f32 %v979, %v2099
        %v2172 = vmul.f32 %v978, %v2103
        %v2173 = vmul.f32 %v977, %v2107
        %v2174 = vmul.f32 %v976, %v2111
        %v2175 = vmul.f32 %v975, %v2115
        %v2176 = vmul.f32 %v974, %v2119
        %v2177 = vmul.f32 %v973, %v2123
        %v2178 = vmul.f32 %v972, %v2127
        %v2179 = vmul.f32 %v971, %v2131
        %v2180 = vmul.f32 %v970, %v2135
        %v2181 = vmul.f32 %v969, %v2139
        %v2182 = vmul.f32 %v968, %v2143
        %v2183 = vmul.f32 %v999, %v2147
        %v2184 = vmul.f32 %v998, %v2151
        %v2185 = vpack.c.bf16 %v2154, %v2153
        %v2186 = vpack.c.bf16 %v2156, %v2155
        %v2187 = vpack.c.bf16 %v2158, %v2157
        %v2188 = vpack.c.bf16 %v2160, %v2159
        %v2189 = vpack.c.bf16 %v2162, %v2161
        %v2190 = vpack.c.bf16 %v2164, %v2163
        %v2191 = vpack.c.bf16 %v2166, %v2165
        %v2192 = vpack.c.bf16 %v2168, %v2167
        %v2193 = vpack.c.bf16 %v2170, %v2169
        %v2194 = vpack.c.bf16 %v2172, %v2171
        %v2195 = vpack.c.bf16 %v2174, %v2173
        %v2196 = vpack.c.bf16 %v2176, %v2175
        %v2197 = vpack.c.bf16 %v2178, %v2177
        %v2198 = vpack.c.bf16 %v2180, %v2179
        %v2199 = vpack.c.bf16 %v2182, %v2181
        %v2200 = vpack.c.bf16 %v2184, %v2183
        %2201 = vset.pattern.permute.xlu0 7
        %2202 = vperm.xlu0 %2201, %v1000
        %v2203 = vpop.permute.xlu0 %2202
        %2205 = vset.pattern.permute.xlu0 7
        %2206 = vperm.xlu0 %2205, %v1001
        %v2207 = vpop.permute.xlu0 %2206
        %2209 = vset.pattern.permute.xlu0 7
        %2210 = vperm.xlu0 %2209, %v1002
        %v2211 = vpop.permute.xlu0 %2210
        %2213 = vset.pattern.permute.xlu0 7
        %2214 = vperm.xlu0 %2213, %v1003
        %v2215 = vpop.permute.xlu0 %2214
        %2217 = vset.pattern.permute.xlu0 7
        %2218 = vperm.xlu0 %2217, %v1004
        %v2219 = vpop.permute.xlu0 %2218
        %2221 = vset.pattern.permute.xlu0 7
        %2222 = vperm.xlu0 %2221, %v1005
        %v2223 = vpop.permute.xlu0 %2222
        %2225 = vset.pattern.permute.xlu0 7
        %2226 = vperm.xlu0 %2225, %v1006
        %v2227 = vpop.permute.xlu0 %2226
        %2229 = vset.pattern.permute.xlu0 7
        %2230 = vperm.xlu0 %2229, %v1007
        %v2231 = vpop.permute.xlu0 %2230
        %2233 = vset.pattern.permute.xlu0 7
        %2234 = vperm.xlu0 %2233, %v1008
        %v2235 = vpop.permute.xlu0 %2234
        %2237 = vset.pattern.permute.xlu0 7
        %2238 = vperm.xlu0 %2237, %v1009
        %v2239 = vpop.permute.xlu0 %2238
        %2241 = vset.pattern.permute.xlu0 7
        %2242 = vperm.xlu0 %2241, %v1010
        %v2243 = vpop.permute.xlu0 %2242
        %2245 = vset.pattern.permute.xlu0 7
        %2246 = vperm.xlu0 %2245, %v1011
        %v2247 = vpop.permute.xlu0 %2246
        %2249 = vset.pattern.permute.xlu0 7
        %2250 = vperm.xlu0 %2249, %v1012
        %v2251 = vpop.permute.xlu0 %2250
        %2253 = vset.pattern.permute.xlu0 7
        %2254 = vperm.xlu0 %2253, %v1013
        %v2255 = vpop.permute.xlu0 %2254
        %2257 = vset.pattern.permute.xlu0 7
        %2258 = vperm.xlu0 %2257, %v1014
        %v2259 = vpop.permute.xlu0 %2258
        %2261 = vset.pattern.permute.xlu0 7
        %2262 = vperm.xlu0 %2261, %v1015
        %v2263 = vpop.permute.xlu0 %2262
        %2265 = vset.pattern.permute.xlu0 7
        %2266 = vperm.xlu0 %2265, %v1016
        %v2267 = vpop.permute.xlu0 %2266
        %2269 = vset.pattern.permute.xlu0 7
        %2270 = vperm.xlu0 %2269, %v1017
        %v2271 = vpop.permute.xlu0 %2270
        %2273 = vset.pattern.permute.xlu0 7
        %2274 = vperm.xlu0 %2273, %v1018
        %v2275 = vpop.permute.xlu0 %2274
        %2277 = vset.pattern.permute.xlu0 7
        %2278 = vperm.xlu0 %2277, %v1019
        %v2279 = vpop.permute.xlu0 %2278
        %2281 = vset.pattern.permute.xlu0 7
        %2282 = vperm.xlu0 %2281, %v1020
        %v2283 = vpop.permute.xlu0 %2282
        %2285 = vset.pattern.permute.xlu0 7
        %2286 = vperm.xlu0 %2285, %v1021
        %v2287 = vpop.permute.xlu0 %2286
        %2289 = vset.pattern.permute.xlu0 7
        %2290 = vperm.xlu0 %2289, %v1022
        %v2291 = vpop.permute.xlu0 %2290
        %2293 = vset.pattern.permute.xlu0 7
        %2294 = vperm.xlu0 %2293, %v1023
        %v2295 = vpop.permute.xlu0 %2294
        %2297 = vset.pattern.permute.xlu0 7
        %2298 = vperm.xlu0 %2297, %v1024
        %v2299 = vpop.permute.xlu0 %2298
        %2301 = vset.pattern.permute.xlu0 7
        %2302 = vperm.xlu0 %2301, %v1025
        %v2303 = vpop.permute.xlu0 %2302
        %2305 = vset.pattern.permute.xlu0 7
        %2306 = vperm.xlu0 %2305, %v1026
        %v2307 = vpop.permute.xlu0 %2306
        %2309 = vset.pattern.permute.xlu0 7
        %2310 = vperm.xlu0 %2309, %v1027
        %v2311 = vpop.permute.xlu0 %2310
        %2313 = vset.pattern.permute.xlu0 7
        %2314 = vperm.xlu0 %2313, %v1028
        %v2315 = vpop.permute.xlu0 %2314
        %2317 = vset.pattern.permute.xlu0 7
        %2318 = vperm.xlu0 %2317, %v1029
        %v2319 = vpop.permute.xlu0 %2318
        %2321 = vset.pattern.permute.xlu0 7
        %2322 = vperm.xlu0 %2321, %v1030
        %v2323 = vpop.permute.xlu0 %2322
        %2325 = vset.pattern.permute.xlu0 7
        %2326 = vperm.xlu0 %2325, %v1031
        %v2327 = vpop.permute.xlu0 %2326
        %v2329 = vmul.f32 %v902, %v2203
        %v2330 = vmul.f32 %v903, %v2207
        %v2331 = vmul.f32 %v904, %v2211
        %v2332 = vmul.f32 %v905, %v2215
        %v2333 = vmul.f32 %v906, %v2219
        %v2334 = vmul.f32 %v907, %v2223
        %v2335 = vmul.f32 %v908, %v2227
        %v2336 = vmul.f32 %v909, %v2231
        %v2337 = vmul.f32 %v910, %v2235
        %v2338 = vmul.f32 %v911, %v2239
        %v2339 = vmul.f32 %v912, %v2243
        %v2340 = vmul.f32 %v913, %v2247
        %v2341 = vmul.f32 %v914, %v2251
        %v2342 = vmul.f32 %v915, %v2255
        %v2343 = vmul.f32 %v916, %v2259
        %v2344 = vmul.f32 %v917, %v2263
        %v2345 = vmul.f32 %v918, %v2267
        %v2346 = vmul.f32 %v919, %v2271
        %v2347 = vmul.f32 %v920, %v2275
        %v2348 = vmul.f32 %v921, %v2279
        %v2349 = vmul.f32 %v922, %v2283
        %v2350 = vmul.f32 %v923, %v2287
        %v2351 = vmul.f32 %v924, %v2291
        %v2352 = vmul.f32 %v925, %v2295
        %v2353 = vmul.f32 %v926, %v2299
        %v2354 = vmul.f32 %v927, %v2303
        %v2355 = vmul.f32 %v928, %v2307
        %v2356 = vmul.f32 %v929, %v2311
        %v2357 = vmul.f32 %v930, %v2315
        %v2358 = vmul.f32 %v931, %v2319
        %v2359 = vmul.f32 %v900, %v2323
        %v2360 = vmul.f32 %v901, %v2327
        %v2361 = vpack.c.bf16 %v2330, %v2329
        %v2362 = vpack.c.bf16 %v2332, %v2331
        %v2363 = vpack.c.bf16 %v2334, %v2333
        %v2364 = vpack.c.bf16 %v2336, %v2335
        %v2365 = vpack.c.bf16 %v2338, %v2337
        %v2366 = vpack.c.bf16 %v2340, %v2339
        %v2367 = vpack.c.bf16 %v2342, %v2341
        %v2368 = vpack.c.bf16 %v2344, %v2343
        %v2369 = vpack.c.bf16 %v2346, %v2345
        %v2370 = vpack.c.bf16 %v2348, %v2347
        %v2371 = vpack.c.bf16 %v2350, %v2349
        %v2372 = vpack.c.bf16 %v2352, %v2351
        %v2373 = vpack.c.bf16 %v2354, %v2353
        %v2374 = vpack.c.bf16 %v2356, %v2355
        %v2375 = vpack.c.bf16 %v2358, %v2357
        %v2376 = vpack.c.bf16 %v2360, %v2359
        %2377 = vset.pattern.permute.xlu0 8
        %2378 = vperm.xlu0 %2377, %v1000
        %v2379 = vpop.permute.xlu0 %2378
        %2381 = vset.pattern.permute.xlu0 8
        %2382 = vperm.xlu0 %2381, %v1001
        %v2383 = vpop.permute.xlu0 %2382
        %2385 = vset.pattern.permute.xlu0 8
        %2386 = vperm.xlu0 %2385, %v1002
        %v2387 = vpop.permute.xlu0 %2386
        %2389 = vset.pattern.permute.xlu0 8
        %2390 = vperm.xlu0 %2389, %v1003
        %v2391 = vpop.permute.xlu0 %2390
        %2393 = vset.pattern.permute.xlu0 8
        %2394 = vperm.xlu0 %2393, %v1004
        %v2395 = vpop.permute.xlu0 %2394
        %2397 = vset.pattern.permute.xlu0 8
        %2398 = vperm.xlu0 %2397, %v1005
        %v2399 = vpop.permute.xlu0 %2398
        %2401 = vset.pattern.permute.xlu0 8
        %2402 = vperm.xlu0 %2401, %v1006
        %v2403 = vpop.permute.xlu0 %2402
        %2405 = vset.pattern.permute.xlu0 8
        %2406 = vperm.xlu0 %2405, %v1007
        %v2407 = vpop.permute.xlu0 %2406
        %2409 = vset.pattern.permute.xlu0 8
        %2410 = vperm.xlu0 %2409, %v1008
        %v2411 = vpop.permute.xlu0 %2410
        %2413 = vset.pattern.permute.xlu0 8
        %2414 = vperm.xlu0 %2413, %v1009
        %v2415 = vpop.permute.xlu0 %2414
        %2417 = vset.pattern.permute.xlu0 8
        %2418 = vperm.xlu0 %2417, %v1010
        %v2419 = vpop.permute.xlu0 %2418
        %2421 = vset.pattern.permute.xlu0 8
        %2422 = vperm.xlu0 %2421, %v1011
        %v2423 = vpop.permute.xlu0 %2422
        %2425 = vset.pattern.permute.xlu0 8
        %2426 = vperm.xlu0 %2425, %v1012
        %v2427 = vpop.permute.xlu0 %2426
        %2429 = vset.pattern.permute.xlu0 8
        %2430 = vperm.xlu0 %2429, %v1013
        %v2431 = vpop.permute.xlu0 %2430
        %2433 = vset.pattern.permute.xlu0 8
        %2434 = vperm.xlu0 %2433, %v1014
        %v2435 = vpop.permute.xlu0 %2434
        %2437 = vset.pattern.permute.xlu0 8
        %2438 = vperm.xlu0 %2437, %v1015
        %v2439 = vpop.permute.xlu0 %2438
        %2441 = vset.pattern.permute.xlu0 8
        %2442 = vperm.xlu0 %2441, %v1016
        %v2443 = vpop.permute.xlu0 %2442
        %2445 = vset.pattern.permute.xlu0 8
        %2446 = vperm.xlu0 %2445, %v1017
        %v2447 = vpop.permute.xlu0 %2446
        %2449 = vset.pattern.permute.xlu0 8
        %2450 = vperm.xlu0 %2449, %v1018
        %v2451 = vpop.permute.xlu0 %2450
        %2453 = vset.pattern.permute.xlu0 8
        %2454 = vperm.xlu0 %2453, %v1019
        %v2455 = vpop.permute.xlu0 %2454
        %2457 = vset.pattern.permute.xlu0 8
        %2458 = vperm.xlu0 %2457, %v1020
        %v2459 = vpop.permute.xlu0 %2458
        %2461 = vset.pattern.permute.xlu0 8
        %2462 = vperm.xlu0 %2461, %v1021
        %v2463 = vpop.permute.xlu0 %2462
        %2465 = vset.pattern.permute.xlu0 8
        %2466 = vperm.xlu0 %2465, %v1022
        %v2467 = vpop.permute.xlu0 %2466
        %2469 = vset.pattern.permute.xlu0 8
        %2470 = vperm.xlu0 %2469, %v1023
        %v2471 = vpop.permute.xlu0 %2470
        %2473 = vset.pattern.permute.xlu0 8
        %2474 = vperm.xlu0 %2473, %v1024
        %v2475 = vpop.permute.xlu0 %2474
        %2477 = vset.pattern.permute.xlu0 8
        %2478 = vperm.xlu0 %2477, %v1025
        %v2479 = vpop.permute.xlu0 %2478
        %2481 = vset.pattern.permute.xlu0 8
        %2482 = vperm.xlu0 %2481, %v1026
        %v2483 = vpop.permute.xlu0 %2482
        %2485 = vset.pattern.permute.xlu0 8
        %2486 = vperm.xlu0 %2485, %v1027
        %v2487 = vpop.permute.xlu0 %2486
        %2489 = vset.pattern.permute.xlu0 8
        %2490 = vperm.xlu0 %2489, %v1028
        %v2491 = vpop.permute.xlu0 %2490
        %2493 = vset.pattern.permute.xlu0 8
        %2494 = vperm.xlu0 %2493, %v1029
        %v2495 = vpop.permute.xlu0 %2494
        %2497 = vset.pattern.permute.xlu0 8
        %2498 = vperm.xlu0 %2497, %v1030
        %v2499 = vpop.permute.xlu0 %2498
        %2501 = vset.pattern.permute.xlu0 8
        %2502 = vperm.xlu0 %2501, %v1031
        %v2503 = vpop.permute.xlu0 %2502
        %v2505 = vmul.f32 %v1477, %v2379
        %v2506 = vmul.f32 %v1476, %v2383
        %v2507 = vmul.f32 %v1475, %v2387
        %v2508 = vmul.f32 %v1474, %v2391
        %v2509 = vmul.f32 %v1473, %v2395
        %v2510 = vmul.f32 %v1472, %v2399
        %v2511 = vmul.f32 %v1471, %v2403
        %v2512 = vmul.f32 %v1470, %v2407
        %v2513 = vmul.f32 %v1469, %v2411
        %v2514 = vmul.f32 %v1468, %v2415
        %v2515 = vmul.f32 %v1467, %v2419
        %v2516 = vmul.f32 %v1466, %v2423
        %v2517 = vmul.f32 %v1465, %v2427
        %v2518 = vmul.f32 %v1464, %v2431
        %v2519 = vmul.f32 %v1463, %v2435
        %v2520 = vmul.f32 %v1462, %v2439
        %v2521 = vmul.f32 %v1461, %v2443
        %v2522 = vmul.f32 %v1460, %v2447
        %v2523 = vmul.f32 %v1459, %v2451
        %v2524 = vmul.f32 %v1458, %v2455
        %v2525 = vmul.f32 %v1457, %v2459
        %v2526 = vmul.f32 %v1456, %v2463
        %v2527 = vmul.f32 %v1455, %v2467
        %v2528 = vmul.f32 %v1454, %v2471
        %v2529 = vmul.f32 %v1453, %v2475
        %v2530 = vmul.f32 %v1452, %v2479
        %v2531 = vmul.f32 %v1451, %v2483
        %v2532 = vmul.f32 %v1450, %v2487
        %v2533 = vmul.f32 %v1449, %v2491
        %v2534 = vmul.f32 %v1480, %v2495
        %v2535 = vmul.f32 %v1479, %v2499
        %v2536 = vmul.f32 %v1478, %v2503
        %v2537 = vpack.c.bf16 %v2506, %v2505
        %v2538 = vpack.c.bf16 %v2508, %v2507
        %v2539 = vpack.c.bf16 %v2510, %v2509
        %v2540 = vpack.c.bf16 %v2512, %v2511
        %v2541 = vpack.c.bf16 %v2514, %v2513
        %v2542 = vpack.c.bf16 %v2516, %v2515
        %v2543 = vpack.c.bf16 %v2518, %v2517
        %v2544 = vpack.c.bf16 %v2520, %v2519
        %v2545 = vpack.c.bf16 %v2522, %v2521
        %v2546 = vpack.c.bf16 %v2524, %v2523
        %v2547 = vpack.c.bf16 %v2526, %v2525
        %v2548 = vpack.c.bf16 %v2528, %v2527
        %v2549 = vpack.c.bf16 %v2530, %v2529
        %v2550 = vpack.c.bf16 %v2532, %v2531
        %v2551 = vpack.c.bf16 %v2534, %v2533
        %v2552 = vpack.c.bf16 %v2536, %v2535
        %2569 = vrot.lane.b32.xlu0 %v1400, 32
        %v2570 = vpop.permute.xlu0 %2569
        %2571 = vrot.lane.b32.xlu0 %v1401, 32
        %v2572 = vpop.permute.xlu0 %2571
        %2573 = vrot.lane.b32.xlu0 %v1402, 32
        %v2574 = vpop.permute.xlu0 %2573
        %2575 = vrot.lane.b32.xlu0 %v1403, 32
        %v2576 = vpop.permute.xlu0 %2575
        %2577 = vrot.lane.b32.xlu0 %v1404, 32
        %v2578 = vpop.permute.xlu0 %2577
        %2579 = vrot.lane.b32.xlu0 %v1405, 32
        %v2580 = vpop.permute.xlu0 %2579
        %2581 = vrot.lane.b32.xlu0 %v1406, 32
        %v2582 = vpop.permute.xlu0 %2581
        %2583 = vrot.lane.b32.xlu0 %v1407, 32
        %v2584 = vpop.permute.xlu0 %2583
        %2585 = vrot.lane.b32.xlu0 %v1408, 32
        %v2586 = vpop.permute.xlu0 %2585
        %2587 = vrot.lane.b32.xlu0 %v1409, 32
        %v2588 = vpop.permute.xlu0 %2587
        %2589 = vrot.lane.b32.xlu0 %v1410, 32
        %v2590 = vpop.permute.xlu0 %2589
        %2591 = vrot.lane.b32.xlu0 %v1411, 32
        %v2592 = vpop.permute.xlu0 %2591
        %2593 = vrot.lane.b32.xlu0 %v1412, 32
        %v2594 = vpop.permute.xlu0 %2593
        %2595 = vrot.lane.b32.xlu0 %v1413, 32
        %v2596 = vpop.permute.xlu0 %2595
        %2597 = vrot.lane.b32.xlu0 %v1414, 32
        %v2598 = vpop.permute.xlu0 %2597
        %2599 = vrot.lane.b32.xlu0 %v1415, 32
        %v2600 = vpop.permute.xlu0 %2599
        %2617 = vrot.lane.b32.xlu0 %v1641, 64
        %v2618 = vpop.permute.xlu0 %2617
        %2619 = vrot.lane.b32.xlu0 %v1642, 64
        %v2620 = vpop.permute.xlu0 %2619
        %2621 = vrot.lane.b32.xlu0 %v1643, 64
        %v2622 = vpop.permute.xlu0 %2621
        %2623 = vrot.lane.b32.xlu0 %v1644, 64
        %v2624 = vpop.permute.xlu0 %2623
        %2625 = vrot.lane.b32.xlu0 %v1645, 64
        %v2626 = vpop.permute.xlu0 %2625
        %2627 = vrot.lane.b32.xlu0 %v1646, 64
        %v2628 = vpop.permute.xlu0 %2627
        %2629 = vrot.lane.b32.xlu0 %v1647, 64
        %v2630 = vpop.permute.xlu0 %2629
        %2631 = vrot.lane.b32.xlu0 %v1648, 64
        %v2632 = vpop.permute.xlu0 %2631
        %2633 = vrot.lane.b32.xlu0 %v1649, 64
        %v2634 = vpop.permute.xlu0 %2633
        %2635 = vrot.lane.b32.xlu0 %v1650, 64
        %v2636 = vpop.permute.xlu0 %2635
        %2637 = vrot.lane.b32.xlu0 %v1651, 64
        %v2638 = vpop.permute.xlu0 %2637
        %2639 = vrot.lane.b32.xlu0 %v1652, 64
        %v2640 = vpop.permute.xlu0 %2639
        %2641 = vrot.lane.b32.xlu0 %v1653, 64
        %v2642 = vpop.permute.xlu0 %2641
        %2643 = vrot.lane.b32.xlu0 %v1654, 64
        %v2644 = vpop.permute.xlu0 %2643
        %2645 = vrot.lane.b32.xlu0 %v1655, 64
        %v2646 = vpop.permute.xlu0 %2645
        %2647 = vrot.lane.b32.xlu0 %v1656, 64
        %v2648 = vpop.permute.xlu0 %2647
        %2665 = vrot.lane.b32.xlu0 %v1817, 96
        %v2666 = vpop.permute.xlu0 %2665
        %2667 = vrot.lane.b32.xlu0 %v1818, 96
        %v2668 = vpop.permute.xlu0 %2667
        %2669 = vrot.lane.b32.xlu0 %v1819, 96
        %v2670 = vpop.permute.xlu0 %2669
        %2671 = vrot.lane.b32.xlu0 %v1820, 96
        %v2672 = vpop.permute.xlu0 %2671
        %2673 = vrot.lane.b32.xlu0 %v1821, 96
        %v2674 = vpop.permute.xlu0 %2673
        %2675 = vrot.lane.b32.xlu0 %v1822, 96
        %v2676 = vpop.permute.xlu0 %2675
        %2677 = vrot.lane.b32.xlu0 %v1823, 96
        %v2678 = vpop.permute.xlu0 %2677
        %2679 = vrot.lane.b32.xlu0 %v1824, 96
        %v2680 = vpop.permute.xlu0 %2679
        %2681 = vrot.lane.b32.xlu0 %v1825, 96
        %v2682 = vpop.permute.xlu0 %2681
        %2683 = vrot.lane.b32.xlu0 %v1826, 96
        %v2684 = vpop.permute.xlu0 %2683
        %2685 = vrot.lane.b32.xlu0 %v1827, 96
        %v2686 = vpop.permute.xlu0 %2685
        %2687 = vrot.lane.b32.xlu0 %v1828, 96
        %v2688 = vpop.permute.xlu0 %2687
        %2689 = vrot.lane.b32.xlu0 %v1829, 96
        %v2690 = vpop.permute.xlu0 %2689
        %2691 = vrot.lane.b32.xlu0 %v1830, 96
        %v2692 = vpop.permute.xlu0 %2691
        %2693 = vrot.lane.b32.xlu0 %v1831, 96
        %v2694 = vpop.permute.xlu0 %2693
        %2695 = vrot.lane.b32.xlu0 %v1832, 96
        %v2696 = vpop.permute.xlu0 %2695
        %2713 = vrot.lane.b32.xlu0 %v2009, 32
        %v2714 = vpop.permute.xlu0 %2713
        %2715 = vrot.lane.b32.xlu0 %v2010, 32
        %v2716 = vpop.permute.xlu0 %2715
        %2717 = vrot.lane.b32.xlu0 %v2011, 32
        %v2718 = vpop.permute.xlu0 %2717
        %2719 = vrot.lane.b32.xlu0 %v2012, 32
        %v2720 = vpop.permute.xlu0 %2719
        %2721 = vrot.lane.b32.xlu0 %v2013, 32
        %v2722 = vpop.permute.xlu0 %2721
        %2723 = vrot.lane.b32.xlu0 %v2014, 32
        %v2724 = vpop.permute.xlu0 %2723
        %2725 = vrot.lane.b32.xlu0 %v2015, 32
        %v2726 = vpop.permute.xlu0 %2725
        %2727 = vrot.lane.b32.xlu0 %v2016, 32
        %v2728 = vpop.permute.xlu0 %2727
        %2729 = vrot.lane.b32.xlu0 %v2017, 32
        %v2730 = vpop.permute.xlu0 %2729
        %2731 = vrot.lane.b32.xlu0 %v2018, 32
        %v2732 = vpop.permute.xlu0 %2731
        %2733 = vrot.lane.b32.xlu0 %v2019, 32
        %v2734 = vpop.permute.xlu0 %2733
        %2735 = vrot.lane.b32.xlu0 %v2020, 32
        %v2736 = vpop.permute.xlu0 %2735
        %2737 = vrot.lane.b32.xlu0 %v2021, 32
        %v2738 = vpop.permute.xlu0 %2737
        %2739 = vrot.lane.b32.xlu0 %v2022, 32
        %v2740 = vpop.permute.xlu0 %2739
        %2741 = vrot.lane.b32.xlu0 %v2023, 32
        %v2742 = vpop.permute.xlu0 %2741
        %2743 = vrot.lane.b32.xlu0 %v2024, 32
        %v2744 = vpop.permute.xlu0 %2743
        %2761 = vrot.lane.b32.xlu0 %v2185, 64
        %v2762 = vpop.permute.xlu0 %2761
        %2763 = vrot.lane.b32.xlu0 %v2186, 64
        %v2764 = vpop.permute.xlu0 %2763
        %2765 = vrot.lane.b32.xlu0 %v2187, 64
        %v2766 = vpop.permute.xlu0 %2765
        %2767 = vrot.lane.b32.xlu0 %v2188, 64
        %v2768 = vpop.permute.xlu0 %2767
        %2769 = vrot.lane.b32.xlu0 %v2189, 64
        %v2770 = vpop.permute.xlu0 %2769
        %2771 = vrot.lane.b32.xlu0 %v2190, 64
        %v2772 = vpop.permute.xlu0 %2771
        %2773 = vrot.lane.b32.xlu0 %v2191, 64
        %v2774 = vpop.permute.xlu0 %2773
        %2775 = vrot.lane.b32.xlu0 %v2192, 64
        %v2776 = vpop.permute.xlu0 %2775
        %2777 = vrot.lane.b32.xlu0 %v2193, 64
        %v2778 = vpop.permute.xlu0 %2777
        %2779 = vrot.lane.b32.xlu0 %v2194, 64
        %v2780 = vpop.permute.xlu0 %2779
        %2781 = vrot.lane.b32.xlu0 %v2195, 64
        %v2782 = vpop.permute.xlu0 %2781
        %2783 = vrot.lane.b32.xlu0 %v2196, 64
        %v2784 = vpop.permute.xlu0 %2783
        %2785 = vrot.lane.b32.xlu0 %v2197, 64
        %v2786 = vpop.permute.xlu0 %2785
        %2787 = vrot.lane.b32.xlu0 %v2198, 64
        %v2788 = vpop.permute.xlu0 %2787
        %2789 = vrot.lane.b32.xlu0 %v2199, 64
        %v2790 = vpop.permute.xlu0 %2789
        %2791 = vrot.lane.b32.xlu0 %v2200, 64
        %v2792 = vpop.permute.xlu0 %2791
        %2809 = vrot.lane.b32.xlu0 %v2361, 96
        %v2810 = vpop.permute.xlu0 %2809
        %2811 = vrot.lane.b32.xlu0 %v2362, 96
        %v2812 = vpop.permute.xlu0 %2811
        %2813 = vrot.lane.b32.xlu0 %v2363, 96
        %v2814 = vpop.permute.xlu0 %2813
        %2815 = vrot.lane.b32.xlu0 %v2364, 96
        %v2816 = vpop.permute.xlu0 %2815
        %2817 = vrot.lane.b32.xlu0 %v2365, 96
        %v2818 = vpop.permute.xlu0 %2817
        %2819 = vrot.lane.b32.xlu0 %v2366, 96
        %v2820 = vpop.permute.xlu0 %2819
        %2821 = vrot.lane.b32.xlu0 %v2367, 96
        %v2822 = vpop.permute.xlu0 %2821
        %2823 = vrot.lane.b32.xlu0 %v2368, 96
        %v2824 = vpop.permute.xlu0 %2823
        %2825 = vrot.lane.b32.xlu0 %v2369, 96
        %v2826 = vpop.permute.xlu0 %2825
        %2827 = vrot.lane.b32.xlu0 %v2370, 96
        %v2828 = vpop.permute.xlu0 %2827
        %2829 = vrot.lane.b32.xlu0 %v2371, 96
        %v2830 = vpop.permute.xlu0 %2829
        %2831 = vrot.lane.b32.xlu0 %v2372, 96
        %v2832 = vpop.permute.xlu0 %2831
        %2833 = vrot.lane.b32.xlu0 %v2373, 96
        %v2834 = vpop.permute.xlu0 %2833
        %2835 = vrot.lane.b32.xlu0 %v2374, 96
        %v2836 = vpop.permute.xlu0 %2835
        %2837 = vrot.lane.b32.xlu0 %v2375, 96
        %v2838 = vpop.permute.xlu0 %2837
        %2839 = vrot.lane.b32.xlu0 %v2376, 96
        %v2840 = vpop.permute.xlu0 %2839
        %v2843 = vsel %vm394, %v1224, %v2570
        %v2846 = vsel %vm394, %v1225, %v2572
        %v2849 = vsel %vm394, %v1226, %v2574
        %v2852 = vsel %vm394, %v1227, %v2576
        %v2855 = vsel %vm394, %v1228, %v2578
        %v2858 = vsel %vm394, %v1229, %v2580
        %v2861 = vsel %vm394, %v1230, %v2582
        %v2864 = vsel %vm394, %v1231, %v2584
        %v2867 = vsel %vm394, %v1232, %v2586
        %v2870 = vsel %vm394, %v1233, %v2588
        %v2873 = vsel %vm394, %v1234, %v2590
        %v2876 = vsel %vm394, %v1235, %v2592
        %v2879 = vsel %vm394, %v1236, %v2594
        %v2882 = vsel %vm394, %v1237, %v2596
        %v2885 = vsel %vm394, %v1238, %v2598
        %v2888 = vsel %vm394, %v1239, %v2600
        %vm2889 = vcmask 523264
        %v2891 = vsel %vm2889, %v2843, %v2618
        %v2893 = vsel %vm2889, %v2846, %v2620
        %v2895 = vsel %vm2889, %v2849, %v2622
        %v2897 = vsel %vm2889, %v2852, %v2624
        %v2899 = vsel %vm2889, %v2855, %v2626
        %v2901 = vsel %vm2889, %v2858, %v2628
        %v2903 = vsel %vm2889, %v2861, %v2630
        %v2905 = vsel %vm2889, %v2864, %v2632
        %v2907 = vsel %vm2889, %v2867, %v2634
        %v2909 = vsel %vm2889, %v2870, %v2636
        %v2911 = vsel %vm2889, %v2873, %v2638
        %v2913 = vsel %vm2889, %v2876, %v2640
        %v2915 = vsel %vm2889, %v2879, %v2642
        %v2917 = vsel %vm2889, %v2882, %v2644
        %v2919 = vsel %vm2889, %v2885, %v2646
        %v2921 = vsel %vm2889, %v2888, %v2648
        %vm2922 = vcmask 785408
        %v2924 = vsel %vm2922, %v2891, %v2666
        %v2927 = vsel %vm2922, %v2893, %v2668
        %v2930 = vsel %vm2922, %v2895, %v2670
        %v2933 = vsel %vm2922, %v2897, %v2672
        %v2936 = vsel %vm2922, %v2899, %v2674
        %v2939 = vsel %vm2922, %v2901, %v2676
        %v2942 = vsel %vm2922, %v2903, %v2678
        %v2945 = vsel %vm2922, %v2905, %v2680
        %v2948 = vsel %vm2922, %v2907, %v2682
        %v2951 = vsel %vm2922, %v2909, %v2684
        %v2954 = vsel %vm2922, %v2911, %v2686
        %v2957 = vsel %vm2922, %v2913, %v2688
        %v2960 = vsel %vm2922, %v2915, %v2690
        %v2963 = vsel %vm2922, %v2917, %v2692
        %v2966 = vsel %vm2922, %v2919, %v2694
        %v2969 = vsel %vm2922, %v2921, %v2696
        %v2973 = vsel %vm394, %v1833, %v2714
        %v2976 = vsel %vm394, %v1834, %v2716
        %v2979 = vsel %vm394, %v1835, %v2718
        %v2982 = vsel %vm394, %v1836, %v2720
        %v2985 = vsel %vm394, %v1837, %v2722
        %v2988 = vsel %vm394, %v1838, %v2724
        %v2991 = vsel %vm394, %v1839, %v2726
        %v2994 = vsel %vm394, %v1840, %v2728
        %v2997 = vsel %vm394, %v1841, %v2730
        %v3000 = vsel %vm394, %v1842, %v2732
        %v3003 = vsel %vm394, %v1843, %v2734
        %v3006 = vsel %vm394, %v1844, %v2736
        %v3009 = vsel %vm394, %v1845, %v2738
        %v3012 = vsel %vm394, %v1846, %v2740
        %v3015 = vsel %vm394, %v1847, %v2742
        %v3018 = vsel %vm394, %v1848, %v2744
        %v3020 = vsel %vm2889, %v2973, %v2762
        %v3022 = vsel %vm2889, %v2976, %v2764
        %v3024 = vsel %vm2889, %v2979, %v2766
        %v3026 = vsel %vm2889, %v2982, %v2768
        %v3028 = vsel %vm2889, %v2985, %v2770
        %v3030 = vsel %vm2889, %v2988, %v2772
        %v3032 = vsel %vm2889, %v2991, %v2774
        %v3034 = vsel %vm2889, %v2994, %v2776
        %v3036 = vsel %vm2889, %v2997, %v2778
        %v3038 = vsel %vm2889, %v3000, %v2780
        %v3040 = vsel %vm2889, %v3003, %v2782
        %v3042 = vsel %vm2889, %v3006, %v2784
        %v3044 = vsel %vm2889, %v3009, %v2786
        %v3046 = vsel %vm2889, %v3012, %v2788
        %v3048 = vsel %vm2889, %v3015, %v2790
        %v3050 = vsel %vm2889, %v3018, %v2792
        %v3052 = vsel %vm2922, %v3020, %v2810
        %v3055 = vsel %vm2922, %v3022, %v2812
        %v3058 = vsel %vm2922, %v3024, %v2814
        %v3061 = vsel %vm2922, %v3026, %v2816
        %v3064 = vsel %vm2922, %v3028, %v2818
        %v3067 = vsel %vm2922, %v3030, %v2820
        %v3070 = vsel %vm2922, %v3032, %v2822
        %v3073 = vsel %vm2922, %v3034, %v2824
        %v3076 = vsel %vm2922, %v3036, %v2826
        %v3079 = vsel %vm2922, %v3038, %v2828
        %v3082 = vsel %vm2922, %v3040, %v2830
        %v3085 = vsel %vm2922, %v3042, %v2832
        %v3088 = vsel %vm2922, %v3044, %v2834
        %v3091 = vsel %vm2922, %v3046, %v2836
        %v3094 = vsel %vm2922, %v3048, %v2838
        %v3097 = vsel %vm2922, %v3050, %v2840
        %v3099 = vld [vmem:[%s7] sm:$0xf]
        %v3100 = vld [vmem:[%s7 + $0x4] sm:$0xf]
        %v3101 = vld [vmem:[%s7 + $0x8] sm:$0xf]
        %v3102 = vld [vmem:[%s7 + $0xc] sm:$0xf]
        %v3103 = vld [vmem:[%s7 + $0x10] sm:$0xf]
        %v3104 = vld [vmem:[%s7 + $0x14] sm:$0xf]
        %v3105 = vld [vmem:[%s7 + $0x18] sm:$0xf]
        %v3106 = vld [vmem:[%s7 + $0x1c] sm:$0xf]
        %v3107 = vld [vmem:[%s7 + $0x20] sm:$0xf]
        %v3108 = vld [vmem:[%s7 + $0x24] sm:$0xf]
        %v3109 = vld [vmem:[%s7 + $0x28] sm:$0xf]
        %v3110 = vld [vmem:[%s7 + $0x2c] sm:$0xf]
        %v3111 = vld [vmem:[%s7 + $0x30] sm:$0xf]
        %v3112 = vld [vmem:[%s7 + $0x34] sm:$0xf]
        %v3113 = vld [vmem:[%s7 + $0x38] sm:$0xf]
        %v3114 = vld [vmem:[%s7 + $0x3c] sm:$0xf]
        %v3115 = vld [vmem:[%s7 + $0x40] sm:$0xf]
        %v3116 = vld [vmem:[%s7 + $0x44] sm:$0xf]
        %v3117 = vld [vmem:[%s7 + $0x48] sm:$0xf]
        %v3118 = vld [vmem:[%s7 + $0x4c] sm:$0xf]
        %v3119 = vld [vmem:[%s7 + $0x50] sm:$0xf]
        %v3120 = vld [vmem:[%s7 + $0x54] sm:$0xf]
        %v3121 = vld [vmem:[%s7 + $0x58] sm:$0xf]
        %v3122 = vld [vmem:[%s7 + $0x5c] sm:$0xf]
        %v3123 = vld [vmem:[%s7 + $0x60] sm:$0xf]
        %v3124 = vld [vmem:[%s7 + $0x64] sm:$0xf]
        %v3125 = vld [vmem:[%s7 + $0x68] sm:$0xf]
        %v3126 = vld [vmem:[%s7 + $0x6c] sm:$0xf]
        %v3127 = vld [vmem:[%s7 + $0x70] sm:$0xf]
        %v3128 = vld [vmem:[%s7 + $0x74] sm:$0xf]
        %v3129 = vld [vmem:[%s7 + $0x78] sm:$0xf]
        %v3130 = vld [vmem:[%s7 + $0x7c] sm:$0xf]
        %v3131 = vld [vmem:[%s7 + $0x80] sm:$0xf]
        %v3132 = vld [vmem:[%s7 + $0x84] sm:$0xf]
        %v3133 = vld [vmem:[%s7 + $0x88] sm:$0xf]
        %v3134 = vld [vmem:[%s7 + $0x8c] sm:$0xf]
        %v3135 = vlaneseq
        %v3136 = vshrl.u32 %v3135, 7
        %v3137 = vsub.s32 0, %v3136
        %v3138 = vrot.slane %v932, %v3137
        %v3175 = vunpack.c.l.b16 %v3099
        %v3176 = vunpack.c.l.b16 %v3100
        %v3177 = vunpack.c.l.b16 %v3101
        %v3178 = vunpack.c.l.b16 %v3102
        %v3179 = vunpack.c.l.b16 %v3103
        %v3180 = vunpack.c.l.b16 %v3104
        %v3181 = vunpack.c.l.b16 %v3105
        %v3182 = vunpack.c.l.b16 %v3106
        %v3183 = vunpack.c.l.b16 %v3107
        %v3184 = vunpack.c.l.b16 %v3108
        %v3185 = vunpack.c.l.b16 %v3109
        %v3186 = vunpack.c.l.b16 %v3110
        %v3187 = vunpack.c.l.b16 %v3111
        %v3188 = vunpack.c.l.b16 %v3112
        %v3189 = vunpack.c.l.b16 %v3113
        %v3190 = vunpack.c.l.b16 %v3114
        %v3191 = vunpack.c.l.b16 %v3115
        %v3192 = vunpack.c.l.b16 %v3116
        %v3193 = vunpack.c.l.b16 %v3117
        %v3194 = vunpack.c.l.b16 %v3118
        %v3195 = vunpack.c.l.b16 %v3119
        %v3196 = vunpack.c.l.b16 %v3120
        %v3197 = vunpack.c.l.b16 %v3121
        %v3198 = vunpack.c.l.b16 %v3122
        %v3199 = vunpack.c.l.b16 %v3123
        %v3200 = vunpack.c.l.b16 %v3124
        %v3201 = vunpack.c.l.b16 %v3125
        %v3202 = vunpack.c.l.b16 %v3126
        %v3203 = vunpack.c.l.b16 %v3127
        %v3204 = vunpack.c.l.b16 %v3128
        %v3205 = vunpack.c.l.b16 %v3129
        %v3206 = vunpack.c.l.b16 %v3130
        %v3207 = vunpack.c.l.b16 %v3131
        %v3208 = vunpack.c.l.b16 %v3132
        %v3209 = vunpack.c.l.b16 %v3133
        %v3210 = vunpack.c.l.b16 %v3134
        %v3211 = vpack.c.b16 %v3176, %v3175
        %v3212 = vpack.c.b16 %v3178, %v3177
        %v3213 = vpack.c.b16 %v3180, %v3179
        %v3214 = vpack.c.b16 %v3182, %v3181
        %v3215 = vpack.c.b16 %v3184, %v3183
        %v3216 = vpack.c.b16 %v3186, %v3185
        %v3217 = vpack.c.b16 %v3188, %v3187
        %v3218 = vpack.c.b16 %v3190, %v3189
        %v3219 = vpack.c.b16 %v3192, %v3191
        %v3220 = vpack.c.b16 %v3194, %v3193
        %v3221 = vpack.c.b16 %v3196, %v3195
        %v3222 = vpack.c.b16 %v3198, %v3197
        %v3223 = vpack.c.b16 %v3200, %v3199
        %v3224 = vpack.c.b16 %v3202, %v3201
        %v3225 = vpack.c.b16 %v3204, %v3203
        %v3226 = vpack.c.b16 %v3206, %v3205
        %v3227 = vpack.c.b16 %v3208, %v3207
        %v3228 = vpack.c.b16 %v3210, %v3209
        %v3248 = vsel %vm394, %v2537, 0
        %v3251 = vsel %vm394, %v2538, 0
        %v3254 = vsel %vm394, %v2539, 0
        %v3257 = vsel %vm394, %v2540, 0
        %v3260 = vsel %vm394, %v2541, 0
        %v3263 = vsel %vm394, %v2542, 0
        %v3266 = vsel %vm394, %v2543, 0
        %v3269 = vsel %vm394, %v2544, 0
        %v3272 = vsel %vm394, %v2545, 0
        %v3275 = vsel %vm394, %v2546, 0
        %v3278 = vsel %vm394, %v2547, 0
        %v3281 = vsel %vm394, %v2548, 0
        %v3284 = vsel %vm394, %v2549, 0
        %v3287 = vsel %vm394, %v2550, 0
        %v3290 = vsel %vm394, %v2551, 0
        %v3293 = vsel %vm394, %v2552, 0
        %3295 = vmatprep.subr.bf16.mxu0 0
        %3296 = vmatpush1.bf16.msra.mxu0 %v3218
        %3297 = vmatprep.subr.bf16.mxu0 0
        %3298 = vmatpush1.bf16.msra.mxu0 %v3217
        %3299 = vmatprep.subr.bf16.mxu0 0
        %3300 = vmatpush1.bf16.msra.mxu0 %v3216
        %3301 = vmatprep.subr.bf16.mxu0 0
        %3302 = vmatpush1.bf16.msra.mxu0 %v3215
        %3303 = vmatprep.subr.bf16.mxu0 0
        %3304 = vmatpush1.bf16.msra.mxu0 %v3214
        %3305 = vmatprep.subr.bf16.mxu0 0
        %3306 = vmatpush1.bf16.msra.mxu0 %v3213
        %3307 = vmatprep.subr.bf16.mxu0 0
        %3308 = vmatpush1.bf16.msra.mxu0 %v3212
        %3309 = vmatprep.subr.bf16.mxu0 0
        %3310 = vmatpush1.bf16.msra.mxu0 %v3211
        %3311 = vmatprep.subr.bf16.mxu0 0
        %3312 = vmatpush2.bf16.msra.mxu0 %v3226
        %3313 = vmatprep.subr.bf16.mxu0 0
        %3314 = vmatpush2.bf16.msra.mxu0 %v3225
        %3315 = vmatprep.subr.bf16.mxu0 0
        %3316 = vmatpush2.bf16.msra.mxu0 %v3224
        %3317 = vmatprep.subr.bf16.mxu0 0
        %3318 = vmatpush2.bf16.msra.mxu0 %v3223
        %3319 = vmatprep.subr.bf16.mxu0 0
        %3320 = vmatpush2.bf16.msra.mxu0 %v3222
        %3321 = vmatprep.subr.bf16.mxu0 0
        %3322 = vmatpush2.bf16.msra.mxu0 %v3221
        %3323 = vmatprep.subr.bf16.mxu0 0
        %3324 = vmatpush2.bf16.msra.mxu0 %v3220
        %3325 = vmatprep.subr.bf16.mxu0 0
        %3326 = vmatpush2.bf16.msra.mxu0 %v3219
        %3327 = vmatprep.mubr.bf16.mxu0 %v3052
        %3328 = vmatmul.mubr.bf16.gmra.mxu0 %v2924
        %v3329 = vpop.f32.mrf.mxu0
        %v3330 = vadd.f32 %v3138, %v3329
        %v3331 = vpop.f32.mrf.mxu0
        %v3332 = vpop.f32.mrf.mxu0
        %v3333 = vadd.f32 %v3138, %v3332
        %v3334 = vpop.f32.mrf.mxu0
        %3335 = vmatprep.mubr.bf16.mxu0 %v3055
        %3336 = vmatmul.mubr.bf16.gmra.mxu0 %v2927
        %v3337 = vpop.f32.mrf.mxu0
        %v3338 = vadd.f32 %v3138, %v3337
        %v3339 = vpop.f32.mrf.mxu0
        %v3340 = vpop.f32.mrf.mxu0
        %v3341 = vadd.f32 %v3138, %v3340
        %v3342 = vpop.f32.mrf.mxu0
        %3343 = vmatprep.mubr.bf16.mxu0 %v3058
        %3344 = vmatmul.mubr.bf16.gmra.mxu0 %v2930
        %v3345 = vpop.f32.mrf.mxu0
        %v3346 = vadd.f32 %v3138, %v3345
        %v3347 = vpop.f32.mrf.mxu0
        %v3348 = vpop.f32.mrf.mxu0
        %v3349 = vadd.f32 %v3138, %v3348
        %v3350 = vpop.f32.mrf.mxu0
        %3351 = vmatprep.mubr.bf16.mxu0 %v3061
        %3352 = vmatmul.mubr.bf16.gmra.mxu0 %v2933
        %v3353 = vpop.f32.mrf.mxu0
        %v3354 = vadd.f32 %v3138, %v3353
        %v3355 = vpop.f32.mrf.mxu0
        %v3356 = vpop.f32.mrf.mxu0
        %v3357 = vadd.f32 %v3138, %v3356
        %v3358 = vpop.f32.mrf.mxu0
        %3359 = vmatprep.mubr.bf16.mxu0 %v3064
        %3360 = vmatmul.mubr.bf16.gmra.mxu0 %v2936
        %v3361 = vpop.f32.mrf.mxu0
        %v3362 = vadd.f32 %v3138, %v3361
        %v3363 = vpop.f32.mrf.mxu0
        %v3364 = vpop.f32.mrf.mxu0
        %v3365 = vadd.f32 %v3138, %v3364
        %v3366 = vpop.f32.mrf.mxu0
        %3367 = vmatprep.mubr.bf16.mxu0 %v3067
        %3368 = vmatmul.mubr.bf16.gmra.mxu0 %v2939
        %v3369 = vpop.f32.mrf.mxu0
        %v3370 = vadd.f32 %v3138, %v3369
        %v3371 = vpop.f32.mrf.mxu0
        %v3372 = vpop.f32.mrf.mxu0
        %v3373 = vadd.f32 %v3138, %v3372
        %v3374 = vpop.f32.mrf.mxu0
        %3375 = vmatprep.mubr.bf16.mxu0 %v3070
        %3376 = vmatmul.mubr.bf16.gmra.mxu0 %v2942
        %v3377 = vpop.f32.mrf.mxu0
        %v3378 = vadd.f32 %v3138, %v3377
        %v3379 = vpop.f32.mrf.mxu0
        %v3380 = vpop.f32.mrf.mxu0
        %v3381 = vadd.f32 %v3138, %v3380
        %v3382 = vpop.f32.mrf.mxu0
        %3383 = vmatprep.mubr.bf16.mxu0 %v3073
        %3384 = vmatmul.mubr.bf16.gmra.mxu0 %v2945
        %v3385 = vpop.f32.mrf.mxu0
        %v3386 = vadd.f32 %v3138, %v3385
        %v3387 = vpop.f32.mrf.mxu0
        %v3388 = vpop.f32.mrf.mxu0
        %v3389 = vadd.f32 %v3138, %v3388
        %v3390 = vpop.f32.mrf.mxu0
        %3391 = vmatprep.mubr.bf16.mxu0 %v3076
        %3392 = vmatmul.mubr.bf16.gmra.mxu0 %v2948
        %v3393 = vpop.f32.mrf.mxu0
        %v3394 = vadd.f32 %v3138, %v3393
        %v3395 = vpop.f32.mrf.mxu0
        %v3396 = vpop.f32.mrf.mxu0
        %v3397 = vadd.f32 %v3138, %v3396
        %v3398 = vpop.f32.mrf.mxu0
        %3399 = vmatprep.mubr.bf16.mxu0 %v3079
        %3400 = vmatmul.mubr.bf16.gmra.mxu0 %v2951
        %v3401 = vpop.f32.mrf.mxu0
        %v3402 = vadd.f32 %v3138, %v3401
        %v3403 = vpop.f32.mrf.mxu0
        %v3404 = vpop.f32.mrf.mxu0
        %v3405 = vadd.f32 %v3138, %v3404
        %v3406 = vpop.f32.mrf.mxu0
        %3407 = vmatprep.mubr.bf16.mxu0 %v3082
        %3408 = vmatmul.mubr.bf16.gmra.mxu0 %v2954
        %v3409 = vpop.f32.mrf.mxu0
        %v3410 = vadd.f32 %v3138, %v3409
        %v3411 = vpop.f32.mrf.mxu0
        %v3412 = vpop.f32.mrf.mxu0
        %v3413 = vadd.f32 %v3138, %v3412
        %v3414 = vpop.f32.mrf.mxu0
        %3415 = vmatprep.mubr.bf16.mxu0 %v3085
        %3416 = vmatmul.mubr.bf16.gmra.mxu0 %v2957
        %v3417 = vpop.f32.mrf.mxu0
        %v3418 = vadd.f32 %v3138, %v3417
        %v3419 = vpop.f32.mrf.mxu0
        %v3420 = vpop.f32.mrf.mxu0
        %v3421 = vadd.f32 %v3138, %v3420
        %v3422 = vpop.f32.mrf.mxu0
        %3423 = vmatprep.mubr.bf16.mxu0 %v3088
        %3424 = vmatmul.mubr.bf16.gmra.mxu0 %v2960
        %v3425 = vpop.f32.mrf.mxu0
        %v3426 = vadd.f32 %v3138, %v3425
        %v3427 = vpop.f32.mrf.mxu0
        %v3428 = vpop.f32.mrf.mxu0
        %v3429 = vadd.f32 %v3138, %v3428
        %v3430 = vpop.f32.mrf.mxu0
        %3431 = vmatprep.mubr.bf16.mxu0 %v3091
        %3432 = vmatmul.mubr.bf16.gmra.mxu0 %v2963
        %v3433 = vpop.f32.mrf.mxu0
        %v3434 = vadd.f32 %v3138, %v3433
        %v3435 = vpop.f32.mrf.mxu0
        %v3436 = vpop.f32.mrf.mxu0
        %v3437 = vadd.f32 %v3138, %v3436
        %v3438 = vpop.f32.mrf.mxu0
        %3439 = vmatprep.mubr.bf16.mxu0 %v3094
        %3440 = vmatmul.mubr.bf16.gmra.mxu0 %v2966
        %v3441 = vpop.f32.mrf.mxu0
        %v3442 = vadd.f32 %v3138, %v3441
        %v3443 = vpop.f32.mrf.mxu0
        %v3444 = vpop.f32.mrf.mxu0
        %v3445 = vadd.f32 %v3138, %v3444
        %v3446 = vpop.f32.mrf.mxu0
        %3447 = vmatprep.mubr.bf16.mxu0 %v3097
        %3448 = vmatmul.mubr.bf16.gmra.mxu0 %v2969
        %v3449 = vpop.f32.mrf.mxu0
        %v3450 = vadd.f32 %v3138, %v3449
        %v3451 = vpop.f32.mrf.mxu0
        %v3452 = vpop.f32.mrf.mxu0
        %v3453 = vadd.f32 %v3138, %v3452
        %v3454 = vpop.f32.mrf.mxu0
        %3455 = vdwg.mxu0
        %3456 = vmatprep.subr.bf16.mxu0 0
        %3457 = vmatpush1.bf16.msra.mxu0 0
        %3458 = vmatprep.subr.bf16.mxu0 0
        %3459 = vmatpush1.bf16.msra.mxu0 0
        %3460 = vmatprep.subr.bf16.mxu0 0
        %3461 = vmatpush1.bf16.msra.mxu0 0
        %3462 = vmatprep.subr.bf16.mxu0 0
        %3463 = vmatpush1.bf16.msra.mxu0 0
        %3464 = vmatprep.subr.bf16.mxu0 0
        %3465 = vmatpush1.bf16.msra.mxu0 0
        %3466 = vmatprep.subr.bf16.mxu0 0
        %3467 = vmatpush1.bf16.msra.mxu0 0
        %3468 = vmatprep.subr.bf16.mxu0 0
        %3469 = vmatpush1.bf16.msra.mxu0 %v3228
        %3470 = vmatprep.subr.bf16.mxu0 0
        %3471 = vmatpush1.bf16.msra.mxu0 %v3227
        %3472 = vmatprep.subr.bf16.mxu0 0
        %3473 = vmatpush2.bf16.msra.mxu0 0
        %3474 = vmatprep.subr.bf16.mxu0 0
        %3475 = vmatpush2.bf16.msra.mxu0 0
        %3476 = vmatprep.subr.bf16.mxu0 0
        %3477 = vmatpush2.bf16.msra.mxu0 0
        %3478 = vmatprep.subr.bf16.mxu0 0
        %3479 = vmatpush2.bf16.msra.mxu0 0
        %3480 = vmatprep.subr.bf16.mxu0 0
        %3481 = vmatpush2.bf16.msra.mxu0 0
        %3482 = vmatprep.subr.bf16.mxu0 0
        %3483 = vmatpush2.bf16.msra.mxu0 0
        %3484 = vmatprep.subr.bf16.mxu0 0
        %3485 = vmatpush2.bf16.msra.mxu0 0
        %3486 = vmatprep.subr.bf16.mxu0 0
        %3487 = vmatpush2.bf16.msra.mxu0 0
        %3488 = vmatprep.mubr.bf16.mxu0 0
        %3489 = vmatmul.mubr.bf16.gmra.mxu0 %v3248
        %v3490 = vpop.f32.mrf.mxu0
        %v3491 = vadd.f32 %v3330, %v3490
        %v3492 = vpop.f32.mrf.mxu0
        %v3493 = vpop.f32.mrf.mxu0
        %v3494 = vadd.f32 %v3333, %v3493
        %v3495 = vpop.f32.mrf.mxu0
        %3496 = vmatprep.mubr.bf16.mxu0 0
        %3497 = vmatmul.mubr.bf16.gmra.mxu0 %v3251
        %v3498 = vpop.f32.mrf.mxu0
        %v3499 = vadd.f32 %v3338, %v3498
        %v3500 = vpop.f32.mrf.mxu0
        %v3501 = vpop.f32.mrf.mxu0
        %v3502 = vadd.f32 %v3341, %v3501
        %v3503 = vpop.f32.mrf.mxu0
        %3504 = vmatprep.mubr.bf16.mxu0 0
        %3505 = vmatmul.mubr.bf16.gmra.mxu0 %v3254
        %v3506 = vpop.f32.mrf.mxu0
        %v3507 = vadd.f32 %v3346, %v3506
        %v3508 = vpop.f32.mrf.mxu0
        %v3509 = vpop.f32.mrf.mxu0
        %v3510 = vadd.f32 %v3349, %v3509
        %v3511 = vpop.f32.mrf.mxu0
        %3512 = vmatprep.mubr.bf16.mxu0 0
        %3513 = vmatmul.mubr.bf16.gmra.mxu0 %v3257
        %v3514 = vpop.f32.mrf.mxu0
        %v3515 = vadd.f32 %v3354, %v3514
        %v3516 = vpop.f32.mrf.mxu0
        %v3517 = vpop.f32.mrf.mxu0
        %v3518 = vadd.f32 %v3357, %v3517
        %v3519 = vpop.f32.mrf.mxu0
        %3520 = vmatprep.mubr.bf16.mxu0 0
        %3521 = vmatmul.mubr.bf16.gmra.mxu0 %v3260
        %v3522 = vpop.f32.mrf.mxu0
        %v3523 = vadd.f32 %v3362, %v3522
        %v3524 = vpop.f32.mrf.mxu0
        %v3525 = vpop.f32.mrf.mxu0
        %v3526 = vadd.f32 %v3365, %v3525
        %v3527 = vpop.f32.mrf.mxu0
        %3528 = vmatprep.mubr.bf16.mxu0 0
        %3529 = vmatmul.mubr.bf16.gmra.mxu0 %v3263
        %v3530 = vpop.f32.mrf.mxu0
        %v3531 = vadd.f32 %v3370, %v3530
        %v3532 = vpop.f32.mrf.mxu0
        %v3533 = vpop.f32.mrf.mxu0
        %v3534 = vadd.f32 %v3373, %v3533
        %v3535 = vpop.f32.mrf.mxu0
        %3536 = vmatprep.mubr.bf16.mxu0 0
        %3537 = vmatmul.mubr.bf16.gmra.mxu0 %v3266
        %v3538 = vpop.f32.mrf.mxu0
        %v3539 = vadd.f32 %v3378, %v3538
        %v3540 = vpop.f32.mrf.mxu0
        %v3541 = vpop.f32.mrf.mxu0
        %v3542 = vadd.f32 %v3381, %v3541
        %v3543 = vpop.f32.mrf.mxu0
        %3544 = vmatprep.mubr.bf16.mxu0 0
        %3545 = vmatmul.mubr.bf16.gmra.mxu0 %v3269
        %v3546 = vpop.f32.mrf.mxu0
        %v3547 = vadd.f32 %v3386, %v3546
        %v3548 = vpop.f32.mrf.mxu0
        %v3549 = vpop.f32.mrf.mxu0
        %v3550 = vadd.f32 %v3389, %v3549
        %v3551 = vpop.f32.mrf.mxu0
        %3552 = vmatprep.mubr.bf16.mxu0 0
        %3553 = vmatmul.mubr.bf16.gmra.mxu0 %v3272
        %v3554 = vpop.f32.mrf.mxu0
        %v3555 = vadd.f32 %v3394, %v3554
        %v3556 = vpop.f32.mrf.mxu0
        %v3557 = vpop.f32.mrf.mxu0
        %v3558 = vadd.f32 %v3397, %v3557
        %v3559 = vpop.f32.mrf.mxu0
        %3560 = vmatprep.mubr.bf16.mxu0 0
        %3561 = vmatmul.mubr.bf16.gmra.mxu0 %v3275
        %v3562 = vpop.f32.mrf.mxu0
        %v3563 = vadd.f32 %v3402, %v3562
        %v3564 = vpop.f32.mrf.mxu0
        %v3565 = vpop.f32.mrf.mxu0
        %v3566 = vadd.f32 %v3405, %v3565
        %v3567 = vpop.f32.mrf.mxu0
        %3568 = vmatprep.mubr.bf16.mxu0 0
        %3569 = vmatmul.mubr.bf16.gmra.mxu0 %v3278
        %v3570 = vpop.f32.mrf.mxu0
        %v3571 = vadd.f32 %v3410, %v3570
        %v3572 = vpop.f32.mrf.mxu0
        %v3573 = vpop.f32.mrf.mxu0
        %v3574 = vadd.f32 %v3413, %v3573
        %v3575 = vpop.f32.mrf.mxu0
        %3576 = vmatprep.mubr.bf16.mxu0 0
        %3577 = vmatmul.mubr.bf16.gmra.mxu0 %v3281
        %v3578 = vpop.f32.mrf.mxu0
        %v3579 = vadd.f32 %v3418, %v3578
        %v3580 = vpop.f32.mrf.mxu0
        %v3581 = vpop.f32.mrf.mxu0
        %v3582 = vadd.f32 %v3421, %v3581
        %v3583 = vpop.f32.mrf.mxu0
        %3584 = vmatprep.mubr.bf16.mxu0 0
        %3585 = vmatmul.mubr.bf16.gmra.mxu0 %v3284
        %v3586 = vpop.f32.mrf.mxu0
        %v3587 = vadd.f32 %v3426, %v3586
        %v3588 = vpop.f32.mrf.mxu0
        %v3589 = vpop.f32.mrf.mxu0
        %v3590 = vadd.f32 %v3429, %v3589
        %v3591 = vpop.f32.mrf.mxu0
        %3592 = vmatprep.mubr.bf16.mxu0 0
        %3593 = vmatmul.mubr.bf16.gmra.mxu0 %v3287
        %v3594 = vpop.f32.mrf.mxu0
        %v3595 = vadd.f32 %v3434, %v3594
        %v3596 = vpop.f32.mrf.mxu0
        %v3597 = vpop.f32.mrf.mxu0
        %v3598 = vadd.f32 %v3437, %v3597
        %v3599 = vpop.f32.mrf.mxu0
        %3600 = vmatprep.mubr.bf16.mxu0 0
        %3601 = vmatmul.mubr.bf16.gmra.mxu0 %v3290
        %v3602 = vpop.f32.mrf.mxu0
        %v3603 = vadd.f32 %v3442, %v3602
        %v3604 = vpop.f32.mrf.mxu0
        %v3605 = vpop.f32.mrf.mxu0
        %v3606 = vadd.f32 %v3445, %v3605
        %v3607 = vpop.f32.mrf.mxu0
        %3608 = vmatprep.mubr.bf16.mxu0 0
        %3609 = vmatmul.mubr.bf16.gmra.mxu0 %v3293
        %v3610 = vpop.f32.mrf.mxu0
        %v3611 = vadd.f32 %v3450, %v3610
        %v3612 = vpop.f32.mrf.mxu0
        %v3613 = vpop.f32.mrf.mxu0
        %v3614 = vadd.f32 %v3453, %v3613
        %v3615 = vpop.f32.mrf.mxu0
        %3616 = vdwg.mxu0
        %v3617 = vsel %vm2889, %v3491, 0.0
        %v3618 = vsel %vm2889, %v3494, 0.0
        %v3619 = vadd.f32 %v3617, %v3618
        %v3620 = vsel %vm2889, %v3499, 0.0
        %v3621 = vadd.f32 %v3619, %v3620
        %v3622 = vsel %vm2889, %v3502, 0.0
        %v3623 = vadd.f32 %v3621, %v3622
        %v3624 = vsel %vm2889, %v3507, 0.0
        %v3625 = vadd.f32 %v3623, %v3624
        %v3626 = vsel %vm2889, %v3510, 0.0
        %v3627 = vadd.f32 %v3625, %v3626
        %v3628 = vsel %vm2889, %v3515, 0.0
        %v3629 = vadd.f32 %v3627, %v3628
        %v3630 = vsel %vm2889, %v3518, 0.0
        %v3631 = vadd.f32 %v3629, %v3630
        %v3632 = vsel %vm2889, %v3523, 0.0
        %v3633 = vadd.f32 %v3631, %v3632
        %v3634 = vsel %vm2889, %v3526, 0.0
        %v3635 = vadd.f32 %v3633, %v3634
        %v3636 = vsel %vm2889, %v3531, 0.0
        %v3637 = vadd.f32 %v3635, %v3636
        %v3638 = vsel %vm2889, %v3534, 0.0
        %v3639 = vadd.f32 %v3637, %v3638
        %v3640 = vsel %vm2889, %v3539, 0.0
        %v3641 = vadd.f32 %v3639, %v3640
        %v3642 = vsel %vm2889, %v3542, 0.0
        %v3643 = vadd.f32 %v3641, %v3642
        %v3644 = vsel %vm2889, %v3547, 0.0
        %v3645 = vadd.f32 %v3643, %v3644
        %v3646 = vsel %vm2889, %v3550, 0.0
        %v3647 = vadd.f32 %v3645, %v3646
        %v3648 = vsel %vm2889, %v3555, 0.0
        %v3649 = vadd.f32 %v3647, %v3648
        %v3650 = vsel %vm2889, %v3558, 0.0
        %v3651 = vadd.f32 %v3649, %v3650
        %v3652 = vsel %vm2889, %v3563, 0.0
        %v3653 = vadd.f32 %v3651, %v3652
        %v3654 = vsel %vm2889, %v3566, 0.0
        %v3655 = vadd.f32 %v3653, %v3654
        %v3656 = vsel %vm2889, %v3571, 0.0
        %v3657 = vadd.f32 %v3655, %v3656
        %v3658 = vsel %vm2889, %v3574, 0.0
        %v3659 = vadd.f32 %v3657, %v3658
        %v3660 = vsel %vm2889, %v3579, 0.0
        %v3661 = vadd.f32 %v3659, %v3660
        %v3662 = vsel %vm2889, %v3582, 0.0
        %v3663 = vadd.f32 %v3661, %v3662
        %v3664 = vsel %vm2889, %v3587, 0.0
        %v3665 = vadd.f32 %v3663, %v3664
        %v3666 = vsel %vm2889, %v3590, 0.0
        %v3667 = vadd.f32 %v3665, %v3666
        %v3668 = vsel %vm2889, %v3595, 0.0
        %v3669 = vadd.f32 %v3667, %v3668
        %v3670 = vsel %vm2889, %v3598, 0.0
        %v3671 = vadd.f32 %v3669, %v3670
        %v3672 = vsel %vm2889, %v3603, 0.0
        %v3673 = vadd.f32 %v3671, %v3672
        %v3674 = vsel %vm2889, %v3606, 0.0
        %v3675 = vadd.f32 %v3673, %v3674
        %v3676 = vsel %vm2889, %v3611, 0.0
        %v3677 = vadd.f32 %v3675, %v3676
        %v3678 = vsel %vm2889, %v3614, 0.0
        %v3679 = vadd.f32 %v3677, %v3678
        %v3680 = vrot.slane %v3679, 4
        %v3681 = vadd.f32 %v3679, %v3680
        %v3682 = vrot.slane %v3681, 2
        %v3683 = vadd.f32 %v3681, %v3682
        %v3684 = vrot.slane %v3683, 1
        %v3685 = vadd.f32 %v3683, %v3684
        %v3686 = vmul.f32 %v3491, %v3491
        %v3687 = vmul.f32 %v3494, %v3494
        %v3688 = vmul.f32 %v3499, %v3499
        %v3689 = vmul.f32 %v3502, %v3502
        %v3690 = vmul.f32 %v3507, %v3507
        %v3691 = vmul.f32 %v3510, %v3510
        %v3692 = vmul.f32 %v3515, %v3515
        %v3693 = vmul.f32 %v3518, %v3518
        %v3694 = vmul.f32 %v3523, %v3523
        %v3695 = vmul.f32 %v3526, %v3526
        %v3696 = vmul.f32 %v3531, %v3531
        %v3697 = vmul.f32 %v3534, %v3534
        %v3698 = vmul.f32 %v3539, %v3539
        %v3699 = vmul.f32 %v3542, %v3542
        %v3700 = vmul.f32 %v3547, %v3547
        %v3701 = vmul.f32 %v3550, %v3550
        %v3702 = vmul.f32 %v3555, %v3555
        %v3703 = vmul.f32 %v3558, %v3558
        %v3704 = vmul.f32 %v3563, %v3563
        %v3705 = vmul.f32 %v3566, %v3566
        %v3706 = vmul.f32 %v3571, %v3571
        %v3707 = vmul.f32 %v3574, %v3574
        %v3708 = vmul.f32 %v3579, %v3579
        %v3709 = vmul.f32 %v3582, %v3582
        %v3710 = vmul.f32 %v3587, %v3587
        %v3711 = vmul.f32 %v3590, %v3590
        %v3712 = vmul.f32 %v3595, %v3595
        %v3713 = vmul.f32 %v3598, %v3598
        %v3714 = vmul.f32 %v3603, %v3603
        %v3715 = vmul.f32 %v3606, %v3606
        %v3716 = vmul.f32 %v3611, %v3611
        %v3717 = vmul.f32 %v3614, %v3614
        %v3718 = vsel %vm2889, %v3686, 0.0
        %v3719 = vsel %vm2889, %v3687, 0.0
        %v3720 = vadd.f32 %v3718, %v3719
        %v3721 = vsel %vm2889, %v3688, 0.0
        %v3722 = vadd.f32 %v3720, %v3721
        %v3723 = vsel %vm2889, %v3689, 0.0
        %v3724 = vadd.f32 %v3722, %v3723
        %v3725 = vsel %vm2889, %v3690, 0.0
        %v3726 = vadd.f32 %v3724, %v3725
        %v3727 = vsel %vm2889, %v3691, 0.0
        %v3728 = vadd.f32 %v3726, %v3727
        %v3729 = vsel %vm2889, %v3692, 0.0
        %v3730 = vadd.f32 %v3728, %v3729
        %v3731 = vsel %vm2889, %v3693, 0.0
        %v3732 = vadd.f32 %v3730, %v3731
        %v3733 = vsel %vm2889, %v3694, 0.0
        %v3734 = vadd.f32 %v3732, %v3733
        %v3735 = vsel %vm2889, %v3695, 0.0
        %v3736 = vadd.f32 %v3734, %v3735
        %v3737 = vsel %vm2889, %v3696, 0.0
        %v3738 = vadd.f32 %v3736, %v3737
        %v3739 = vsel %vm2889, %v3697, 0.0
        %v3740 = vadd.f32 %v3738, %v3739
        %v3741 = vsel %vm2889, %v3698, 0.0
        %v3742 = vadd.f32 %v3740, %v3741
        %v3743 = vsel %vm2889, %v3699, 0.0
        %v3744 = vadd.f32 %v3742, %v3743
        %v3745 = vsel %vm2889, %v3700, 0.0
        %v3746 = vadd.f32 %v3744, %v3745
        %v3747 = vsel %vm2889, %v3701, 0.0
        %v3748 = vadd.f32 %v3746, %v3747
        %v3749 = vsel %vm2889, %v3702, 0.0
        %v3750 = vadd.f32 %v3748, %v3749
        %v3751 = vsel %vm2889, %v3703, 0.0
        %v3752 = vadd.f32 %v3750, %v3751
        %v3753 = vsel %vm2889, %v3704, 0.0
        %v3754 = vadd.f32 %v3752, %v3753
        %v3755 = vsel %vm2889, %v3705, 0.0
        %v3756 = vadd.f32 %v3754, %v3755
        %v3757 = vsel %vm2889, %v3706, 0.0
        %v3758 = vadd.f32 %v3756, %v3757
        %v3759 = vsel %vm2889, %v3707, 0.0
        %v3760 = vadd.f32 %v3758, %v3759
        %v3761 = vsel %vm2889, %v3708, 0.0
        %v3762 = vadd.f32 %v3760, %v3761
        %v3763 = vsel %vm2889, %v3709, 0.0
        %v3764 = vadd.f32 %v3762, %v3763
        %v3765 = vsel %vm2889, %v3710, 0.0
        %v3766 = vadd.f32 %v3764, %v3765
        %v3767 = vsel %vm2889, %v3711, 0.0
        %v3768 = vadd.f32 %v3766, %v3767
        %v3769 = vsel %vm2889, %v3712, 0.0
        %v3770 = vadd.f32 %v3768, %v3769
        %v3771 = vsel %vm2889, %v3713, 0.0
        %v3772 = vadd.f32 %v3770, %v3771
        %v3773 = vsel %vm2889, %v3714, 0.0
        %v3774 = vadd.f32 %v3772, %v3773
        %v3775 = vsel %vm2889, %v3715, 0.0
        %v3776 = vadd.f32 %v3774, %v3775
        %v3777 = vsel %vm2889, %v3716, 0.0
        %v3778 = vadd.f32 %v3776, %v3777
        %v3779 = vsel %vm2889, %v3717, 0.0
        %v3780 = vadd.f32 %v3778, %v3779
        %v3781 = vrot.slane %v3780, 4
        %v3782 = vadd.f32 %v3780, %v3781
        %v3783 = vrot.slane %v3782, 2
        %v3784 = vadd.f32 %v3782, %v3783
        %v3785 = vrot.slane %v3784, 1
        %v3786 = vadd.f32 %v3784, %v3785
        %vm3787 = vcmask 1040384
        %v3788 = vsel %vm3787, %v3685, %v3786
        %v3789 = vld [vmem:[%s5] sm:$0xff]
        %v3790 = vld [vmem:[%s5 + $0x8] sm:$0xff]
        %v3791 = vld [vmem:[%s5 + $0x10] sm:$0xff]
        %v3792 = vld [vmem:[%s5 + $0x18] sm:$0xff]
        %v3793 = vld [vmem:[%s5 + $0x20] sm:$0xff]
        %v3794 = vld [vmem:[%s5 + $0x28] sm:$0xff]
        %v3795 = vld [vmem:[%s5 + $0x30] sm:$0xff]
        %v3796 = vld [vmem:[%s5 + $0x38] sm:$0xff]
        %v3798 = vsel %vm2889, %v3788, 0
        %3800 = vmatprep.subr.mxu0 0.0
        %3801 = vmatpush1.msra.mxu0 0.0
        %3802 = vmatprep.subr.mxu0 0.0
        %3803 = vmatpush1.msra.mxu0 0.0
        %3804 = vmatprep.subr.mxu0 0.0
        %3805 = vmatpush1.msra.mxu0 0.0
        %3806 = vmatprep.subr.mxu0 0.0
        %3807 = vmatpush1.msra.mxu0 0.0
        %3808 = vmatprep.subr.mxu0 0.0
        %3809 = vmatpush1.msra.mxu0 0.0
        %3810 = vmatprep.subr.mxu0 0.0
        %3811 = vmatpush1.msra.mxu0 0.0
        %3812 = vmatprep.subr.mxu0 0.0
        %3813 = vmatpush1.msra.mxu0 0.0
        %3814 = vmatprep.subr.mxu0 0.0
        %3815 = vmatpush1.msra.mxu0 0.0
        %3816 = vmatprep.subr.mxu0 0.0
        %3817 = vmatpush1.msra.mxu0 %v3796
        %3818 = vmatprep.subr.mxu0 0.0
        %3819 = vmatpush1.msra.mxu0 %v3795
        %3820 = vmatprep.subr.mxu0 0.0
        %3821 = vmatpush1.msra.mxu0 %v3794
        %3822 = vmatprep.subr.mxu0 0.0
        %3823 = vmatpush1.msra.mxu0 %v3793
        %3824 = vmatprep.subr.mxu0 0.0
        %3825 = vmatpush1.msra.mxu0 %v3792
        %3826 = vmatprep.subr.mxu0 0.0
        %3827 = vmatpush1.msra.mxu0 %v3791
        %3828 = vmatprep.subr.mxu0 0.0
        %3829 = vmatpush1.msra.mxu0 %v3790
        %3830 = vmatprep.subr.mxu0 0.0
        %3831 = vmatpush1.msra.mxu0 %v3789
        %3832 = vmatprep.subr.mxu0 0.0
        %3833 = vmatpush2.msra.mxu0 0.0
        %3834 = vmatprep.subr.mxu0 0.0
        %3835 = vmatpush2.msra.mxu0 0.0
        %3836 = vmatprep.subr.mxu0 0.0
        %3837 = vmatpush2.msra.mxu0 0.0
        %3838 = vmatprep.subr.mxu0 0.0
        %3839 = vmatpush2.msra.mxu0 0.0
        %3840 = vmatprep.subr.mxu0 0.0
        %3841 = vmatpush2.msra.mxu0 0.0
        %3842 = vmatprep.subr.mxu0 0.0
        %3843 = vmatpush2.msra.mxu0 0.0
        %3844 = vmatprep.subr.mxu0 0.0
        %3845 = vmatpush2.msra.mxu0 0.0
        %3846 = vmatprep.subr.mxu0 0.0
        %3847 = vmatpush2.msra.mxu0 0.0
        %3848 = vmatprep.subr.mxu0 0.0
        %3849 = vmatpush2.msra.mxu0 0.0
        %3850 = vmatprep.subr.mxu0 0.0
        %3851 = vmatpush2.msra.mxu0 0.0
        %3852 = vmatprep.subr.mxu0 0.0
        %3853 = vmatpush2.msra.mxu0 0.0
        %3854 = vmatprep.subr.mxu0 0.0
        %3855 = vmatpush2.msra.mxu0 0.0
        %3856 = vmatprep.subr.mxu0 0.0
        %3857 = vmatpush2.msra.mxu0 0.0
        %3858 = vmatprep.subr.mxu0 0.0
        %3859 = vmatpush2.msra.mxu0 0.0
        %3860 = vmatprep.subr.mxu0 0.0
        %3861 = vmatpush2.msra.mxu0 0.0
        %3862 = vmatprep.subr.mxu0 0.0
        %3863 = vmatpush2.msra.mxu0 0.0
        %3864 = vmatprep.mubr.f32.mxu0 0.0
        %3865 = vmatmul.mubr.f32.gmra.mxu0 %v3798
        %v3866 = vpop.f32.mrf.mxu0
        %v3867 = vadd.f32 0.0, %v3866
        %v3868 = vpop.f32.mrf.mxu0
        %3869 = vdwg.mxu0
        %v3870 = vmul.f32 %v3867, %v3867
        %v3872 = vrot.slane %v3870, 7
        %v3874 = vsub.f32 %v3867, %v3872
        %v3875 = vmax.f32 %v3874, 0.0
        %v3876 = vlaneseq
        %v3877 = vshrl.u32 %v3876, 7
        %v3878 = vsub.s32 0, %v3877
        %v3879 = vrot.slane %v3867, %v3878
        %v3880 = vsub.f32 %v3491, %v3879
        %v3881 = vsub.f32 %v3494, %v3879
        %v3882 = vsub.f32 %v3499, %v3879
        %v3883 = vsub.f32 %v3502, %v3879
        %v3884 = vsub.f32 %v3507, %v3879
        %v3885 = vsub.f32 %v3510, %v3879
        %v3886 = vsub.f32 %v3515, %v3879
        %v3887 = vsub.f32 %v3518, %v3879
        %v3888 = vsub.f32 %v3523, %v3879
        %v3889 = vsub.f32 %v3526, %v3879
        %v3890 = vsub.f32 %v3531, %v3879
        %v3891 = vsub.f32 %v3534, %v3879
        %v3892 = vsub.f32 %v3539, %v3879
        %v3893 = vsub.f32 %v3542, %v3879
        %v3894 = vsub.f32 %v3547, %v3879
        %v3895 = vsub.f32 %v3550, %v3879
        %v3896 = vsub.f32 %v3555, %v3879
        %v3897 = vsub.f32 %v3558, %v3879
        %v3898 = vsub.f32 %v3563, %v3879
        %v3899 = vsub.f32 %v3566, %v3879
        %v3900 = vsub.f32 %v3571, %v3879
        %v3901 = vsub.f32 %v3574, %v3879
        %v3902 = vsub.f32 %v3579, %v3879
        %v3903 = vsub.f32 %v3582, %v3879
        %v3904 = vsub.f32 %v3587, %v3879
        %v3905 = vsub.f32 %v3590, %v3879
        %v3906 = vsub.f32 %v3595, %v3879
        %v3907 = vsub.f32 %v3598, %v3879
        %v3908 = vsub.f32 %v3603, %v3879
        %v3909 = vsub.f32 %v3606, %v3879
        %v3910 = vsub.f32 %v3611, %v3879
        %v3911 = vsub.f32 %v3614, %v3879
        %v3912 = vadd.f32 %v3875, 1e-05
        %v3913 = vrsqrt.pop %v3912
        %v3914 = vlaneseq
        %v3915 = vshrl.u32 %v3914, 7
        %v3916 = vsub.s32 1, %v3915
        %v3917 = vrot.slane %v3913, %v3916
        %v3918 = vmul.f32 %v3880, %v3917
        %v3919 = vmul.f32 %v3881, %v3917
        %v3920 = vmul.f32 %v3882, %v3917
        %v3921 = vmul.f32 %v3883, %v3917
        %v3922 = vmul.f32 %v3884, %v3917
        %v3923 = vmul.f32 %v3885, %v3917
        %v3924 = vmul.f32 %v3886, %v3917
        %v3925 = vmul.f32 %v3887, %v3917
        %v3926 = vmul.f32 %v3888, %v3917
        %v3927 = vmul.f32 %v3889, %v3917
        %v3928 = vmul.f32 %v3890, %v3917
        %v3929 = vmul.f32 %v3891, %v3917
        %v3930 = vmul.f32 %v3892, %v3917
        %v3931 = vmul.f32 %v3893, %v3917
        %v3932 = vmul.f32 %v3894, %v3917
        %v3933 = vmul.f32 %v3895, %v3917
        %v3934 = vmul.f32 %v3896, %v3917
        %v3935 = vmul.f32 %v3897, %v3917
        %v3936 = vmul.f32 %v3898, %v3917
        %v3937 = vmul.f32 %v3899, %v3917
        %v3938 = vmul.f32 %v3900, %v3917
        %v3939 = vmul.f32 %v3901, %v3917
        %v3940 = vmul.f32 %v3902, %v3917
        %v3941 = vmul.f32 %v3903, %v3917
        %v3942 = vmul.f32 %v3904, %v3917
        %v3943 = vmul.f32 %v3905, %v3917
        %v3944 = vmul.f32 %v3906, %v3917
        %v3945 = vmul.f32 %v3907, %v3917
        %v3946 = vmul.f32 %v3908, %v3917
        %v3947 = vmul.f32 %v3909, %v3917
        %v3948 = vmul.f32 %v3910, %v3917
        %v3949 = vmul.f32 %v3911, %v3917
        %v3950 = vld [vmem:[%s4 + $0x1] sm:$0x1]
        %v3951 = vlaneseq
        %v3952 = vshrl.u32 %v3951, 7
        %v3953 = vsub.s32 0, %v3952
        %v3954 = vrot.slane %v3950, %v3953
        %v3955 = vmul.f32 %v3918, %v3954
        %v3956 = vmul.f32 %v3919, %v3954
        %v3957 = vmul.f32 %v3920, %v3954
        %v3958 = vmul.f32 %v3921, %v3954
        %v3959 = vmul.f32 %v3922, %v3954
        %v3960 = vmul.f32 %v3923, %v3954
        %v3961 = vmul.f32 %v3924, %v3954
        %v3962 = vmul.f32 %v3925, %v3954
        %v3963 = vmul.f32 %v3926, %v3954
        %v3964 = vmul.f32 %v3927, %v3954
        %v3965 = vmul.f32 %v3928, %v3954
        %v3966 = vmul.f32 %v3929, %v3954
        %v3967 = vmul.f32 %v3930, %v3954
        %v3968 = vmul.f32 %v3931, %v3954
        %v3969 = vmul.f32 %v3932, %v3954
        %v3970 = vmul.f32 %v3933, %v3954
        %v3971 = vmul.f32 %v3934, %v3954
        %v3972 = vmul.f32 %v3935, %v3954
        %v3973 = vmul.f32 %v3936, %v3954
        %v3974 = vmul.f32 %v3937, %v3954
        %v3975 = vmul.f32 %v3938, %v3954
        %v3976 = vmul.f32 %v3939, %v3954
        %v3977 = vmul.f32 %v3940, %v3954
        %v3978 = vmul.f32 %v3941, %v3954
        %v3979 = vmul.f32 %v3942, %v3954
        %v3980 = vmul.f32 %v3943, %v3954
        %v3981 = vmul.f32 %v3944, %v3954
        %v3982 = vmul.f32 %v3945, %v3954
        %v3983 = vmul.f32 %v3946, %v3954
        %v3984 = vmul.f32 %v3947, %v3954
        %v3985 = vmul.f32 %v3948, %v3954
        %v3986 = vmul.f32 %v3949, %v3954
        %v3987 = vld [vmem:[%s4 + $0x2] sm:$0x1]
        %v3988 = vlaneseq
        %v3989 = vshrl.u32 %v3988, 7
        %v3990 = vsub.s32 0, %v3989
        %v3991 = vrot.slane %v3987, %v3990
        %v3992 = vadd.f32 %v3955, %v3991
        %v3993 = vadd.f32 %v3956, %v3991
        %v3994 = vadd.f32 %v3957, %v3991
        %v3995 = vadd.f32 %v3958, %v3991
        %v3996 = vadd.f32 %v3959, %v3991
        %v3997 = vadd.f32 %v3960, %v3991
        %v3998 = vadd.f32 %v3961, %v3991
        %v3999 = vadd.f32 %v3962, %v3991
        %v4000 = vadd.f32 %v3963, %v3991
        %v4001 = vadd.f32 %v3964, %v3991
        %v4002 = vadd.f32 %v3965, %v3991
        %v4003 = vadd.f32 %v3966, %v3991
        %v4004 = vadd.f32 %v3967, %v3991
        %v4005 = vadd.f32 %v3968, %v3991
        %v4006 = vadd.f32 %v3969, %v3991
        %v4007 = vadd.f32 %v3970, %v3991
        %v4008 = vadd.f32 %v3971, %v3991
        %v4009 = vadd.f32 %v3972, %v3991
        %v4010 = vadd.f32 %v3973, %v3991
        %v4011 = vadd.f32 %v3974, %v3991
        %v4012 = vadd.f32 %v3975, %v3991
        %v4013 = vadd.f32 %v3976, %v3991
        %v4014 = vadd.f32 %v3977, %v3991
        %v4015 = vadd.f32 %v3978, %v3991
        %v4016 = vadd.f32 %v3979, %v3991
        %v4017 = vadd.f32 %v3980, %v3991
        %v4018 = vadd.f32 %v3981, %v3991
        %v4019 = vadd.f32 %v3982, %v3991
        %v4020 = vadd.f32 %v3983, %v3991
        %v4021 = vadd.f32 %v3984, %v3991
        %v4022 = vadd.f32 %v3985, %v3991
        %v4023 = vadd.f32 %v3986, %v3991
        %v4024 = vld [vmem:[%s355] sm:$0x1]
        %v4026 = vlaneseq
        %v4027 = vshrl.u32 %v4026, 7
        %v4028 = vsub.s32 0, %v4027
        %v4029 = vrot.slane %v4024, %v4028
        %v4031 = vmul.f32 %v4029, %v3992
        %v4032 = vmul.f32 %v4029, %v3993
        %v4033 = vmul.f32 %v4029, %v3994
        %v4034 = vmul.f32 %v4029, %v3995
        %v4035 = vmul.f32 %v4029, %v3996
        %v4036 = vmul.f32 %v4029, %v3997
        %v4037 = vmul.f32 %v4029, %v3998
        %v4038 = vmul.f32 %v4029, %v3999
        %v4039 = vmul.f32 %v4029, %v4000
        %v4040 = vmul.f32 %v4029, %v4001
        %v4041 = vmul.f32 %v4029, %v4002
        %v4042 = vmul.f32 %v4029, %v4003
        %v4043 = vmul.f32 %v4029, %v4004
        %v4044 = vmul.f32 %v4029, %v4005
        %v4045 = vmul.f32 %v4029, %v4006
        %v4046 = vmul.f32 %v4029, %v4007
        %v4047 = vmul.f32 %v4029, %v4008
        %v4048 = vmul.f32 %v4029, %v4009
        %v4049 = vmul.f32 %v4029, %v4010
        %v4050 = vmul.f32 %v4029, %v4011
        %v4051 = vmul.f32 %v4029, %v4012
        %v4052 = vmul.f32 %v4029, %v4013
        %v4053 = vmul.f32 %v4029, %v4014
        %v4054 = vmul.f32 %v4029, %v4015
        %v4055 = vmul.f32 %v4029, %v4016
        %v4056 = vmul.f32 %v4029, %v4017
        %v4057 = vmul.f32 %v4029, %v4018
        %v4058 = vmul.f32 %v4029, %v4019
        %v4059 = vmul.f32 %v4029, %v4020
        %v4060 = vmul.f32 %v4029, %v4021
        %v4061 = vmul.f32 %v4029, %v4022
        %v4062 = vmul.f32 %v4029, %v4023
        %v4063 = vld [vmem:[%s358] sm:$0x1]
        %v4065 = vlaneseq
        %v4066 = vshrl.u32 %v4065, 7
        %v4067 = vsub.s32 0, %v4066
        %v4068 = vrot.slane %v4063, %v4067
        %v4070 = vadd.f32 %v4031, %v4068
        %v4071 = vadd.f32 %v4032, %v4068
        %v4072 = vadd.f32 %v4033, %v4068
        %v4073 = vadd.f32 %v4034, %v4068
        %v4074 = vadd.f32 %v4035, %v4068
        %v4075 = vadd.f32 %v4036, %v4068
        %v4076 = vadd.f32 %v4037, %v4068
        %v4077 = vadd.f32 %v4038, %v4068
        %v4078 = vadd.f32 %v4039, %v4068
        %v4079 = vadd.f32 %v4040, %v4068
        %v4080 = vadd.f32 %v4041, %v4068
        %v4081 = vadd.f32 %v4042, %v4068
        %v4082 = vadd.f32 %v4043, %v4068
        %v4083 = vadd.f32 %v4044, %v4068
        %v4084 = vadd.f32 %v4045, %v4068
        %v4085 = vadd.f32 %v4046, %v4068
        %v4086 = vadd.f32 %v4047, %v4068
        %v4087 = vadd.f32 %v4048, %v4068
        %v4088 = vadd.f32 %v4049, %v4068
        %v4089 = vadd.f32 %v4050, %v4068
        %v4090 = vadd.f32 %v4051, %v4068
        %v4091 = vadd.f32 %v4052, %v4068
        %v4092 = vadd.f32 %v4053, %v4068
        %v4093 = vadd.f32 %v4054, %v4068
        %v4094 = vadd.f32 %v4055, %v4068
        %v4095 = vadd.f32 %v4056, %v4068
        %v4096 = vadd.f32 %v4057, %v4068
        %v4097 = vadd.f32 %v4058, %v4068
        %v4098 = vadd.f32 %v4059, %v4068
        %v4099 = vadd.f32 %v4060, %v4068
        %v4100 = vadd.f32 %v4061, %v4068
        %v4101 = vadd.f32 %v4062, %v4068
        %v4102 = vxor.u32 %v4070, 2147483648
        %v4103 = vxor.u32 %v4071, 2147483648
        %v4104 = vxor.u32 %v4072, 2147483648
        %v4105 = vxor.u32 %v4073, 2147483648
        %v4106 = vxor.u32 %v4074, 2147483648
        %v4107 = vxor.u32 %v4075, 2147483648
        %v4108 = vxor.u32 %v4076, 2147483648
        %v4109 = vxor.u32 %v4077, 2147483648
        %v4110 = vxor.u32 %v4078, 2147483648
        %v4111 = vxor.u32 %v4079, 2147483648
        %v4112 = vxor.u32 %v4080, 2147483648
        %v4113 = vxor.u32 %v4081, 2147483648
        %v4114 = vxor.u32 %v4082, 2147483648
        %v4115 = vxor.u32 %v4083, 2147483648
        %v4116 = vxor.u32 %v4084, 2147483648
        %v4117 = vxor.u32 %v4085, 2147483648
        %v4118 = vxor.u32 %v4086, 2147483648
        %v4119 = vxor.u32 %v4087, 2147483648
        %v4120 = vxor.u32 %v4088, 2147483648
        %v4121 = vxor.u32 %v4089, 2147483648
        %v4122 = vxor.u32 %v4090, 2147483648
        %v4123 = vxor.u32 %v4091, 2147483648
        %v4124 = vxor.u32 %v4092, 2147483648
        %v4125 = vxor.u32 %v4093, 2147483648
        %v4126 = vxor.u32 %v4094, 2147483648
        %v4127 = vxor.u32 %v4095, 2147483648
        %v4128 = vxor.u32 %v4096, 2147483648
        %v4129 = vxor.u32 %v4097, 2147483648
        %v4130 = vxor.u32 %v4098, 2147483648
        %v4131 = vxor.u32 %v4099, 2147483648
        %v4132 = vxor.u32 %v4100, 2147483648
        %v4133 = vxor.u32 %v4101, 2147483648
        %v4134 = vmul.f32 %v4102, 1.442695
        %v4135 = vpow.pop %v4134
        %v4136 = vmul.f32 %v4103, 1.442695
        %v4137 = vpow.pop %v4136
        %v4138 = vmul.f32 %v4104, 1.442695
        %v4139 = vpow.pop %v4138
        %v4140 = vmul.f32 %v4105, 1.442695
        %v4141 = vpow.pop %v4140
        %v4142 = vmul.f32 %v4106, 1.442695
        %v4143 = vpow.pop %v4142
        %v4144 = vmul.f32 %v4107, 1.442695
        %v4145 = vpow.pop %v4144
        %v4146 = vmul.f32 %v4108, 1.442695
        %v4147 = vpow.pop %v4146
        %v4148 = vmul.f32 %v4109, 1.442695
        %v4149 = vpow.pop %v4148
        %v4150 = vmul.f32 %v4110, 1.442695
        %v4151 = vpow.pop %v4150
        %v4152 = vmul.f32 %v4111, 1.442695
        %v4153 = vpow.pop %v4152
        %v4154 = vmul.f32 %v4112, 1.442695
        %v4155 = vpow.pop %v4154
        %v4156 = vmul.f32 %v4113, 1.442695
        %v4157 = vpow.pop %v4156
        %v4158 = vmul.f32 %v4114, 1.442695
        %v4159 = vpow.pop %v4158
        %v4160 = vmul.f32 %v4115, 1.442695
        %v4161 = vpow.pop %v4160
        %v4162 = vmul.f32 %v4116, 1.442695
        %v4163 = vpow.pop %v4162
        %v4164 = vmul.f32 %v4117, 1.442695
        %v4165 = vpow.pop %v4164
        %v4166 = vmul.f32 %v4118, 1.442695
        %v4167 = vpow.pop %v4166
        %v4168 = vmul.f32 %v4119, 1.442695
        %v4169 = vpow.pop %v4168
        %v4170 = vmul.f32 %v4120, 1.442695
        %v4171 = vpow.pop %v4170
        %v4172 = vmul.f32 %v4121, 1.442695
        %v4173 = vpow.pop %v4172
        %v4174 = vmul.f32 %v4122, 1.442695
        %v4175 = vpow.pop %v4174
        %v4176 = vmul.f32 %v4123, 1.442695
        %v4177 = vpow.pop %v4176
        %v4178 = vmul.f32 %v4124, 1.442695
        %v4179 = vpow.pop %v4178
        %v4180 = vmul.f32 %v4125, 1.442695
        %v4181 = vpow.pop %v4180
        %v4182 = vmul.f32 %v4126, 1.442695
        %v4183 = vpow.pop %v4182
        %v4184 = vmul.f32 %v4127, 1.442695
        %v4185 = vpow.pop %v4184
        %v4186 = vmul.f32 %v4128, 1.442695
        %v4187 = vpow.pop %v4186
        %v4188 = vmul.f32 %v4129, 1.442695
        %v4189 = vpow.pop %v4188
        %v4190 = vmul.f32 %v4130, 1.442695
        %v4191 = vpow.pop %v4190
        %v4192 = vmul.f32 %v4131, 1.442695
        %v4193 = vpow.pop %v4192
        %v4194 = vmul.f32 %v4132, 1.442695
        %v4195 = vpow.pop %v4194
        %v4196 = vmul.f32 %v4133, 1.442695
        %v4197 = vpow.pop %v4196
        %v4198 = vadd.f32 %v4135, 1.0
        %v4199 = vadd.f32 %v4137, 1.0
        %v4200 = vadd.f32 %v4139, 1.0
        %v4201 = vadd.f32 %v4141, 1.0
        %v4202 = vadd.f32 %v4143, 1.0
        %v4203 = vadd.f32 %v4145, 1.0
        %v4204 = vadd.f32 %v4147, 1.0
        %v4205 = vadd.f32 %v4149, 1.0
        %v4206 = vadd.f32 %v4151, 1.0
        %v4207 = vadd.f32 %v4153, 1.0
        %v4208 = vadd.f32 %v4155, 1.0
        %v4209 = vadd.f32 %v4157, 1.0
        %v4210 = vadd.f32 %v4159, 1.0
        %v4211 = vadd.f32 %v4161, 1.0
        %v4212 = vadd.f32 %v4163, 1.0
        %v4213 = vadd.f32 %v4165, 1.0
        %v4214 = vadd.f32 %v4167, 1.0
        %v4215 = vadd.f32 %v4169, 1.0
        %v4216 = vadd.f32 %v4171, 1.0
        %v4217 = vadd.f32 %v4173, 1.0
        %v4218 = vadd.f32 %v4175, 1.0
        %v4219 = vadd.f32 %v4177, 1.0
        %v4220 = vadd.f32 %v4179, 1.0
        %v4221 = vadd.f32 %v4181, 1.0
        %v4222 = vadd.f32 %v4183, 1.0
        %v4223 = vadd.f32 %v4185, 1.0
        %v4224 = vadd.f32 %v4187, 1.0
        %v4225 = vadd.f32 %v4189, 1.0
        %v4226 = vadd.f32 %v4191, 1.0
        %v4227 = vadd.f32 %v4193, 1.0
        %v4228 = vadd.f32 %v4195, 1.0
        %v4229 = vadd.f32 %v4197, 1.0
        %v4230 = vrcp.pop %v4198
        %v4231 = vmul.f32 1.0, %v4230
        %v4232 = vrcp.pop %v4199
        %v4233 = vmul.f32 1.0, %v4232
        %v4234 = vrcp.pop %v4200
        %v4235 = vmul.f32 1.0, %v4234
        %v4236 = vrcp.pop %v4201
        %v4237 = vmul.f32 1.0, %v4236
        %v4238 = vrcp.pop %v4202
        %v4239 = vmul.f32 1.0, %v4238
        %v4240 = vrcp.pop %v4203
        %v4241 = vmul.f32 1.0, %v4240
        %v4242 = vrcp.pop %v4204
        %v4243 = vmul.f32 1.0, %v4242
        %v4244 = vrcp.pop %v4205
        %v4245 = vmul.f32 1.0, %v4244
        %v4246 = vrcp.pop %v4206
        %v4247 = vmul.f32 1.0, %v4246
        %v4248 = vrcp.pop %v4207
        %v4249 = vmul.f32 1.0, %v4248
        %v4250 = vrcp.pop %v4208
        %v4251 = vmul.f32 1.0, %v4250
        %v4252 = vrcp.pop %v4209
        %v4253 = vmul.f32 1.0, %v4252
        %v4254 = vrcp.pop %v4210
        %v4255 = vmul.f32 1.0, %v4254
        %v4256 = vrcp.pop %v4211
        %v4257 = vmul.f32 1.0, %v4256
        %v4258 = vrcp.pop %v4212
        %v4259 = vmul.f32 1.0, %v4258
        %v4260 = vrcp.pop %v4213
        %v4261 = vmul.f32 1.0, %v4260
        %v4262 = vrcp.pop %v4214
        %v4263 = vmul.f32 1.0, %v4262
        %v4264 = vrcp.pop %v4215
        %v4265 = vmul.f32 1.0, %v4264
        %v4266 = vrcp.pop %v4216
        %v4267 = vmul.f32 1.0, %v4266
        %v4268 = vrcp.pop %v4217
        %v4269 = vmul.f32 1.0, %v4268
        %v4270 = vrcp.pop %v4218
        %v4271 = vmul.f32 1.0, %v4270
        %v4272 = vrcp.pop %v4219
        %v4273 = vmul.f32 1.0, %v4272
        %v4274 = vrcp.pop %v4220
        %v4275 = vmul.f32 1.0, %v4274
        %v4276 = vrcp.pop %v4221
        %v4277 = vmul.f32 1.0, %v4276
        %v4278 = vrcp.pop %v4222
        %v4279 = vmul.f32 1.0, %v4278
        %v4280 = vrcp.pop %v4223
        %v4281 = vmul.f32 1.0, %v4280
        %v4282 = vrcp.pop %v4224
        %v4283 = vmul.f32 1.0, %v4282
        %v4284 = vrcp.pop %v4225
        %v4285 = vmul.f32 1.0, %v4284
        %v4286 = vrcp.pop %v4226
        %v4287 = vmul.f32 1.0, %v4286
        %v4288 = vrcp.pop %v4227
        %v4289 = vmul.f32 1.0, %v4288
        %v4290 = vrcp.pop %v4228
        %v4291 = vmul.f32 1.0, %v4290
        %v4292 = vrcp.pop %v4229
        %v4293 = vmul.f32 1.0, %v4292
        %v4294 = vmul.f32 %v4070, %v4231
        %v4295 = vmul.f32 %v4071, %v4233
        %v4296 = vmul.f32 %v4072, %v4235
        %v4297 = vmul.f32 %v4073, %v4237
        %v4298 = vmul.f32 %v4074, %v4239
        %v4299 = vmul.f32 %v4075, %v4241
        %v4300 = vmul.f32 %v4076, %v4243
        %v4301 = vmul.f32 %v4077, %v4245
        %v4302 = vmul.f32 %v4078, %v4247
        %v4303 = vmul.f32 %v4079, %v4249
        %v4304 = vmul.f32 %v4080, %v4251
        %v4305 = vmul.f32 %v4081, %v4253
        %v4306 = vmul.f32 %v4082, %v4255
        %v4307 = vmul.f32 %v4083, %v4257
        %v4308 = vmul.f32 %v4084, %v4259
        %v4309 = vmul.f32 %v4085, %v4261
        %v4310 = vmul.f32 %v4086, %v4263
        %v4311 = vmul.f32 %v4087, %v4265
        %v4312 = vmul.f32 %v4088, %v4267
        %v4313 = vmul.f32 %v4089, %v4269
        %v4314 = vmul.f32 %v4090, %v4271
        %v4315 = vmul.f32 %v4091, %v4273
        %v4316 = vmul.f32 %v4092, %v4275
        %v4317 = vmul.f32 %v4093, %v4277
        %v4318 = vmul.f32 %v4094, %v4279
        %v4319 = vmul.f32 %v4095, %v4281
        %v4320 = vmul.f32 %v4096, %v4283
        %v4321 = vmul.f32 %v4097, %v4285
        %v4322 = vmul.f32 %v4098, %v4287
        %v4323 = vmul.f32 %v4099, %v4289
        %v4324 = vmul.f32 %v4100, %v4291
        %v4325 = vmul.f32 %v4101, %v4293
        %v4326 = vld [vmem:[%s4 + $0x3] sm:$0x1]
        %v4327 = vpack.c.bf16 %v361, %v360
        %v4328 = vpack.c.bf16 %v363, %v362
        %v4329 = vpack.c.bf16 %v365, %v364
        %v4330 = vpack.c.bf16 %v367, %v366
        %v4331 = vpack.c.bf16 %v369, %v368
        %v4332 = vpack.c.bf16 %v371, %v370
        %v4333 = vpack.c.bf16 %v373, %v372
        %v4334 = vpack.c.bf16 %v375, %v374
        %v4335 = vpack.c.bf16 %v377, %v376
        %v4336 = vpack.c.bf16 %v379, %v378
        %v4337 = vpack.c.bf16 %v381, %v380
        %v4338 = vpack.c.bf16 %v383, %v382
        %v4339 = vpack.c.bf16 %v385, %v384
        %v4340 = vpack.c.bf16 %v387, %v386
        %v4341 = vpack.c.bf16 %v389, %v388
        %v4342 = vpack.c.bf16 %v391, %v390
        %v4343 = vrot.slane %v4294, 7
        %v4344 = vrot.slane %v4295, 7
        %v4345 = vrot.slane %v4296, 7
        %v4346 = vrot.slane %v4297, 7
        %v4347 = vrot.slane %v4298, 7
        %v4348 = vrot.slane %v4299, 7
        %v4349 = vrot.slane %v4300, 7
        %v4350 = vrot.slane %v4301, 7
        %v4351 = vrot.slane %v4302, 7
        %v4352 = vrot.slane %v4303, 7
        %v4353 = vrot.slane %v4304, 7
        %v4354 = vrot.slane %v4305, 7
        %v4355 = vrot.slane %v4306, 7
        %v4356 = vrot.slane %v4307, 7
        %v4357 = vrot.slane %v4308, 7
        %v4358 = vrot.slane %v4309, 7
        %v4359 = vrot.slane %v4310, 7
        %v4360 = vrot.slane %v4311, 7
        %v4361 = vrot.slane %v4312, 7
        %v4362 = vrot.slane %v4313, 7
        %v4363 = vrot.slane %v4314, 7
        %v4364 = vrot.slane %v4315, 7
        %v4365 = vrot.slane %v4316, 7
        %v4366 = vrot.slane %v4317, 7
        %v4367 = vrot.slane %v4318, 7
        %v4368 = vrot.slane %v4319, 7
        %v4369 = vrot.slane %v4320, 7
        %v4370 = vrot.slane %v4321, 7
        %v4371 = vrot.slane %v4322, 7
        %v4372 = vrot.slane %v4323, 7
        %v4373 = vrot.slane %v4324, 7
        %v4374 = vrot.slane %v4325, 7
        %v4375 = vsel %vm967, %v4373, %v4374
        %v4376 = vsel %vm967, %v4372, %v4373
        %v4377 = vsel %vm967, %v4371, %v4372
        %v4378 = vsel %vm967, %v4370, %v4371
        %v4379 = vsel %vm967, %v4369, %v4370
        %v4380 = vsel %vm967, %v4368, %v4369
        %v4381 = vsel %vm967, %v4367, %v4368
        %v4382 = vsel %vm967, %v4366, %v4367
        %v4383 = vsel %vm967, %v4365, %v4366
        %v4384 = vsel %vm967, %v4364, %v4365
        %v4385 = vsel %vm967, %v4363, %v4364
        %v4386 = vsel %vm967, %v4362, %v4363
        %v4387 = vsel %vm967, %v4361, %v4362
        %v4388 = vsel %vm967, %v4360, %v4361
        %v4389 = vsel %vm967, %v4359, %v4360
        %v4390 = vsel %vm967, %v4358, %v4359
        %v4391 = vsel %vm967, %v4357, %v4358
        %v4392 = vsel %vm967, %v4356, %v4357
        %v4393 = vsel %vm967, %v4355, %v4356
        %v4394 = vsel %vm967, %v4354, %v4355
        %v4395 = vsel %vm967, %v4353, %v4354
        %v4396 = vsel %vm967, %v4352, %v4353
        %v4397 = vsel %vm967, %v4351, %v4352
        %v4398 = vsel %vm967, %v4350, %v4351
        %v4399 = vsel %vm967, %v4349, %v4350
        %v4400 = vsel %vm967, %v4348, %v4349
        %v4401 = vsel %vm967, %v4347, %v4348
        %v4402 = vsel %vm967, %v4346, %v4347
        %v4403 = vsel %vm967, %v4345, %v4346
        %v4404 = vsel %vm967, %v4344, %v4345
        %v4405 = vsel %vm967, %v4343, %v4344
        %v4406 = vsel %vm967, %v4374, %v4343
        %v4407 = vmul.f32 %v4376, %v1035
        %v4408 = vmul.f32 %v4375, %v1040
        %v4409 = vmul.f32 %v4406, %v1045
        %v4410 = vmul.f32 %v4405, %v1050
        %v4411 = vmul.f32 %v4404, %v1055
        %v4412 = vmul.f32 %v4403, %v1060
        %v4413 = vmul.f32 %v4402, %v1065
        %v4414 = vmul.f32 %v4401, %v1070
        %v4415 = vmul.f32 %v4400, %v1075
        %v4416 = vmul.f32 %v4399, %v1080
        %v4417 = vmul.f32 %v4398, %v1085
        %v4418 = vmul.f32 %v4397, %v1090
        %v4419 = vmul.f32 %v4396, %v1095
        %v4420 = vmul.f32 %v4395, %v1100
        %v4421 = vmul.f32 %v4394, %v1105
        %v4422 = vmul.f32 %v4393, %v1110
        %v4423 = vmul.f32 %v4392, %v1115
        %v4424 = vmul.f32 %v4391, %v1120
        %v4425 = vmul.f32 %v4390, %v1125
        %v4426 = vmul.f32 %v4389, %v1130
        %v4427 = vmul.f32 %v4388, %v1135
        %v4428 = vmul.f32 %v4387, %v1140
        %v4429 = vmul.f32 %v4386, %v1145
        %v4430 = vmul.f32 %v4385, %v1150
        %v4431 = vmul.f32 %v4384, %v1155
        %v4432 = vmul.f32 %v4383, %v1160
        %v4433 = vmul.f32 %v4382, %v1165
        %v4434 = vmul.f32 %v4381, %v1170
        %v4435 = vmul.f32 %v4380, %v1175
        %v4436 = vmul.f32 %v4379, %v1180
        %v4437 = vmul.f32 %v4378, %v1185
        %v4438 = vmul.f32 %v4377, %v1190
        %v4439 = vpack.c.bf16 %v4408, %v4407
        %v4440 = vpack.c.bf16 %v4410, %v4409
        %v4441 = vpack.c.bf16 %v4412, %v4411
        %v4442 = vpack.c.bf16 %v4414, %v4413
        %v4443 = vpack.c.bf16 %v4416, %v4415
        %v4444 = vpack.c.bf16 %v4418, %v4417
        %v4445 = vpack.c.bf16 %v4420, %v4419
        %v4446 = vpack.c.bf16 %v4422, %v4421
        %v4447 = vpack.c.bf16 %v4424, %v4423
        %v4448 = vpack.c.bf16 %v4426, %v4425
        %v4449 = vpack.c.bf16 %v4428, %v4427
        %v4450 = vpack.c.bf16 %v4430, %v4429
        %v4451 = vpack.c.bf16 %v4432, %v4431
        %v4452 = vpack.c.bf16 %v4434, %v4433
        %v4453 = vpack.c.bf16 %v4436, %v4435
        %v4454 = vpack.c.bf16 %v4438, %v4437
        %v4455 = vmul.f32 %v4324, %v1242
        %v4456 = vmul.f32 %v4325, %v1246
        %v4457 = vmul.f32 %v4294, %v1250
        %v4458 = vmul.f32 %v4295, %v1254
        %v4459 = vmul.f32 %v4296, %v1258
        %v4460 = vmul.f32 %v4297, %v1262
        %v4461 = vmul.f32 %v4298, %v1266
        %v4462 = vmul.f32 %v4299, %v1270
        %v4463 = vmul.f32 %v4300, %v1274
        %v4464 = vmul.f32 %v4301, %v1278
        %v4465 = vmul.f32 %v4302, %v1282
        %v4466 = vmul.f32 %v4303, %v1286
        %v4467 = vmul.f32 %v4304, %v1290
        %v4468 = vmul.f32 %v4305, %v1294
        %v4469 = vmul.f32 %v4306, %v1298
        %v4470 = vmul.f32 %v4307, %v1302
        %v4471 = vmul.f32 %v4308, %v1306
        %v4472 = vmul.f32 %v4309, %v1310
        %v4473 = vmul.f32 %v4310, %v1314
        %v4474 = vmul.f32 %v4311, %v1318
        %v4475 = vmul.f32 %v4312, %v1322
        %v4476 = vmul.f32 %v4313, %v1326
        %v4477 = vmul.f32 %v4314, %v1330
        %v4478 = vmul.f32 %v4315, %v1334
        %v4479 = vmul.f32 %v4316, %v1338
        %v4480 = vmul.f32 %v4317, %v1342
        %v4481 = vmul.f32 %v4318, %v1346
        %v4482 = vmul.f32 %v4319, %v1350
        %v4483 = vmul.f32 %v4320, %v1354
        %v4484 = vmul.f32 %v4321, %v1358
        %v4485 = vmul.f32 %v4322, %v1362
        %v4486 = vmul.f32 %v4323, %v1366
        %v4487 = vpack.c.bf16 %v4456, %v4455
        %v4488 = vpack.c.bf16 %v4458, %v4457
        %v4489 = vpack.c.bf16 %v4460, %v4459
        %v4490 = vpack.c.bf16 %v4462, %v4461
        %v4491 = vpack.c.bf16 %v4464, %v4463
        %v4492 = vpack.c.bf16 %v4466, %v4465
        %v4493 = vpack.c.bf16 %v4468, %v4467
        %v4494 = vpack.c.bf16 %v4470, %v4469
        %v4495 = vpack.c.bf16 %v4472, %v4471
        %v4496 = vpack.c.bf16 %v4474, %v4473
        %v4497 = vpack.c.bf16 %v4476, %v4475
        %v4498 = vpack.c.bf16 %v4478, %v4477
        %v4499 = vpack.c.bf16 %v4480, %v4479
        %v4500 = vpack.c.bf16 %v4482, %v4481
        %v4501 = vpack.c.bf16 %v4484, %v4483
        %v4502 = vpack.c.bf16 %v4486, %v4485
        %v4503 = vrot.slane %v4294, 1
        %v4504 = vrot.slane %v4295, 1
        %v4505 = vrot.slane %v4296, 1
        %v4506 = vrot.slane %v4297, 1
        %v4507 = vrot.slane %v4298, 1
        %v4508 = vrot.slane %v4299, 1
        %v4509 = vrot.slane %v4300, 1
        %v4510 = vrot.slane %v4301, 1
        %v4511 = vrot.slane %v4302, 1
        %v4512 = vrot.slane %v4303, 1
        %v4513 = vrot.slane %v4304, 1
        %v4514 = vrot.slane %v4305, 1
        %v4515 = vrot.slane %v4306, 1
        %v4516 = vrot.slane %v4307, 1
        %v4517 = vrot.slane %v4308, 1
        %v4518 = vrot.slane %v4309, 1
        %v4519 = vrot.slane %v4310, 1
        %v4520 = vrot.slane %v4311, 1
        %v4521 = vrot.slane %v4312, 1
        %v4522 = vrot.slane %v4313, 1
        %v4523 = vrot.slane %v4314, 1
        %v4524 = vrot.slane %v4315, 1
        %v4525 = vrot.slane %v4316, 1
        %v4526 = vrot.slane %v4317, 1
        %v4527 = vrot.slane %v4318, 1
        %v4528 = vrot.slane %v4319, 1
        %v4529 = vrot.slane %v4320, 1
        %v4530 = vrot.slane %v4321, 1
        %v4531 = vrot.slane %v4322, 1
        %v4532 = vrot.slane %v4323, 1
        %v4533 = vrot.slane %v4324, 1
        %v4534 = vrot.slane %v4325, 1
        %v4535 = vsel %vm1448, %v4533, %v4534
        %v4536 = vsel %vm1448, %v4532, %v4533
        %v4537 = vsel %vm1448, %v4531, %v4532
        %v4538 = vsel %vm1448, %v4530, %v4531
        %v4539 = vsel %vm1448, %v4529, %v4530
        %v4540 = vsel %vm1448, %v4528, %v4529
        %v4541 = vsel %vm1448, %v4527, %v4528
        %v4542 = vsel %vm1448, %v4526, %v4527
        %v4543 = vsel %vm1448, %v4525, %v4526
        %v4544 = vsel %vm1448, %v4524, %v4525
        %v4545 = vsel %vm1448, %v4523, %v4524
        %v4546 = vsel %vm1448, %v4522, %v4523
        %v4547 = vsel %vm1448, %v4521, %v4522
        %v4548 = vsel %vm1448, %v4520, %v4521
        %v4549 = vsel %vm1448, %v4519, %v4520
        %v4550 = vsel %vm1448, %v4518, %v4519
        %v4551 = vsel %vm1448, %v4517, %v4518
        %v4552 = vsel %vm1448, %v4516, %v4517
        %v4553 = vsel %vm1448, %v4515, %v4516
        %v4554 = vsel %vm1448, %v4514, %v4515
        %v4555 = vsel %vm1448, %v4513, %v4514
        %v4556 = vsel %vm1448, %v4512, %v4513
        %v4557 = vsel %vm1448, %v4511, %v4512
        %v4558 = vsel %vm1448, %v4510, %v4511
        %v4559 = vsel %vm1448, %v4509, %v4510
        %v4560 = vsel %vm1448, %v4508, %v4509
        %v4561 = vsel %vm1448, %v4507, %v4508
        %v4562 = vsel %vm1448, %v4506, %v4507
        %v4563 = vsel %vm1448, %v4505, %v4506
        %v4564 = vsel %vm1448, %v4504, %v4505
        %v4565 = vsel %vm1448, %v4503, %v4504
        %v4566 = vsel %vm1448, %v4534, %v4503
        %v4567 = vmul.f32 %v4535, %v1483
        %v4568 = vmul.f32 %v4566, %v1487
        %v4569 = vmul.f32 %v4565, %v1491
        %v4570 = vmul.f32 %v4564, %v1495
        %v4571 = vmul.f32 %v4563, %v1499
        %v4572 = vmul.f32 %v4562, %v1503
        %v4573 = vmul.f32 %v4561, %v1507
        %v4574 = vmul.f32 %v4560, %v1511
        %v4575 = vmul.f32 %v4559, %v1515
        %v4576 = vmul.f32 %v4558, %v1519
        %v4577 = vmul.f32 %v4557, %v1523
        %v4578 = vmul.f32 %v4556, %v1527
        %v4579 = vmul.f32 %v4555, %v1531
        %v4580 = vmul.f32 %v4554, %v1535
        %v4581 = vmul.f32 %v4553, %v1539
        %v4582 = vmul.f32 %v4552, %v1543
        %v4583 = vmul.f32 %v4551, %v1547
        %v4584 = vmul.f32 %v4550, %v1551
        %v4585 = vmul.f32 %v4549, %v1555
        %v4586 = vmul.f32 %v4548, %v1559
        %v4587 = vmul.f32 %v4547, %v1563
        %v4588 = vmul.f32 %v4546, %v1567
        %v4589 = vmul.f32 %v4545, %v1571
        %v4590 = vmul.f32 %v4544, %v1575
        %v4591 = vmul.f32 %v4543, %v1579
        %v4592 = vmul.f32 %v4542, %v1583
        %v4593 = vmul.f32 %v4541, %v1587
        %v4594 = vmul.f32 %v4540, %v1591
        %v4595 = vmul.f32 %v4539, %v1595
        %v4596 = vmul.f32 %v4538, %v1599
        %v4597 = vmul.f32 %v4537, %v1603
        %v4598 = vmul.f32 %v4536, %v1607
        %v4599 = vpack.c.bf16 %v4568, %v4567
        %v4600 = vpack.c.bf16 %v4570, %v4569
        %v4601 = vpack.c.bf16 %v4572, %v4571
        %v4602 = vpack.c.bf16 %v4574, %v4573
        %v4603 = vpack.c.bf16 %v4576, %v4575
        %v4604 = vpack.c.bf16 %v4578, %v4577
        %v4605 = vpack.c.bf16 %v4580, %v4579
        %v4606 = vpack.c.bf16 %v4582, %v4581
        %v4607 = vpack.c.bf16 %v4584, %v4583
        %v4608 = vpack.c.bf16 %v4586, %v4585
        %v4609 = vpack.c.bf16 %v4588, %v4587
        %v4610 = vpack.c.bf16 %v4590, %v4589
        %v4611 = vpack.c.bf16 %v4592, %v4591
        %v4612 = vpack.c.bf16 %v4594, %v4593
        %v4613 = vpack.c.bf16 %v4596, %v4595
        %v4614 = vpack.c.bf16 %v4598, %v4597
        %v4615 = vmul.f32 %v4406, %v1659
        %v4616 = vmul.f32 %v4405, %v1663
        %v4617 = vmul.f32 %v4404, %v1667
        %v4618 = vmul.f32 %v4403, %v1671
        %v4619 = vmul.f32 %v4402, %v1675
        %v4620 = vmul.f32 %v4401, %v1679
        %v4621 = vmul.f32 %v4400, %v1683
        %v4622 = vmul.f32 %v4399, %v1687
        %v4623 = vmul.f32 %v4398, %v1691
        %v4624 = vmul.f32 %v4397, %v1695
        %v4625 = vmul.f32 %v4396, %v1699
        %v4626 = vmul.f32 %v4395, %v1703
        %v4627 = vmul.f32 %v4394, %v1707
        %v4628 = vmul.f32 %v4393, %v1711
        %v4629 = vmul.f32 %v4392, %v1715
        %v4630 = vmul.f32 %v4391, %v1719
        %v4631 = vmul.f32 %v4390, %v1723
        %v4632 = vmul.f32 %v4389, %v1727
        %v4633 = vmul.f32 %v4388, %v1731
        %v4634 = vmul.f32 %v4387, %v1735
        %v4635 = vmul.f32 %v4386, %v1739
        %v4636 = vmul.f32 %v4385, %v1743
        %v4637 = vmul.f32 %v4384, %v1747
        %v4638 = vmul.f32 %v4383, %v1751
        %v4639 = vmul.f32 %v4382, %v1755
        %v4640 = vmul.f32 %v4381, %v1759
        %v4641 = vmul.f32 %v4380, %v1763
        %v4642 = vmul.f32 %v4379, %v1767
        %v4643 = vmul.f32 %v4378, %v1771
        %v4644 = vmul.f32 %v4377, %v1775
        %v4645 = vmul.f32 %v4376, %v1779
        %v4646 = vmul.f32 %v4375, %v1783
        %v4647 = vpack.c.bf16 %v4616, %v4615
        %v4648 = vpack.c.bf16 %v4618, %v4617
        %v4649 = vpack.c.bf16 %v4620, %v4619
        %v4650 = vpack.c.bf16 %v4622, %v4621
        %v4651 = vpack.c.bf16 %v4624, %v4623
        %v4652 = vpack.c.bf16 %v4626, %v4625
        %v4653 = vpack.c.bf16 %v4628, %v4627
        %v4654 = vpack.c.bf16 %v4630, %v4629
        %v4655 = vpack.c.bf16 %v4632, %v4631
        %v4656 = vpack.c.bf16 %v4634, %v4633
        %v4657 = vpack.c.bf16 %v4636, %v4635
        %v4658 = vpack.c.bf16 %v4638, %v4637
        %v4659 = vpack.c.bf16 %v4640, %v4639
        %v4660 = vpack.c.bf16 %v4642, %v4641
        %v4661 = vpack.c.bf16 %v4644, %v4643
        %v4662 = vpack.c.bf16 %v4646, %v4645
        %v4663 = vpack.c.bf16 %v4295, %v4294
        %v4664 = vpack.c.bf16 %v4297, %v4296
        %v4665 = vpack.c.bf16 %v4299, %v4298
        %v4666 = vpack.c.bf16 %v4301, %v4300
        %v4667 = vpack.c.bf16 %v4303, %v4302
        %v4668 = vpack.c.bf16 %v4305, %v4304
        %v4669 = vpack.c.bf16 %v4307, %v4306
        %v4670 = vpack.c.bf16 %v4309, %v4308
        %v4671 = vpack.c.bf16 %v4311, %v4310
        %v4672 = vpack.c.bf16 %v4313, %v4312
        %v4673 = vpack.c.bf16 %v4315, %v4314
        %v4674 = vpack.c.bf16 %v4317, %v4316
        %v4675 = vpack.c.bf16 %v4319, %v4318
        %v4676 = vpack.c.bf16 %v4321, %v4320
        %v4677 = vpack.c.bf16 %v4323, %v4322
        %v4678 = vpack.c.bf16 %v4325, %v4324
        %v4679 = vmul.f32 %v4565, %v1851
        %v4680 = vmul.f32 %v4564, %v1855
        %v4681 = vmul.f32 %v4563, %v1859
        %v4682 = vmul.f32 %v4562, %v1863
        %v4683 = vmul.f32 %v4561, %v1867
        %v4684 = vmul.f32 %v4560, %v1871
        %v4685 = vmul.f32 %v4559, %v1875
        %v4686 = vmul.f32 %v4558, %v1879
        %v4687 = vmul.f32 %v4557, %v1883
        %v4688 = vmul.f32 %v4556, %v1887
        %v4689 = vmul.f32 %v4555, %v1891
        %v4690 = vmul.f32 %v4554, %v1895
        %v4691 = vmul.f32 %v4553, %v1899
        %v4692 = vmul.f32 %v4552, %v1903
        %v4693 = vmul.f32 %v4551, %v1907
        %v4694 = vmul.f32 %v4550, %v1911
        %v4695 = vmul.f32 %v4549, %v1915
        %v4696 = vmul.f32 %v4548, %v1919
        %v4697 = vmul.f32 %v4547, %v1923
        %v4698 = vmul.f32 %v4546, %v1927
        %v4699 = vmul.f32 %v4545, %v1931
        %v4700 = vmul.f32 %v4544, %v1935
        %v4701 = vmul.f32 %v4543, %v1939
        %v4702 = vmul.f32 %v4542, %v1943
        %v4703 = vmul.f32 %v4541, %v1947
        %v4704 = vmul.f32 %v4540, %v1951
        %v4705 = vmul.f32 %v4539, %v1955
        %v4706 = vmul.f32 %v4538, %v1959
        %v4707 = vmul.f32 %v4537, %v1963
        %v4708 = vmul.f32 %v4536, %v1967
        %v4709 = vmul.f32 %v4535, %v1971
        %v4710 = vmul.f32 %v4566, %v1975
        %v4711 = vpack.c.bf16 %v4680, %v4679
        %v4712 = vpack.c.bf16 %v4682, %v4681
        %v4713 = vpack.c.bf16 %v4684, %v4683
        %v4714 = vpack.c.bf16 %v4686, %v4685
        %v4715 = vpack.c.bf16 %v4688, %v4687
        %v4716 = vpack.c.bf16 %v4690, %v4689
        %v4717 = vpack.c.bf16 %v4692, %v4691
        %v4718 = vpack.c.bf16 %v4694, %v4693
        %v4719 = vpack.c.bf16 %v4696, %v4695
        %v4720 = vpack.c.bf16 %v4698, %v4697
        %v4721 = vpack.c.bf16 %v4700, %v4699
        %v4722 = vpack.c.bf16 %v4702, %v4701
        %v4723 = vpack.c.bf16 %v4704, %v4703
        %v4724 = vpack.c.bf16 %v4706, %v4705
        %v4725 = vpack.c.bf16 %v4708, %v4707
        %v4726 = vpack.c.bf16 %v4710, %v4709
        %v4727 = vmul.f32 %v4404, %v2027
        %v4728 = vmul.f32 %v4403, %v2031
        %v4729 = vmul.f32 %v4402, %v2035
        %v4730 = vmul.f32 %v4401, %v2039
        %v4731 = vmul.f32 %v4400, %v2043
        %v4732 = vmul.f32 %v4399, %v2047
        %v4733 = vmul.f32 %v4398, %v2051
        %v4734 = vmul.f32 %v4397, %v2055
        %v4735 = vmul.f32 %v4396, %v2059
        %v4736 = vmul.f32 %v4395, %v2063
        %v4737 = vmul.f32 %v4394, %v2067
        %v4738 = vmul.f32 %v4393, %v2071
        %v4739 = vmul.f32 %v4392, %v2075
        %v4740 = vmul.f32 %v4391, %v2079
        %v4741 = vmul.f32 %v4390, %v2083
        %v4742 = vmul.f32 %v4389, %v2087
        %v4743 = vmul.f32 %v4388, %v2091
        %v4744 = vmul.f32 %v4387, %v2095
        %v4745 = vmul.f32 %v4386, %v2099
        %v4746 = vmul.f32 %v4385, %v2103
        %v4747 = vmul.f32 %v4384, %v2107
        %v4748 = vmul.f32 %v4383, %v2111
        %v4749 = vmul.f32 %v4382, %v2115
        %v4750 = vmul.f32 %v4381, %v2119
        %v4751 = vmul.f32 %v4380, %v2123
        %v4752 = vmul.f32 %v4379, %v2127
        %v4753 = vmul.f32 %v4378, %v2131
        %v4754 = vmul.f32 %v4377, %v2135
        %v4755 = vmul.f32 %v4376, %v2139
        %v4756 = vmul.f32 %v4375, %v2143
        %v4757 = vmul.f32 %v4406, %v2147
        %v4758 = vmul.f32 %v4405, %v2151
        %v4759 = vpack.c.bf16 %v4728, %v4727
        %v4760 = vpack.c.bf16 %v4730, %v4729
        %v4761 = vpack.c.bf16 %v4732, %v4731
        %v4762 = vpack.c.bf16 %v4734, %v4733
        %v4763 = vpack.c.bf16 %v4736, %v4735
        %v4764 = vpack.c.bf16 %v4738, %v4737
        %v4765 = vpack.c.bf16 %v4740, %v4739
        %v4766 = vpack.c.bf16 %v4742, %v4741
        %v4767 = vpack.c.bf16 %v4744, %v4743
        %v4768 = vpack.c.bf16 %v4746, %v4745
        %v4769 = vpack.c.bf16 %v4748, %v4747
        %v4770 = vpack.c.bf16 %v4750, %v4749
        %v4771 = vpack.c.bf16 %v4752, %v4751
        %v4772 = vpack.c.bf16 %v4754, %v4753
        %v4773 = vpack.c.bf16 %v4756, %v4755
        %v4774 = vpack.c.bf16 %v4758, %v4757
        %v4775 = vmul.f32 %v4296, %v2203
        %v4776 = vmul.f32 %v4297, %v2207
        %v4777 = vmul.f32 %v4298, %v2211
        %v4778 = vmul.f32 %v4299, %v2215
        %v4779 = vmul.f32 %v4300, %v2219
        %v4780 = vmul.f32 %v4301, %v2223
        %v4781 = vmul.f32 %v4302, %v2227
        %v4782 = vmul.f32 %v4303, %v2231
        %v4783 = vmul.f32 %v4304, %v2235
        %v4784 = vmul.f32 %v4305, %v2239
        %v4785 = vmul.f32 %v4306, %v2243
        %v4786 = vmul.f32 %v4307, %v2247
        %v4787 = vmul.f32 %v4308, %v2251
        %v4788 = vmul.f32 %v4309, %v2255
        %v4789 = vmul.f32 %v4310, %v2259
        %v4790 = vmul.f32 %v4311, %v2263
        %v4791 = vmul.f32 %v4312, %v2267
        %v4792 = vmul.f32 %v4313, %v2271
        %v4793 = vmul.f32 %v4314, %v2275
        %v4794 = vmul.f32 %v4315, %v2279
        %v4795 = vmul.f32 %v4316, %v2283
        %v4796 = vmul.f32 %v4317, %v2287
        %v4797 = vmul.f32 %v4318, %v2291
        %v4798 = vmul.f32 %v4319, %v2295
        %v4799 = vmul.f32 %v4320, %v2299
        %v4800 = vmul.f32 %v4321, %v2303
        %v4801 = vmul.f32 %v4322, %v2307
        %v4802 = vmul.f32 %v4323, %v2311
        %v4803 = vmul.f32 %v4324, %v2315
        %v4804 = vmul.f32 %v4325, %v2319
        %v4805 = vmul.f32 %v4294, %v2323
        %v4806 = vmul.f32 %v4295, %v2327
        %v4807 = vpack.c.bf16 %v4776, %v4775
        %v4808 = vpack.c.bf16 %v4778, %v4777
        %v4809 = vpack.c.bf16 %v4780, %v4779
        %v4810 = vpack.c.bf16 %v4782, %v4781
        %v4811 = vpack.c.bf16 %v4784, %v4783
        %v4812 = vpack.c.bf16 %v4786, %v4785
        %v4813 = vpack.c.bf16 %v4788, %v4787
        %v4814 = vpack.c.bf16 %v4790, %v4789
        %v4815 = vpack.c.bf16 %v4792, %v4791
        %v4816 = vpack.c.bf16 %v4794, %v4793
        %v4817 = vpack.c.bf16 %v4796, %v4795
        %v4818 = vpack.c.bf16 %v4798, %v4797
        %v4819 = vpack.c.bf16 %v4800, %v4799
        %v4820 = vpack.c.bf16 %v4802, %v4801
        %v4821 = vpack.c.bf16 %v4804, %v4803
        %v4822 = vpack.c.bf16 %v4806, %v4805
        %v4823 = vmul.f32 %v4563, %v2379
        %v4824 = vmul.f32 %v4562, %v2383
        %v4825 = vmul.f32 %v4561, %v2387
        %v4826 = vmul.f32 %v4560, %v2391
        %v4827 = vmul.f32 %v4559, %v2395
        %v4828 = vmul.f32 %v4558, %v2399
        %v4829 = vmul.f32 %v4557, %v2403
        %v4830 = vmul.f32 %v4556, %v2407
        %v4831 = vmul.f32 %v4555, %v2411
        %v4832 = vmul.f32 %v4554, %v2415
        %v4833 = vmul.f32 %v4553, %v2419
        %v4834 = vmul.f32 %v4552, %v2423
        %v4835 = vmul.f32 %v4551, %v2427
        %v4836 = vmul.f32 %v4550, %v2431
        %v4837 = vmul.f32 %v4549, %v2435
        %v4838 = vmul.f32 %v4548, %v2439
        %v4839 = vmul.f32 %v4547, %v2443
        %v4840 = vmul.f32 %v4546, %v2447
        %v4841 = vmul.f32 %v4545, %v2451
        %v4842 = vmul.f32 %v4544, %v2455
        %v4843 = vmul.f32 %v4543, %v2459
        %v4844 = vmul.f32 %v4542, %v2463
        %v4845 = vmul.f32 %v4541, %v2467
        %v4846 = vmul.f32 %v4540, %v2471
        %v4847 = vmul.f32 %v4539, %v2475
        %v4848 = vmul.f32 %v4538, %v2479
        %v4849 = vmul.f32 %v4537, %v2483
        %v4850 = vmul.f32 %v4536, %v2487
        %v4851 = vmul.f32 %v4535, %v2491
        %v4852 = vmul.f32 %v4566, %v2495
        %v4853 = vmul.f32 %v4565, %v2499
        %v4854 = vmul.f32 %v4564, %v2503
        %v4855 = vpack.c.bf16 %v4824, %v4823
        %v4856 = vpack.c.bf16 %v4826, %v4825
        %v4857 = vpack.c.bf16 %v4828, %v4827
        %v4858 = vpack.c.bf16 %v4830, %v4829
        %v4859 = vpack.c.bf16 %v4832, %v4831
        %v4860 = vpack.c.bf16 %v4834, %v4833
        %v4861 = vpack.c.bf16 %v4836, %v4835
        %v4862 = vpack.c.bf16 %v4838, %v4837
        %v4863 = vpack.c.bf16 %v4840, %v4839
        %v4864 = vpack.c.bf16 %v4842, %v4841
        %v4865 = vpack.c.bf16 %v4844, %v4843
        %v4866 = vpack.c.bf16 %v4846, %v4845
        %v4867 = vpack.c.bf16 %v4848, %v4847
        %v4868 = vpack.c.bf16 %v4850, %v4849
        %v4869 = vpack.c.bf16 %v4852, %v4851
        %v4870 = vpack.c.bf16 %v4854, %v4853
        %4887 = vrot.lane.b32.xlu0 %v4487, 64
        %v4888 = vpop.permute.xlu0 %4887
        %4889 = vrot.lane.b32.xlu0 %v4488, 64
        %v4890 = vpop.permute.xlu0 %4889
        %4891 = vrot.lane.b32.xlu0 %v4489, 64
        %v4892 = vpop.permute.xlu0 %4891
        %4893 = vrot.lane.b32.xlu0 %v4490, 64
        %v4894 = vpop.permute.xlu0 %4893
        %4895 = vrot.lane.b32.xlu0 %v4491, 64
        %v4896 = vpop.permute.xlu0 %4895
        %4897 = vrot.lane.b32.xlu0 %v4492, 64
        %v4898 = vpop.permute.xlu0 %4897
        %4899 = vrot.lane.b32.xlu0 %v4493, 64
        %v4900 = vpop.permute.xlu0 %4899
        %4901 = vrot.lane.b32.xlu0 %v4494, 64
        %v4902 = vpop.permute.xlu0 %4901
        %4903 = vrot.lane.b32.xlu0 %v4495, 64
        %v4904 = vpop.permute.xlu0 %4903
        %4905 = vrot.lane.b32.xlu0 %v4496, 64
        %v4906 = vpop.permute.xlu0 %4905
        %4907 = vrot.lane.b32.xlu0 %v4497, 64
        %v4908 = vpop.permute.xlu0 %4907
        %4909 = vrot.lane.b32.xlu0 %v4498, 64
        %v4910 = vpop.permute.xlu0 %4909
        %4911 = vrot.lane.b32.xlu0 %v4499, 64
        %v4912 = vpop.permute.xlu0 %4911
        %4913 = vrot.lane.b32.xlu0 %v4500, 64
        %v4914 = vpop.permute.xlu0 %4913
        %4915 = vrot.lane.b32.xlu0 %v4501, 64
        %v4916 = vpop.permute.xlu0 %4915
        %4917 = vrot.lane.b32.xlu0 %v4502, 64
        %v4918 = vpop.permute.xlu0 %4917
        %4935 = vrot.lane.b32.xlu0 %v4647, 64
        %v4936 = vpop.permute.xlu0 %4935
        %4937 = vrot.lane.b32.xlu0 %v4648, 64
        %v4938 = vpop.permute.xlu0 %4937
        %4939 = vrot.lane.b32.xlu0 %v4649, 64
        %v4940 = vpop.permute.xlu0 %4939
        %4941 = vrot.lane.b32.xlu0 %v4650, 64
        %v4942 = vpop.permute.xlu0 %4941
        %4943 = vrot.lane.b32.xlu0 %v4651, 64
        %v4944 = vpop.permute.xlu0 %4943
        %4945 = vrot.lane.b32.xlu0 %v4652, 64
        %v4946 = vpop.permute.xlu0 %4945
        %4947 = vrot.lane.b32.xlu0 %v4653, 64
        %v4948 = vpop.permute.xlu0 %4947
        %4949 = vrot.lane.b32.xlu0 %v4654, 64
        %v4950 = vpop.permute.xlu0 %4949
        %4951 = vrot.lane.b32.xlu0 %v4655, 64
        %v4952 = vpop.permute.xlu0 %4951
        %4953 = vrot.lane.b32.xlu0 %v4656, 64
        %v4954 = vpop.permute.xlu0 %4953
        %4955 = vrot.lane.b32.xlu0 %v4657, 64
        %v4956 = vpop.permute.xlu0 %4955
        %4957 = vrot.lane.b32.xlu0 %v4658, 64
        %v4958 = vpop.permute.xlu0 %4957
        %4959 = vrot.lane.b32.xlu0 %v4659, 64
        %v4960 = vpop.permute.xlu0 %4959
        %4961 = vrot.lane.b32.xlu0 %v4660, 64
        %v4962 = vpop.permute.xlu0 %4961
        %4963 = vrot.lane.b32.xlu0 %v4661, 64
        %v4964 = vpop.permute.xlu0 %4963
        %4965 = vrot.lane.b32.xlu0 %v4662, 64
        %v4966 = vpop.permute.xlu0 %4965
        %4983 = vrot.lane.b32.xlu0 %v4711, 64
        %v4984 = vpop.permute.xlu0 %4983
        %4985 = vrot.lane.b32.xlu0 %v4712, 64
        %v4986 = vpop.permute.xlu0 %4985
        %4987 = vrot.lane.b32.xlu0 %v4713, 64
        %v4988 = vpop.permute.xlu0 %4987
        %4989 = vrot.lane.b32.xlu0 %v4714, 64
        %v4990 = vpop.permute.xlu0 %4989
        %4991 = vrot.lane.b32.xlu0 %v4715, 64
        %v4992 = vpop.permute.xlu0 %4991
        %4993 = vrot.lane.b32.xlu0 %v4716, 64
        %v4994 = vpop.permute.xlu0 %4993
        %4995 = vrot.lane.b32.xlu0 %v4717, 64
        %v4996 = vpop.permute.xlu0 %4995
        %4997 = vrot.lane.b32.xlu0 %v4718, 64
        %v4998 = vpop.permute.xlu0 %4997
        %4999 = vrot.lane.b32.xlu0 %v4719, 64
        %v5000 = vpop.permute.xlu0 %4999
        %5001 = vrot.lane.b32.xlu0 %v4720, 64
        %v5002 = vpop.permute.xlu0 %5001
        %5003 = vrot.lane.b32.xlu0 %v4721, 64
        %v5004 = vpop.permute.xlu0 %5003
        %5005 = vrot.lane.b32.xlu0 %v4722, 64
        %v5006 = vpop.permute.xlu0 %5005
        %5007 = vrot.lane.b32.xlu0 %v4723, 64
        %v5008 = vpop.permute.xlu0 %5007
        %5009 = vrot.lane.b32.xlu0 %v4724, 64
        %v5010 = vpop.permute.xlu0 %5009
        %5011 = vrot.lane.b32.xlu0 %v4725, 64
        %v5012 = vpop.permute.xlu0 %5011
        %5013 = vrot.lane.b32.xlu0 %v4726, 64
        %v5014 = vpop.permute.xlu0 %5013
        %5031 = vrot.lane.b32.xlu0 %v4807, 64
        %v5032 = vpop.permute.xlu0 %5031
        %5033 = vrot.lane.b32.xlu0 %v4808, 64
        %v5034 = vpop.permute.xlu0 %5033
        %5035 = vrot.lane.b32.xlu0 %v4809, 64
        %v5036 = vpop.permute.xlu0 %5035
        %5037 = vrot.lane.b32.xlu0 %v4810, 64
        %v5038 = vpop.permute.xlu0 %5037
        %5039 = vrot.lane.b32.xlu0 %v4811, 64
        %v5040 = vpop.permute.xlu0 %5039
        %5041 = vrot.lane.b32.xlu0 %v4812, 64
        %v5042 = vpop.permute.xlu0 %5041
        %5043 = vrot.lane.b32.xlu0 %v4813, 64
        %v5044 = vpop.permute.xlu0 %5043
        %5045 = vrot.lane.b32.xlu0 %v4814, 64
        %v5046 = vpop.permute.xlu0 %5045
        %5047 = vrot.lane.b32.xlu0 %v4815, 64
        %v5048 = vpop.permute.xlu0 %5047
        %5049 = vrot.lane.b32.xlu0 %v4816, 64
        %v5050 = vpop.permute.xlu0 %5049
        %5051 = vrot.lane.b32.xlu0 %v4817, 64
        %v5052 = vpop.permute.xlu0 %5051
        %5053 = vrot.lane.b32.xlu0 %v4818, 64
        %v5054 = vpop.permute.xlu0 %5053
        %5055 = vrot.lane.b32.xlu0 %v4819, 64
        %v5056 = vpop.permute.xlu0 %5055
        %5057 = vrot.lane.b32.xlu0 %v4820, 64
        %v5058 = vpop.permute.xlu0 %5057
        %5059 = vrot.lane.b32.xlu0 %v4821, 64
        %v5060 = vpop.permute.xlu0 %5059
        %5061 = vrot.lane.b32.xlu0 %v4822, 64
        %v5062 = vpop.permute.xlu0 %5061
        %5079 = vrot.lane.b32.xlu0 %v4327, 64
        %v5080 = vpop.permute.xlu0 %5079
        %5081 = vrot.lane.b32.xlu0 %v4328, 64
        %v5082 = vpop.permute.xlu0 %5081
        %5083 = vrot.lane.b32.xlu0 %v4329, 64
        %v5084 = vpop.permute.xlu0 %5083
        %5085 = vrot.lane.b32.xlu0 %v4330, 64
        %v5086 = vpop.permute.xlu0 %5085
        %5087 = vrot.lane.b32.xlu0 %v4331, 64
        %v5088 = vpop.permute.xlu0 %5087
        %5089 = vrot.lane.b32.xlu0 %v4332, 64
        %v5090 = vpop.permute.xlu0 %5089
        %5091 = vrot.lane.b32.xlu0 %v4333, 64
        %v5092 = vpop.permute.xlu0 %5091
        %5093 = vrot.lane.b32.xlu0 %v4334, 64
        %v5094 = vpop.permute.xlu0 %5093
        %5095 = vrot.lane.b32.xlu0 %v4335, 64
        %v5096 = vpop.permute.xlu0 %5095
        %5097 = vrot.lane.b32.xlu0 %v4336, 64
        %v5098 = vpop.permute.xlu0 %5097
        %5099 = vrot.lane.b32.xlu0 %v4337, 64
        %v5100 = vpop.permute.xlu0 %5099
        %5101 = vrot.lane.b32.xlu0 %v4338, 64
        %v5102 = vpop.permute.xlu0 %5101
        %5103 = vrot.lane.b32.xlu0 %v4339, 64
        %v5104 = vpop.permute.xlu0 %5103
        %5105 = vrot.lane.b32.xlu0 %v4340, 64
        %v5106 = vpop.permute.xlu0 %5105
        %5107 = vrot.lane.b32.xlu0 %v4341, 64
        %v5108 = vpop.permute.xlu0 %5107
        %5109 = vrot.lane.b32.xlu0 %v4342, 64
        %v5110 = vpop.permute.xlu0 %5109
        %v5113 = vsel %vm2889, %v4439, %v4888
        %v5117 = vsel %vm2889, %v4440, %v4890
        %v5121 = vsel %vm2889, %v4441, %v4892
        %v5125 = vsel %vm2889, %v4442, %v4894
        %v5129 = vsel %vm2889, %v4443, %v4896
        %v5133 = vsel %vm2889, %v4444, %v4898
        %v5137 = vsel %vm2889, %v4445, %v4900
        %v5141 = vsel %vm2889, %v4446, %v4902
        %v5145 = vsel %vm2889, %v4447, %v4904
        %v5149 = vsel %vm2889, %v4448, %v4906
        %v5153 = vsel %vm2889, %v4449, %v4908
        %v5157 = vsel %vm2889, %v4450, %v4910
        %v5161 = vsel %vm2889, %v4451, %v4912
        %v5165 = vsel %vm2889, %v4452, %v4914
        %v5169 = vsel %vm2889, %v4453, %v4916
        %v5173 = vsel %vm2889, %v4454, %v4918
        %v5177 = vsel %vm2889, %v4599, %v4936
        %v5181 = vsel %vm2889, %v4600, %v4938
        %v5185 = vsel %vm2889, %v4601, %v4940
        %v5189 = vsel %vm2889, %v4602, %v4942
        %v5193 = vsel %vm2889, %v4603, %v4944
        %v5197 = vsel %vm2889, %v4604, %v4946
        %v5201 = vsel %vm2889, %v4605, %v4948
        %v5205 = vsel %vm2889, %v4606, %v4950
        %v5209 = vsel %vm2889, %v4607, %v4952
        %v5213 = vsel %vm2889, %v4608, %v4954
        %v5217 = vsel %vm2889, %v4609, %v4956
        %v5221 = vsel %vm2889, %v4610, %v4958
        %v5225 = vsel %vm2889, %v4611, %v4960
        %v5229 = vsel %vm2889, %v4612, %v4962
        %v5233 = vsel %vm2889, %v4613, %v4964
        %v5237 = vsel %vm2889, %v4614, %v4966
        %v5241 = vsel %vm2889, %v4663, %v4984
        %v5245 = vsel %vm2889, %v4664, %v4986
        %v5249 = vsel %vm2889, %v4665, %v4988
        %v5253 = vsel %vm2889, %v4666, %v4990
        %v5257 = vsel %vm2889, %v4667, %v4992
        %v5261 = vsel %vm2889, %v4668, %v4994
        %v5265 = vsel %vm2889, %v4669, %v4996
        %v5269 = vsel %vm2889, %v4670, %v4998
        %v5273 = vsel %vm2889, %v4671, %v5000
        %v5277 = vsel %vm2889, %v4672, %v5002
        %v5281 = vsel %vm2889, %v4673, %v5004
        %v5285 = vsel %vm2889, %v4674, %v5006
        %v5289 = vsel %vm2889, %v4675, %v5008
        %v5293 = vsel %vm2889, %v4676, %v5010
        %v5297 = vsel %vm2889, %v4677, %v5012
        %v5301 = vsel %vm2889, %v4678, %v5014
        %v5305 = vsel %vm2889, %v4759, %v5032
        %v5309 = vsel %vm2889, %v4760, %v5034
        %v5313 = vsel %vm2889, %v4761, %v5036
        %v5317 = vsel %vm2889, %v4762, %v5038
        %v5321 = vsel %vm2889, %v4763, %v5040
        %v5325 = vsel %vm2889, %v4764, %v5042
        %v5329 = vsel %vm2889, %v4765, %v5044
        %v5333 = vsel %vm2889, %v4766, %v5046
        %v5337 = vsel %vm2889, %v4767, %v5048
        %v5341 = vsel %vm2889, %v4768, %v5050
        %v5345 = vsel %vm2889, %v4769, %v5052
        %v5349 = vsel %vm2889, %v4770, %v5054
        %v5353 = vsel %vm2889, %v4771, %v5056
        %v5357 = vsel %vm2889, %v4772, %v5058
        %v5361 = vsel %vm2889, %v4773, %v5060
        %v5365 = vsel %vm2889, %v4774, %v5062
        %v5369 = vsel %vm2889, %v4855, %v5080
        %v5372 = vsel %vm2889, %v4856, %v5082
        %v5375 = vsel %vm2889, %v4857, %v5084
        %v5378 = vsel %vm2889, %v4858, %v5086
        %v5381 = vsel %vm2889, %v4859, %v5088
        %v5384 = vsel %vm2889, %v4860, %v5090
        %v5387 = vsel %vm2889, %v4861, %v5092
        %v5390 = vsel %vm2889, %v4862, %v5094
        %v5393 = vsel %vm2889, %v4863, %v5096
        %v5396 = vsel %vm2889, %v4864, %v5098
        %v5399 = vsel %vm2889, %v4865, %v5100
        %v5402 = vsel %vm2889, %v4866, %v5102
        %v5405 = vsel %vm2889, %v4867, %v5104
        %v5408 = vsel %vm2889, %v4868, %v5106
        %v5411 = vsel %vm2889, %v4869, %v5108
        %v5414 = vsel %vm2889, %v4870, %v5110
        %v5415 = vld [vmem:[%s8] sm:$0xf]
        %v5416 = vld [vmem:[%s8 + $0x4] sm:$0xf]
        %v5417 = vld [vmem:[%s8 + $0x8] sm:$0xf]
        %v5418 = vld [vmem:[%s8 + $0xc] sm:$0xf]
        %v5419 = vld [vmem:[%s8 + $0x10] sm:$0xf]
        %v5420 = vld [vmem:[%s8 + $0x14] sm:$0xf]
        %v5421 = vld [vmem:[%s8 + $0x18] sm:$0xf]
        %v5422 = vld [vmem:[%s8 + $0x1c] sm:$0xf]
        %v5423 = vld [vmem:[%s8 + $0x20] sm:$0xf]
        %v5424 = vld [vmem:[%s8 + $0x24] sm:$0xf]
        %v5425 = vld [vmem:[%s8 + $0x28] sm:$0xf]
        %v5426 = vld [vmem:[%s8 + $0x2c] sm:$0xf]
        %v5427 = vld [vmem:[%s8 + $0x30] sm:$0xf]
        %v5428 = vld [vmem:[%s8 + $0x34] sm:$0xf]
        %v5429 = vld [vmem:[%s8 + $0x38] sm:$0xf]
        %v5430 = vld [vmem:[%s8 + $0x3c] sm:$0xf]
        %v5431 = vld [vmem:[%s8 + $0x40] sm:$0xf]
        %v5432 = vld [vmem:[%s8 + $0x44] sm:$0xf]
        %v5433 = vld [vmem:[%s8 + $0x48] sm:$0xf]
        %v5434 = vld [vmem:[%s8 + $0x4c] sm:$0xf]
        %v5435 = vld [vmem:[%s8 + $0x50] sm:$0xf]
        %v5436 = vld [vmem:[%s8 + $0x54] sm:$0xf]
        %v5437 = vld [vmem:[%s8 + $0x58] sm:$0xf]
        %v5438 = vld [vmem:[%s8 + $0x5c] sm:$0xf]
        %v5439 = vld [vmem:[%s8 + $0x60] sm:$0xf]
        %v5440 = vld [vmem:[%s8 + $0x64] sm:$0xf]
        %v5441 = vld [vmem:[%s8 + $0x68] sm:$0xf]
        %v5442 = vld [vmem:[%s8 + $0x6c] sm:$0xf]
        %v5443 = vld [vmem:[%s8 + $0x70] sm:$0xf]
        %v5444 = vld [vmem:[%s8 + $0x74] sm:$0xf]
        %v5445 = vld [vmem:[%s8 + $0x78] sm:$0xf]
        %v5446 = vld [vmem:[%s8 + $0x7c] sm:$0xf]
        %v5447 = vld [vmem:[%s8 + $0x80] sm:$0xf]
        %v5448 = vld [vmem:[%s8 + $0x84] sm:$0xf]
        %v5449 = vld [vmem:[%s8 + $0x88] sm:$0xf]
        %v5450 = vld [vmem:[%s8 + $0x8c] sm:$0xf]
        %v5451 = vld [vmem:[%s8 + $0x90] sm:$0xf]
        %v5452 = vld [vmem:[%s8 + $0x94] sm:$0xf]
        %v5453 = vld [vmem:[%s8 + $0x98] sm:$0xf]
        %v5454 = vld [vmem:[%s8 + $0x9c] sm:$0xf]
        %v5455 = vld [vmem:[%s8 + $0xa0] sm:$0xf]
        %v5456 = vld [vmem:[%s8 + $0xa4] sm:$0xf]
        %v5457 = vld [vmem:[%s8 + $0xa8] sm:$0xf]
        %v5458 = vld [vmem:[%s8 + $0xac] sm:$0xf]
        %v5459 = vld [vmem:[%s8 + $0xb0] sm:$0xf]
        %v5460 = vld [vmem:[%s8 + $0xb4] sm:$0xf]
        %v5461 = vld [vmem:[%s8 + $0xb8] sm:$0xf]
        %v5462 = vld [vmem:[%s8 + $0xbc] sm:$0xf]
        %v5463 = vld [vmem:[%s8 + $0xc0] sm:$0xf]
        %v5464 = vld [vmem:[%s8 + $0xc4] sm:$0xf]
        %v5465 = vld [vmem:[%s8 + $0xc8] sm:$0xf]
        %v5466 = vld [vmem:[%s8 + $0xcc] sm:$0xf]
        %v5467 = vld [vmem:[%s8 + $0xd0] sm:$0xf]
        %v5468 = vld [vmem:[%s8 + $0xd4] sm:$0xf]
        %v5469 = vld [vmem:[%s8 + $0xd8] sm:$0xf]
        %v5470 = vld [vmem:[%s8 + $0xdc] sm:$0xf]
        %v5471 = vld [vmem:[%s8 + $0xe0] sm:$0xf]
        %v5472 = vld [vmem:[%s8 + $0xe4] sm:$0xf]
        %v5473 = vld [vmem:[%s8 + $0xe8] sm:$0xf]
        %v5474 = vld [vmem:[%s8 + $0xec] sm:$0xf]
        %v5475 = vld [vmem:[%s8 + $0xf0] sm:$0xf]
        %v5476 = vld [vmem:[%s8 + $0xf4] sm:$0xf]
        %v5477 = vld [vmem:[%s8 + $0xf8] sm:$0xf]
        %v5478 = vld [vmem:[%s8 + $0xfc] sm:$0xf]
        %v5479 = vld [vmem:[%s8 + $0x100] sm:$0xf]
        %v5480 = vld [vmem:[%s8 + $0x104] sm:$0xf]
        %v5481 = vld [vmem:[%s8 + $0x108] sm:$0xf]
        %v5482 = vld [vmem:[%s8 + $0x10c] sm:$0xf]
        %v5483 = vld [vmem:[%s8 + $0x110] sm:$0xf]
        %v5484 = vld [vmem:[%s8 + $0x114] sm:$0xf]
        %v5485 = vld [vmem:[%s8 + $0x118] sm:$0xf]
        %v5486 = vld [vmem:[%s8 + $0x11c] sm:$0xf]
        %v5487 = vld [vmem:[%s8 + $0x120] sm:$0xf]
        %v5488 = vld [vmem:[%s8 + $0x124] sm:$0xf]
        %v5489 = vld [vmem:[%s8 + $0x128] sm:$0xf]
        %v5490 = vld [vmem:[%s8 + $0x12c] sm:$0xf]
        %v5491 = vlaneseq
        %v5492 = vshrl.u32 %v5491, 7
        %v5493 = vsub.s32 0, %v5492
        %v5494 = vrot.slane %v4326, %v5493
        %v5571 = vunpack.c.l.b16 %v5415
        %v5572 = vunpack.c.l.b16 %v5416
        %v5573 = vunpack.c.l.b16 %v5417
        %v5574 = vunpack.c.l.b16 %v5418
        %v5575 = vunpack.c.l.b16 %v5419
        %v5576 = vunpack.c.l.b16 %v5420
        %v5577 = vunpack.c.l.b16 %v5421
        %v5578 = vunpack.c.l.b16 %v5422
        %v5579 = vunpack.c.l.b16 %v5423
        %v5580 = vunpack.c.l.b16 %v5424
        %v5581 = vunpack.c.l.b16 %v5425
        %v5582 = vunpack.c.l.b16 %v5426
        %v5583 = vunpack.c.l.b16 %v5427
        %v5584 = vunpack.c.l.b16 %v5428
        %v5585 = vunpack.c.l.b16 %v5429
        %v5586 = vunpack.c.l.b16 %v5430
        %v5587 = vunpack.c.l.b16 %v5431
        %v5588 = vunpack.c.l.b16 %v5432
        %v5589 = vunpack.c.l.b16 %v5433
        %v5590 = vunpack.c.l.b16 %v5434
        %v5591 = vunpack.c.l.b16 %v5435
        %v5592 = vunpack.c.l.b16 %v5436
        %v5593 = vunpack.c.l.b16 %v5437
        %v5594 = vunpack.c.l.b16 %v5438
        %v5595 = vunpack.c.l.b16 %v5439
        %v5596 = vunpack.c.l.b16 %v5440
        %v5597 = vunpack.c.l.b16 %v5441
        %v5598 = vunpack.c.l.b16 %v5442
        %v5599 = vunpack.c.l.b16 %v5443
        %v5600 = vunpack.c.l.b16 %v5444
        %v5601 = vunpack.c.l.b16 %v5445
        %v5602 = vunpack.c.l.b16 %v5446
        %v5603 = vunpack.c.l.b16 %v5447
        %v5604 = vunpack.c.l.b16 %v5448
        %v5605 = vunpack.c.l.b16 %v5449
        %v5606 = vunpack.c.l.b16 %v5450
        %v5607 = vunpack.c.l.b16 %v5451
        %v5608 = vunpack.c.l.b16 %v5452
        %v5609 = vunpack.c.l.b16 %v5453
        %v5610 = vunpack.c.l.b16 %v5454
        %v5611 = vunpack.c.l.b16 %v5455
        %v5612 = vunpack.c.l.b16 %v5456
        %v5613 = vunpack.c.l.b16 %v5457
        %v5614 = vunpack.c.l.b16 %v5458
        %v5615 = vunpack.c.l.b16 %v5459
        %v5616 = vunpack.c.l.b16 %v5460
        %v5617 = vunpack.c.l.b16 %v5461
        %v5618 = vunpack.c.l.b16 %v5462
        %v5619 = vunpack.c.l.b16 %v5463
        %v5620 = vunpack.c.l.b16 %v5464
        %v5621 = vunpack.c.l.b16 %v5465
        %v5622 = vunpack.c.l.b16 %v5466
        %v5623 = vunpack.c.l.b16 %v5467
        %v5624 = vunpack.c.l.b16 %v5468
        %v5625 = vunpack.c.l.b16 %v5469
        %v5626 = vunpack.c.l.b16 %v5470
        %v5627 = vunpack.c.l.b16 %v5471
        %v5628 = vunpack.c.l.b16 %v5472
        %v5629 = vunpack.c.l.b16 %v5473
        %v5630 = vunpack.c.l.b16 %v5474
        %v5631 = vunpack.c.l.b16 %v5475
        %v5632 = vunpack.c.l.b16 %v5476
        %v5633 = vunpack.c.l.b16 %v5477
        %v5634 = vunpack.c.l.b16 %v5478
        %v5635 = vunpack.c.l.b16 %v5479
        %v5636 = vunpack.c.l.b16 %v5480
        %v5637 = vunpack.c.l.b16 %v5481
        %v5638 = vunpack.c.l.b16 %v5482
        %v5639 = vunpack.c.l.b16 %v5483
        %v5640 = vunpack.c.l.b16 %v5484
        %v5641 = vunpack.c.l.b16 %v5485
        %v5642 = vunpack.c.l.b16 %v5486
        %v5643 = vunpack.c.l.b16 %v5487
        %v5644 = vunpack.c.l.b16 %v5488
        %v5645 = vunpack.c.l.b16 %v5489
        %v5646 = vunpack.c.l.b16 %v5490
        %v5647 = vpack.c.b16 %v5572, %v5571
        %v5648 = vpack.c.b16 %v5574, %v5573
        %v5649 = vpack.c.b16 %v5576, %v5575
        %v5650 = vpack.c.b16 %v5578, %v5577
        %v5651 = vpack.c.b16 %v5580, %v5579
        %v5652 = vpack.c.b16 %v5582, %v5581
        %v5653 = vpack.c.b16 %v5584, %v5583
        %v5654 = vpack.c.b16 %v5586, %v5585
        %v5655 = vpack.c.b16 %v5588, %v5587
        %v5656 = vpack.c.b16 %v5590, %v5589
        %v5657 = vpack.c.b16 %v5592, %v5591
        %v5658 = vpack.c.b16 %v5594, %v5593
        %v5659 = vpack.c.b16 %v5596, %v5595
        %v5660 = vpack.c.b16 %v5598, %v5597
        %v5661 = vpack.c.b16 %v5600, %v5599
        %v5662 = vpack.c.b16 %v5602, %v5601
        %v5663 = vpack.c.b16 %v5604, %v5603
        %v5664 = vpack.c.b16 %v5606, %v5605
        %v5665 = vpack.c.b16 %v5608, %v5607
        %v5666 = vpack.c.b16 %v5610, %v5609
        %v5667 = vpack.c.b16 %v5612, %v5611
        %v5668 = vpack.c.b16 %v5614, %v5613
        %v5669 = vpack.c.b16 %v5616, %v5615
        %v5670 = vpack.c.b16 %v5618, %v5617
        %v5671 = vpack.c.b16 %v5620, %v5619
        %v5672 = vpack.c.b16 %v5622, %v5621
        %v5673 = vpack.c.b16 %v5624, %v5623
        %v5674 = vpack.c.b16 %v5626, %v5625
        %v5675 = vpack.c.b16 %v5628, %v5627
        %v5676 = vpack.c.b16 %v5630, %v5629
        %v5677 = vpack.c.b16 %v5632, %v5631
        %v5678 = vpack.c.b16 %v5634, %v5633
        %v5679 = vpack.c.b16 %v5636, %v5635
        %v5680 = vpack.c.b16 %v5638, %v5637
        %v5681 = vpack.c.b16 %v5640, %v5639
        %v5682 = vpack.c.b16 %v5642, %v5641
        %v5683 = vpack.c.b16 %v5644, %v5643
        %v5684 = vpack.c.b16 %v5646, %v5645
        %v5723 = vsel %vm2922, %v5369, 0
        %v5725 = vsel %vm2922, %v5372, 0
        %v5727 = vsel %vm2922, %v5375, 0
        %v5729 = vsel %vm2922, %v5378, 0
        %v5731 = vsel %vm2922, %v5381, 0
        %v5733 = vsel %vm2922, %v5384, 0
        %v5735 = vsel %vm2922, %v5387, 0
        %v5737 = vsel %vm2922, %v5390, 0
        %v5739 = vsel %vm2922, %v5393, 0
        %v5741 = vsel %vm2922, %v5396, 0
        %v5743 = vsel %vm2922, %v5399, 0
        %v5745 = vsel %vm2922, %v5402, 0
        %v5747 = vsel %vm2922, %v5405, 0
        %v5749 = vsel %vm2922, %v5408, 0
        %v5751 = vsel %vm2922, %v5411, 0
        %v5753 = vsel %vm2922, %v5414, 0
        %5755 = vmatprep.subr.bf16.mxu0 0
        %5756 = vmatpush1.bf16.msra.mxu0 %v5654
        %5757 = vmatprep.subr.bf16.mxu0 0
        %5758 = vmatpush1.bf16.msra.mxu0 %v5653
        %5759 = vmatprep.subr.bf16.mxu0 0
        %5760 = vmatpush1.bf16.msra.mxu0 %v5652
        %5761 = vmatprep.subr.bf16.mxu0 0
        %5762 = vmatpush1.bf16.msra.mxu0 %v5651
        %5763 = vmatprep.subr.bf16.mxu0 0
        %5764 = vmatpush1.bf16.msra.mxu0 %v5650
        %5765 = vmatprep.subr.bf16.mxu0 0
        %5766 = vmatpush1.bf16.msra.mxu0 %v5649
        %5767 = vmatprep.subr.bf16.mxu0 0
        %5768 = vmatpush1.bf16.msra.mxu0 %v5648
        %5769 = vmatprep.subr.bf16.mxu0 0
        %5770 = vmatpush1.bf16.msra.mxu0 %v5647
        %5771 = vmatprep.subr.bf16.mxu0 0
        %5772 = vmatpush2.bf16.msra.mxu0 %v5662
        %5773 = vmatprep.subr.bf16.mxu0 0
        %5774 = vmatpush2.bf16.msra.mxu0 %v5661
        %5775 = vmatprep.subr.bf16.mxu0 0
        %5776 = vmatpush2.bf16.msra.mxu0 %v5660
        %5777 = vmatprep.subr.bf16.mxu0 0
        %5778 = vmatpush2.bf16.msra.mxu0 %v5659
        %5779 = vmatprep.subr.bf16.mxu0 0
        %5780 = vmatpush2.bf16.msra.mxu0 %v5658
        %5781 = vmatprep.subr.bf16.mxu0 0
        %5782 = vmatpush2.bf16.msra.mxu0 %v5657
        %5783 = vmatprep.subr.bf16.mxu0 0
        %5784 = vmatpush2.bf16.msra.mxu0 %v5656
        %5785 = vmatprep.subr.bf16.mxu0 0
        %5786 = vmatpush2.bf16.msra.mxu0 %v5655
        %5787 = vmatprep.mubr.bf16.mxu0 %v5177
        %5788 = vmatmul.mubr.bf16.gmra.mxu0 %v5113
        %v5789 = vpop.f32.mrf.mxu0
        %v5790 = vadd.f32 %v5494, %v5789
        %v5791 = vpop.f32.mrf.mxu0
        %v5792 = vpop.f32.mrf.mxu0
        %v5793 = vadd.f32 %v5494, %v5792
        %v5794 = vpop.f32.mrf.mxu0
        %5795 = vmatprep.mubr.bf16.mxu0 %v5181
        %5796 = vmatmul.mubr.bf16.gmra.mxu0 %v5117
        %v5797 = vpop.f32.mrf.mxu0
        %v5798 = vadd.f32 %v5494, %v5797
        %v5799 = vpop.f32.mrf.mxu0
        %v5800 = vpop.f32.mrf.mxu0
        %v5801 = vadd.f32 %v5494, %v5800
        %v5802 = vpop.f32.mrf.mxu0
        %5803 = vmatprep.mubr.bf16.mxu0 %v5185
        %5804 = vmatmul.mubr.bf16.gmra.mxu0 %v5121
        %v5805 = vpop.f32.mrf.mxu0
        %v5806 = vadd.f32 %v5494, %v5805
        %v5807 = vpop.f32.mrf.mxu0
        %v5808 = vpop.f32.mrf.mxu0
        %v5809 = vadd.f32 %v5494, %v5808
        %v5810 = vpop.f32.mrf.mxu0
        %5811 = vmatprep.mubr.bf16.mxu0 %v5189
        %5812 = vmatmul.mubr.bf16.gmra.mxu0 %v5125
        %v5813 = vpop.f32.mrf.mxu0
        %v5814 = vadd.f32 %v5494, %v5813
        %v5815 = vpop.f32.mrf.mxu0
        %v5816 = vpop.f32.mrf.mxu0
        %v5817 = vadd.f32 %v5494, %v5816
        %v5818 = vpop.f32.mrf.mxu0
        %5819 = vmatprep.mubr.bf16.mxu0 %v5193
        %5820 = vmatmul.mubr.bf16.gmra.mxu0 %v5129
        %v5821 = vpop.f32.mrf.mxu0
        %v5822 = vadd.f32 %v5494, %v5821
        %v5823 = vpop.f32.mrf.mxu0
        %v5824 = vpop.f32.mrf.mxu0
        %v5825 = vadd.f32 %v5494, %v5824
        %v5826 = vpop.f32.mrf.mxu0
        %5827 = vmatprep.mubr.bf16.mxu0 %v5197
        %5828 = vmatmul.mubr.bf16.gmra.mxu0 %v5133
        %v5829 = vpop.f32.mrf.mxu0
        %v5830 = vadd.f32 %v5494, %v5829
        %v5831 = vpop.f32.mrf.mxu0
        %v5832 = vpop.f32.mrf.mxu0
        %v5833 = vadd.f32 %v5494, %v5832
        %v5834 = vpop.f32.mrf.mxu0
        %5835 = vmatprep.mubr.bf16.mxu0 %v5201
        %5836 = vmatmul.mubr.bf16.gmra.mxu0 %v5137
        %v5837 = vpop.f32.mrf.mxu0
        %v5838 = vadd.f32 %v5494, %v5837
        %v5839 = vpop.f32.mrf.mxu0
        %v5840 = vpop.f32.mrf.mxu0
        %v5841 = vadd.f32 %v5494, %v5840
        %v5842 = vpop.f32.mrf.mxu0
        %5843 = vmatprep.mubr.bf16.mxu0 %v5205
        %5844 = vmatmul.mubr.bf16.gmra.mxu0 %v5141
        %v5845 = vpop.f32.mrf.mxu0
        %v5846 = vadd.f32 %v5494, %v5845
        %v5847 = vpop.f32.mrf.mxu0
        %v5848 = vpop.f32.mrf.mxu0
        %v5849 = vadd.f32 %v5494, %v5848
        %v5850 = vpop.f32.mrf.mxu0
        %5851 = vmatprep.mubr.bf16.mxu0 %v5209
        %5852 = vmatmul.mubr.bf16.gmra.mxu0 %v5145
        %v5853 = vpop.f32.mrf.mxu0
        %v5854 = vadd.f32 %v5494, %v5853
        %v5855 = vpop.f32.mrf.mxu0
        %v5856 = vpop.f32.mrf.mxu0
        %v5857 = vadd.f32 %v5494, %v5856
        %v5858 = vpop.f32.mrf.mxu0
        %5859 = vmatprep.mubr.bf16.mxu0 %v5213
        %5860 = vmatmul.mubr.bf16.gmra.mxu0 %v5149
        %v5861 = vpop.f32.mrf.mxu0
        %v5862 = vadd.f32 %v5494, %v5861
        %v5863 = vpop.f32.mrf.mxu0
        %v5864 = vpop.f32.mrf.mxu0
        %v5865 = vadd.f32 %v5494, %v5864
        %v5866 = vpop.f32.mrf.mxu0
        %5867 = vmatprep.mubr.bf16.mxu0 %v5217
        %5868 = vmatmul.mubr.bf16.gmra.mxu0 %v5153
        %v5869 = vpop.f32.mrf.mxu0
        %v5870 = vadd.f32 %v5494, %v5869
        %v5871 = vpop.f32.mrf.mxu0
        %v5872 = vpop.f32.mrf.mxu0
        %v5873 = vadd.f32 %v5494, %v5872
        %v5874 = vpop.f32.mrf.mxu0
        %5875 = vmatprep.mubr.bf16.mxu0 %v5221
        %5876 = vmatmul.mubr.bf16.gmra.mxu0 %v5157
        %v5877 = vpop.f32.mrf.mxu0
        %v5878 = vadd.f32 %v5494, %v5877
        %v5879 = vpop.f32.mrf.mxu0
        %v5880 = vpop.f32.mrf.mxu0
        %v5881 = vadd.f32 %v5494, %v5880
        %v5882 = vpop.f32.mrf.mxu0
        %5883 = vmatprep.mubr.bf16.mxu0 %v5225
        %5884 = vmatmul.mubr.bf16.gmra.mxu0 %v5161
        %v5885 = vpop.f32.mrf.mxu0
        %v5886 = vadd.f32 %v5494, %v5885
        %v5887 = vpop.f32.mrf.mxu0
        %v5888 = vpop.f32.mrf.mxu0
        %v5889 = vadd.f32 %v5494, %v5888
        %v5890 = vpop.f32.mrf.mxu0
        %5891 = vmatprep.mubr.bf16.mxu0 %v5229
        %5892 = vmatmul.mubr.bf16.gmra.mxu0 %v5165
        %v5893 = vpop.f32.mrf.mxu0
        %v5894 = vadd.f32 %v5494, %v5893
        %v5895 = vpop.f32.mrf.mxu0
        %v5896 = vpop.f32.mrf.mxu0
        %v5897 = vadd.f32 %v5494, %v5896
        %v5898 = vpop.f32.mrf.mxu0
        %5899 = vmatprep.mubr.bf16.mxu0 %v5233
        %5900 = vmatmul.mubr.bf16.gmra.mxu0 %v5169
        %v5901 = vpop.f32.mrf.mxu0
        %v5902 = vadd.f32 %v5494, %v5901
        %v5903 = vpop.f32.mrf.mxu0
        %v5904 = vpop.f32.mrf.mxu0
        %v5905 = vadd.f32 %v5494, %v5904
        %v5906 = vpop.f32.mrf.mxu0
        %5907 = vmatprep.mubr.bf16.mxu0 %v5237
        %5908 = vmatmul.mubr.bf16.gmra.mxu0 %v5173
        %v5909 = vpop.f32.mrf.mxu0
        %v5910 = vadd.f32 %v5494, %v5909
        %v5911 = vpop.f32.mrf.mxu0
        %v5912 = vpop.f32.mrf.mxu0
        %v5913 = vadd.f32 %v5494, %v5912
        %v5914 = vpop.f32.mrf.mxu0
        %5915 = vdwg.mxu0
        %5916 = vmatprep.subr.bf16.mxu0 0
        %5917 = vmatpush1.bf16.msra.mxu0 %v5670
        %5918 = vmatprep.subr.bf16.mxu0 0
        %5919 = vmatpush1.bf16.msra.mxu0 %v5669
        %5920 = vmatprep.subr.bf16.mxu0 0
        %5921 = vmatpush1.bf16.msra.mxu0 %v5668
        %5922 = vmatprep.subr.bf16.mxu0 0
        %5923 = vmatpush1.bf16.msra.mxu0 %v5667
        %5924 = vmatprep.subr.bf16.mxu0 0
        %5925 = vmatpush1.bf16.msra.mxu0 %v5666
        %5926 = vmatprep.subr.bf16.mxu0 0
        %5927 = vmatpush1.bf16.msra.mxu0 %v5665
        %5928 = vmatprep.subr.bf16.mxu0 0
        %5929 = vmatpush1.bf16.msra.mxu0 %v5664
        %5930 = vmatprep.subr.bf16.mxu0 0
        %5931 = vmatpush1.bf16.msra.mxu0 %v5663
        %5932 = vmatprep.subr.bf16.mxu0 0
        %5933 = vmatpush2.bf16.msra.mxu0 %v5678
        %5934 = vmatprep.subr.bf16.mxu0 0
        %5935 = vmatpush2.bf16.msra.mxu0 %v5677
        %5936 = vmatprep.subr.bf16.mxu0 0
        %5937 = vmatpush2.bf16.msra.mxu0 %v5676
        %5938 = vmatprep.subr.bf16.mxu0 0
        %5939 = vmatpush2.bf16.msra.mxu0 %v5675
        %5940 = vmatprep.subr.bf16.mxu0 0
        %5941 = vmatpush2.bf16.msra.mxu0 %v5674
        %5942 = vmatprep.subr.bf16.mxu0 0
        %5943 = vmatpush2.bf16.msra.mxu0 %v5673
        %5944 = vmatprep.subr.bf16.mxu0 0
        %5945 = vmatpush2.bf16.msra.mxu0 %v5672
        %5946 = vmatprep.subr.bf16.mxu0 0
        %5947 = vmatpush2.bf16.msra.mxu0 %v5671
        %5948 = vmatprep.mubr.bf16.mxu0 %v5305
        %5949 = vmatmul.mubr.bf16.gmra.mxu0 %v5241
        %v5950 = vpop.f32.mrf.mxu0
        %v5951 = vadd.f32 %v5790, %v5950
        %v5952 = vpop.f32.mrf.mxu0
        %v5953 = vpop.f32.mrf.mxu0
        %v5954 = vadd.f32 %v5793, %v5953
        %v5955 = vpop.f32.mrf.mxu0
        %5956 = vmatprep.mubr.bf16.mxu0 %v5309
        %5957 = vmatmul.mubr.bf16.gmra.mxu0 %v5245
        %v5958 = vpop.f32.mrf.mxu0
        %v5959 = vadd.f32 %v5798, %v5958
        %v5960 = vpop.f32.mrf.mxu0
        %v5961 = vpop.f32.mrf.mxu0
        %v5962 = vadd.f32 %v5801, %v5961
        %v5963 = vpop.f32.mrf.mxu0
        %5964 = vmatprep.mubr.bf16.mxu0 %v5313
        %5965 = vmatmul.mubr.bf16.gmra.mxu0 %v5249
        %v5966 = vpop.f32.mrf.mxu0
        %v5967 = vadd.f32 %v5806, %v5966
        %v5968 = vpop.f32.mrf.mxu0
        %v5969 = vpop.f32.mrf.mxu0
        %v5970 = vadd.f32 %v5809, %v5969
        %v5971 = vpop.f32.mrf.mxu0
        %5972 = vmatprep.mubr.bf16.mxu0 %v5317
        %5973 = vmatmul.mubr.bf16.gmra.mxu0 %v5253
        %v5974 = vpop.f32.mrf.mxu0
        %v5975 = vadd.f32 %v5814, %v5974
        %v5976 = vpop.f32.mrf.mxu0
        %v5977 = vpop.f32.mrf.mxu0
        %v5978 = vadd.f32 %v5817, %v5977
        %v5979 = vpop.f32.mrf.mxu0
        %5980 = vmatprep.mubr.bf16.mxu0 %v5321
        %5981 = vmatmul.mubr.bf16.gmra.mxu0 %v5257
        %v5982 = vpop.f32.mrf.mxu0
        %v5983 = vadd.f32 %v5822, %v5982
        %v5984 = vpop.f32.mrf.mxu0
        %v5985 = vpop.f32.mrf.mxu0
        %v5986 = vadd.f32 %v5825, %v5985
        %v5987 = vpop.f32.mrf.mxu0
        %5988 = vmatprep.mubr.bf16.mxu0 %v5325
        %5989 = vmatmul.mubr.bf16.gmra.mxu0 %v5261
        %v5990 = vpop.f32.mrf.mxu0
        %v5991 = vadd.f32 %v5830, %v5990
        %v5992 = vpop.f32.mrf.mxu0
        %v5993 = vpop.f32.mrf.mxu0
        %v5994 = vadd.f32 %v5833, %v5993
        %v5995 = vpop.f32.mrf.mxu0
        %5996 = vmatprep.mubr.bf16.mxu0 %v5329
        %5997 = vmatmul.mubr.bf16.gmra.mxu0 %v5265
        %v5998 = vpop.f32.mrf.mxu0
        %v5999 = vadd.f32 %v5838, %v5998
        %v6000 = vpop.f32.mrf.mxu0
        %v6001 = vpop.f32.mrf.mxu0
        %v6002 = vadd.f32 %v5841, %v6001
        %v6003 = vpop.f32.mrf.mxu0
        %6004 = vmatprep.mubr.bf16.mxu0 %v5333
        %6005 = vmatmul.mubr.bf16.gmra.mxu0 %v5269
        %v6006 = vpop.f32.mrf.mxu0
        %v6007 = vadd.f32 %v5846, %v6006
        %v6008 = vpop.f32.mrf.mxu0
        %v6009 = vpop.f32.mrf.mxu0
        %v6010 = vadd.f32 %v5849, %v6009
        %v6011 = vpop.f32.mrf.mxu0
        %6012 = vmatprep.mubr.bf16.mxu0 %v5337
        %6013 = vmatmul.mubr.bf16.gmra.mxu0 %v5273
        %v6014 = vpop.f32.mrf.mxu0
        %v6015 = vadd.f32 %v5854, %v6014
        %v6016 = vpop.f32.mrf.mxu0
        %v6017 = vpop.f32.mrf.mxu0
        %v6018 = vadd.f32 %v5857, %v6017
        %v6019 = vpop.f32.mrf.mxu0
        %6020 = vmatprep.mubr.bf16.mxu0 %v5341
        %6021 = vmatmul.mubr.bf16.gmra.mxu0 %v5277
        %v6022 = vpop.f32.mrf.mxu0
        %v6023 = vadd.f32 %v5862, %v6022
        %v6024 = vpop.f32.mrf.mxu0
        %v6025 = vpop.f32.mrf.mxu0
        %v6026 = vadd.f32 %v5865, %v6025
        %v6027 = vpop.f32.mrf.mxu0
        %6028 = vmatprep.mubr.bf16.mxu0 %v5345
        %6029 = vmatmul.mubr.bf16.gmra.mxu0 %v5281
        %v6030 = vpop.f32.mrf.mxu0
        %v6031 = vadd.f32 %v5870, %v6030
        %v6032 = vpop.f32.mrf.mxu0
        %v6033 = vpop.f32.mrf.mxu0
        %v6034 = vadd.f32 %v5873, %v6033
        %v6035 = vpop.f32.mrf.mxu0
        %6036 = vmatprep.mubr.bf16.mxu0 %v5349
        %6037 = vmatmul.mubr.bf16.gmra.mxu0 %v5285
        %v6038 = vpop.f32.mrf.mxu0
        %v6039 = vadd.f32 %v5878, %v6038
        %v6040 = vpop.f32.mrf.mxu0
        %v6041 = vpop.f32.mrf.mxu0
        %v6042 = vadd.f32 %v5881, %v6041
        %v6043 = vpop.f32.mrf.mxu0
        %6044 = vmatprep.mubr.bf16.mxu0 %v5353
        %6045 = vmatmul.mubr.bf16.gmra.mxu0 %v5289
        %v6046 = vpop.f32.mrf.mxu0
        %v6047 = vadd.f32 %v5886, %v6046
        %v6048 = vpop.f32.mrf.mxu0
        %v6049 = vpop.f32.mrf.mxu0
        %v6050 = vadd.f32 %v5889, %v6049
        %v6051 = vpop.f32.mrf.mxu0
        %6052 = vmatprep.mubr.bf16.mxu0 %v5357
        %6053 = vmatmul.mubr.bf16.gmra.mxu0 %v5293
        %v6054 = vpop.f32.mrf.mxu0
        %v6055 = vadd.f32 %v5894, %v6054
        %v6056 = vpop.f32.mrf.mxu0
        %v6057 = vpop.f32.mrf.mxu0
        %v6058 = vadd.f32 %v5897, %v6057
        %v6059 = vpop.f32.mrf.mxu0
        %6060 = vmatprep.mubr.bf16.mxu0 %v5361
        %6061 = vmatmul.mubr.bf16.gmra.mxu0 %v5297
        %v6062 = vpop.f32.mrf.mxu0
        %v6063 = vadd.f32 %v5902, %v6062
        %v6064 = vpop.f32.mrf.mxu0
        %v6065 = vpop.f32.mrf.mxu0
        %v6066 = vadd.f32 %v5905, %v6065
        %v6067 = vpop.f32.mrf.mxu0
        %6068 = vmatprep.mubr.bf16.mxu0 %v5365
        %6069 = vmatmul.mubr.bf16.gmra.mxu0 %v5301
        %v6070 = vpop.f32.mrf.mxu0
        %v6071 = vadd.f32 %v5910, %v6070
        %v6072 = vpop.f32.mrf.mxu0
        %v6073 = vpop.f32.mrf.mxu0
        %v6074 = vadd.f32 %v5913, %v6073
        %v6075 = vpop.f32.mrf.mxu0
        %6076 = vdwg.mxu0
        %6077 = vmatprep.subr.bf16.mxu0 0
        %6078 = vmatpush1.bf16.msra.mxu0 0
        %6079 = vmatprep.subr.bf16.mxu0 0
        %6080 = vmatpush1.bf16.msra.mxu0 0
        %6081 = vmatprep.subr.bf16.mxu0 0
        %6082 = vmatpush1.bf16.msra.mxu0 %v5684
        %6083 = vmatprep.subr.bf16.mxu0 0
        %6084 = vmatpush1.bf16.msra.mxu0 %v5683
        %6085 = vmatprep.subr.bf16.mxu0 0
        %6086 = vmatpush1.bf16.msra.mxu0 %v5682
        %6087 = vmatprep.subr.bf16.mxu0 0
        %6088 = vmatpush1.bf16.msra.mxu0 %v5681
        %6089 = vmatprep.subr.bf16.mxu0 0
        %6090 = vmatpush1.bf16.msra.mxu0 %v5680
        %6091 = vmatprep.subr.bf16.mxu0 0
        %6092 = vmatpush1.bf16.msra.mxu0 %v5679
        %6093 = vmatprep.subr.bf16.mxu0 0
        %6094 = vmatpush2.bf16.msra.mxu0 0
        %6095 = vmatprep.subr.bf16.mxu0 0
        %6096 = vmatpush2.bf16.msra.mxu0 0
        %6097 = vmatprep.subr.bf16.mxu0 0
        %6098 = vmatpush2.bf16.msra.mxu0 0
        %6099 = vmatprep.subr.bf16.mxu0 0
        %6100 = vmatpush2.bf16.msra.mxu0 0
        %6101 = vmatprep.subr.bf16.mxu0 0
        %6102 = vmatpush2.bf16.msra.mxu0 0
        %6103 = vmatprep.subr.bf16.mxu0 0
        %6104 = vmatpush2.bf16.msra.mxu0 0
        %6105 = vmatprep.subr.bf16.mxu0 0
        %6106 = vmatpush2.bf16.msra.mxu0 0
        %6107 = vmatprep.subr.bf16.mxu0 0
        %6108 = vmatpush2.bf16.msra.mxu0 0
        %6109 = vmatprep.mubr.bf16.mxu0 0
        %6110 = vmatmul.mubr.bf16.gmra.mxu0 %v5723
        %v6111 = vpop.f32.mrf.mxu0
        %v6112 = vadd.f32 %v5951, %v6111
        %v6113 = vpop.f32.mrf.mxu0
        %v6114 = vpop.f32.mrf.mxu0
        %v6115 = vadd.f32 %v5954, %v6114
        %v6116 = vpop.f32.mrf.mxu0
        %6117 = vmatprep.mubr.bf16.mxu0 0
        %6118 = vmatmul.mubr.bf16.gmra.mxu0 %v5725
        %v6119 = vpop.f32.mrf.mxu0
        %v6120 = vadd.f32 %v5959, %v6119
        %v6121 = vpop.f32.mrf.mxu0
        %v6122 = vpop.f32.mrf.mxu0
        %v6123 = vadd.f32 %v5962, %v6122
        %v6124 = vpop.f32.mrf.mxu0
        %6125 = vmatprep.mubr.bf16.mxu0 0
        %6126 = vmatmul.mubr.bf16.gmra.mxu0 %v5727
        %v6127 = vpop.f32.mrf.mxu0
        %v6128 = vadd.f32 %v5967, %v6127
        %v6129 = vpop.f32.mrf.mxu0
        %v6130 = vpop.f32.mrf.mxu0
        %v6131 = vadd.f32 %v5970, %v6130
        %v6132 = vpop.f32.mrf.mxu0
        %6133 = vmatprep.mubr.bf16.mxu0 0
        %6134 = vmatmul.mubr.bf16.gmra.mxu0 %v5729
        %v6135 = vpop.f32.mrf.mxu0
        %v6136 = vadd.f32 %v5975, %v6135
        %v6137 = vpop.f32.mrf.mxu0
        %v6138 = vpop.f32.mrf.mxu0
        %v6139 = vadd.f32 %v5978, %v6138
        %v6140 = vpop.f32.mrf.mxu0
        %6141 = vmatprep.mubr.bf16.mxu0 0
        %6142 = vmatmul.mubr.bf16.gmra.mxu0 %v5731
        %v6143 = vpop.f32.mrf.mxu0
        %v6144 = vadd.f32 %v5983, %v6143
        %v6145 = vpop.f32.mrf.mxu0
        %v6146 = vpop.f32.mrf.mxu0
        %v6147 = vadd.f32 %v5986, %v6146
        %v6148 = vpop.f32.mrf.mxu0
        %6149 = vmatprep.mubr.bf16.mxu0 0
        %6150 = vmatmul.mubr.bf16.gmra.mxu0 %v5733
        %v6151 = vpop.f32.mrf.mxu0
        %v6152 = vadd.f32 %v5991, %v6151
        %v6153 = vpop.f32.mrf.mxu0
        %v6154 = vpop.f32.mrf.mxu0
        %v6155 = vadd.f32 %v5994, %v6154
        %v6156 = vpop.f32.mrf.mxu0
        %6157 = vmatprep.mubr.bf16.mxu0 0
        %6158 = vmatmul.mubr.bf16.gmra.mxu0 %v5735
        %v6159 = vpop.f32.mrf.mxu0
        %v6160 = vadd.f32 %v5999, %v6159
        %v6161 = vpop.f32.mrf.mxu0
        %v6162 = vpop.f32.mrf.mxu0
        %v6163 = vadd.f32 %v6002, %v6162
        %v6164 = vpop.f32.mrf.mxu0
        %6165 = vmatprep.mubr.bf16.mxu0 0
        %6166 = vmatmul.mubr.bf16.gmra.mxu0 %v5737
        %v6167 = vpop.f32.mrf.mxu0
        %v6168 = vadd.f32 %v6007, %v6167
        %v6169 = vpop.f32.mrf.mxu0
        %v6170 = vpop.f32.mrf.mxu0
        %v6171 = vadd.f32 %v6010, %v6170
        %v6172 = vpop.f32.mrf.mxu0
        %6173 = vmatprep.mubr.bf16.mxu0 0
        %6174 = vmatmul.mubr.bf16.gmra.mxu0 %v5739
        %v6175 = vpop.f32.mrf.mxu0
        %v6176 = vadd.f32 %v6015, %v6175
        %v6177 = vpop.f32.mrf.mxu0
        %v6178 = vpop.f32.mrf.mxu0
        %v6179 = vadd.f32 %v6018, %v6178
        %v6180 = vpop.f32.mrf.mxu0
        %6181 = vmatprep.mubr.bf16.mxu0 0
        %6182 = vmatmul.mubr.bf16.gmra.mxu0 %v5741
        %v6183 = vpop.f32.mrf.mxu0
        %v6184 = vadd.f32 %v6023, %v6183
        %v6185 = vpop.f32.mrf.mxu0
        %v6186 = vpop.f32.mrf.mxu0
        %v6187 = vadd.f32 %v6026, %v6186
        %v6188 = vpop.f32.mrf.mxu0
        %6189 = vmatprep.mubr.bf16.mxu0 0
        %6190 = vmatmul.mubr.bf16.gmra.mxu0 %v5743
        %v6191 = vpop.f32.mrf.mxu0
        %v6192 = vadd.f32 %v6031, %v6191
        %v6193 = vpop.f32.mrf.mxu0
        %v6194 = vpop.f32.mrf.mxu0
        %v6195 = vadd.f32 %v6034, %v6194
        %v6196 = vpop.f32.mrf.mxu0
        %6197 = vmatprep.mubr.bf16.mxu0 0
        %6198 = vmatmul.mubr.bf16.gmra.mxu0 %v5745
        %v6199 = vpop.f32.mrf.mxu0
        %v6200 = vadd.f32 %v6039, %v6199
        %v6201 = vpop.f32.mrf.mxu0
        %v6202 = vpop.f32.mrf.mxu0
        %v6203 = vadd.f32 %v6042, %v6202
        %v6204 = vpop.f32.mrf.mxu0
        %6205 = vmatprep.mubr.bf16.mxu0 0
        %6206 = vmatmul.mubr.bf16.gmra.mxu0 %v5747
        %v6207 = vpop.f32.mrf.mxu0
        %v6208 = vadd.f32 %v6047, %v6207
        %v6209 = vpop.f32.mrf.mxu0
        %v6210 = vpop.f32.mrf.mxu0
        %v6211 = vadd.f32 %v6050, %v6210
        %v6212 = vpop.f32.mrf.mxu0
        %6213 = vmatprep.mubr.bf16.mxu0 0
        %6214 = vmatmul.mubr.bf16.gmra.mxu0 %v5749
        %v6215 = vpop.f32.mrf.mxu0
        %v6216 = vadd.f32 %v6055, %v6215
        %v6217 = vpop.f32.mrf.mxu0
        %v6218 = vpop.f32.mrf.mxu0
        %v6219 = vadd.f32 %v6058, %v6218
        %v6220 = vpop.f32.mrf.mxu0
        %6221 = vmatprep.mubr.bf16.mxu0 0
        %6222 = vmatmul.mubr.bf16.gmra.mxu0 %v5751
        %v6223 = vpop.f32.mrf.mxu0
        %v6224 = vadd.f32 %v6063, %v6223
        %v6225 = vpop.f32.mrf.mxu0
        %v6226 = vpop.f32.mrf.mxu0
        %v6227 = vadd.f32 %v6066, %v6226
        %v6228 = vpop.f32.mrf.mxu0
        %6229 = vmatprep.mubr.bf16.mxu0 0
        %6230 = vmatmul.mubr.bf16.gmra.mxu0 %v5753
        %v6231 = vpop.f32.mrf.mxu0
        %v6232 = vadd.f32 %v6071, %v6231
        %v6233 = vpop.f32.mrf.mxu0
        %v6234 = vpop.f32.mrf.mxu0
        %v6235 = vadd.f32 %v6074, %v6234
        %v6236 = vpop.f32.mrf.mxu0
        %6237 = vdwg.mxu0
        %6238 = vst.msk [vmem:[%s347] sm:$0xff] %vm2889, %v6112
        %6239 = vst.msk [vmem:[%s347 + $0x8] sm:$0xff] %vm2889, %v6115
        %6240 = vst.msk [vmem:[%s347 + $0x10] sm:$0xff] %vm2889, %v6120
        %6241 = vst.msk [vmem:[%s347 + $0x18] sm:$0xff] %vm2889, %v6123
        %6242 = vst.msk [vmem:[%s347 + $0x20] sm:$0xff] %vm2889, %v6128
        %6243 = vst.msk [vmem:[%s347 + $0x28] sm:$0xff] %vm2889, %v6131
        %6244 = vst.msk [vmem:[%s347 + $0x30] sm:$0xff] %vm2889, %v6136
        %6245 = vst.msk [vmem:[%s347 + $0x38] sm:$0xff] %vm2889, %v6139
        %6246 = vst.msk [vmem:[%s347 + $0x40] sm:$0xff] %vm2889, %v6144
        %6247 = vst.msk [vmem:[%s347 + $0x48] sm:$0xff] %vm2889, %v6147
        %6248 = vst.msk [vmem:[%s347 + $0x50] sm:$0xff] %vm2889, %v6152
        %6249 = vst.msk [vmem:[%s347 + $0x58] sm:$0xff] %vm2889, %v6155
        %6250 = vst.msk [vmem:[%s347 + $0x60] sm:$0xff] %vm2889, %v6160
        %6251 = vst.msk [vmem:[%s347 + $0x68] sm:$0xff] %vm2889, %v6163
        %6252 = vst.msk [vmem:[%s347 + $0x70] sm:$0xff] %vm2889, %v6168
        %6253 = vst.msk [vmem:[%s347 + $0x78] sm:$0xff] %vm2889, %v6171
        %6254 = vst.msk [vmem:[%s347 + $0x80] sm:$0xff] %vm2889, %v6176
        %6255 = vst.msk [vmem:[%s347 + $0x88] sm:$0xff] %vm2889, %v6179
        %6256 = vst.msk [vmem:[%s347 + $0x90] sm:$0xff] %vm2889, %v6184
        %6257 = vst.msk [vmem:[%s347 + $0x98] sm:$0xff] %vm2889, %v6187
        %6258 = vst.msk [vmem:[%s347 + $0xa0] sm:$0xff] %vm2889, %v6192
        %6259 = vst.msk [vmem:[%s347 + $0xa8] sm:$0xff] %vm2889, %v6195
        %6260 = vst.msk [vmem:[%s347 + $0xb0] sm:$0xff] %vm2889, %v6200
        %6261 = vst.msk [vmem:[%s347 + $0xb8] sm:$0xff] %vm2889, %v6203
        %6262 = vst.msk [vmem:[%s347 + $0xc0] sm:$0xff] %vm2889, %v6208
        %6263 = vst.msk [vmem:[%s347 + $0xc8] sm:$0xff] %vm2889, %v6211
        %6264 = vst.msk [vmem:[%s347 + $0xd0] sm:$0xff] %vm2889, %v6216
        %6265 = vst.msk [vmem:[%s347 + $0xd8] sm:$0xff] %vm2889, %v6219
        %6266 = vst.msk [vmem:[%s347 + $0xe0] sm:$0xff] %vm2889, %v6224
        %6267 = vst.msk [vmem:[%s347 + $0xe8] sm:$0xff] %vm2889, %v6227
        %6268 = vst.msk [vmem:[%s347 + $0xf0] sm:$0xff] %vm2889, %v6232
        %6269 = vst.msk [vmem:[%s347 + $0xf8] sm:$0xff] %vm2889, %v6235
        %s6270 = sand.u32 %s235, 1
        %s6271 = scalar_lea.sflag [#allocation3], %s6270
        %s6272 = sand.u32 %s235, 1
        %s6273 = smul.addr %s6272, 256
        %s6274 = scalar_lea.vmem [#allocation2], %s6273
        // Predicated region
        $region57: #{res_att_block.1} parent=55 // pred_check
          %p6275 = pneg %p245
        $region58: #{res_att_block.1} parent=55 // pred_check_branch
          %6277 = sbr.rel (%p6275) target = $region60
        $region59: #{res_att_block.1} parent=55 // pred_region
          %s6279 = ssub.s32 4096, 4096
          %6280 = vsyncadd %s6271, %s6279
          %s6281 = smul.addr %s23, 32
          %s6282 = smul.addr %s6281, 128
          %s6283 = scalar_lea.hbm %s9, %s6282
          %s6284 = sshll.u32 %s6274, 4
          %s6285 = int_to_ptr.vmem [resolvable:$true] %s6284
          %6290 = dma.vmem_to_hbm [thread:$0]  %s6285, 4096, %s6283, %s6271, 128, 128, 8
        $region60: #{res_att_block.1} parent=55 // pred_fallthru
          _
      $region56: #{res_att_block.1} parent=5 // pred_fallthru
        _
      %p6291 = scmp.le.s32.totalorder 2, %s18
      // Predicated region
      $region61: #{res_att_block.1} parent=5 // pred_check
        %p6292 = pneg %p6291
      $region62: #{res_att_block.1} parent=5 // pred_check_branch
        %6294 = sbr.rel (%p6292) target = $region64
      $region63: #{res_att_block.1} parent=5 // pred_region
        %s6295 = ssub.s32 %s18, 2
        // Predicated region
        $region65: #{res_att_block.1} parent=63 // pred_check
          %p6296 = pneg %p251
        $region66: #{res_att_block.1} parent=63 // pred_check_branch
          %6298 = sbr.rel (%p6296) target = $region68
        $region67: #{res_att_block.1} parent=63 // pred_region
          %s6299 = sand.u32 %s236, 1
          %s6300 = scalar_lea.sflag [#allocation3], %s6299
          %s6301 = sand.u32 %s236, 1
          %s6302 = smul.addr %s6301, 256
          %s6303 = scalar_lea.vmem [#allocation2], %s6302
          %6304 = dma.done %s6300, 4096
        $region68: #{res_att_block.1} parent=63 // pred_fallthru
          _
      $region64: #{res_att_block.1} parent=5 // pred_fallthru
        _
    $region6: #{res_att_block.1} parent=1 // loop_footer
      %s22 = sadd.s32 1, %s18
    $region7: #{res_att_block.1} parent=1 // loop_footer_branch
      %17 = sbr.rel target = $region3
    $region8: #{res_att_block.1} parent=1 // loop_exit
      _
    %6305 = vsyncpa [#allocation3], 1
    %s6306 = scalar_lea.sflag [#allocation3], 1
    %6307 = vsyncpa %s6306, 1

</llo_original>
